<compile_context>
chip_gen: v6e
topology: v6e:2x2x1
jax: 0.10.0
libtpu: 0.0.40
codegen_flags: <defaults>
</compile_context>

<pallas_src>
import functools
import math

import numpy as np
import jax
import jax.numpy as jnp
from jax.experimental import pallas as pl
from jax.experimental.pallas import tpu as pltpu


def _pick_head_block(bh, requested=None):
    """Heads per grid step: BH itself, or 8 (multiple of 8 keeps the (G, L_Q)
    output tile-aligned; 8 gives >=2 grid steps whenever BH >= 16 so the
    'parallel' axis can shard across v7x's two TensorCores)."""
    if requested is not None and bh % requested == 0 and \
            (requested == bh or requested % 8 == 0):
        return requested
    if bh > 8 and bh % 8 == 0:
        return 8
    return bh


def _pick_k_block(l_k, target=512):
    """L_K tile for kernel 1: full L_K when small/unaligned, else the largest
    multiple of 128 <= target that divides L_K (keeps kernel-1 VMEM O(L_Q*TK))."""
    if l_k <= target or l_k % 128 != 0:
        return l_k
    for tk in range(target, 127, -128):
        if l_k % tk == 0:
            return tk
    return l_k


def _vmem_limit_bytes(spec_bytes, body_bytes):
    """Explicit scoped-VMEM request: double-buffered block DMAs + in-body
    intermediates with headroom, clamped to [32 MiB, 128 MiB]."""
    need = 2 * spec_bytes + body_bytes
    need = int(1.3 * need) + (2 << 20)
    return int(min(max(need, 32 << 20), 128 << 20))


# ----------------------------------------------------------------------------
# Kernel 1: masked max of Q @ K^T over the sampled columns.
#   bias[q, k] = 0 if column k was sampled for query q, else -1e30, so
#   max(qk + bias) is the max over sampled keys only.  Running max is carried
#   in the resident (G, L_Q) output block across the L_K ("arbitrary") axis.
# ----------------------------------------------------------------------------
def _masked_max_kernel(q_ref, kt_ref, bias_ref, mx_ref):
    k_step = pl.program_id(1)
    qk = jnp.einsum('gqd,gdk->gqk', q_ref[...], kt_ref[...],
                    preferred_element_type=jnp.float32)            # (G, L_Q, TK)
    blk_max = jnp.max(qk + bias_ref[...][None, :, :], axis=-1)     # (G, L_Q)

    @pl.when(k_step == 0)
    def _():
        mx_ref[...] = blk_max

    @pl.when(k_step > 0)
    def _():
        mx_ref[...] = jnp.maximum(mx_ref[...], blk_max)


# ----------------------------------------------------------------------------
# Kernel 2: scores = Q_red @ K^T * scale, causal ProbMask, softmax, attn @ V,
# then scatter the u updated rows into the (aliased, bf16) initial context via
# a one-hot matmul on the MXU — all fused in one kernel.
# ----------------------------------------------------------------------------
def _sparse_attn_kernel(q_ref, kt_ref, v_ref, idxc_ref, idxr_ref, ctx0_ref,
                        out_ref, *, scale, mask_flag):
    q = q_ref[...]                      # (G, u, D)    bf16
    kt = kt_ref[...]                    # (G, D, L_K)  bf16
    v = v_ref[...]                      # (G, L_V, D)  bf16
    idx_col = idxc_ref[...]             # (G, u, 1)    i32  selected query pos
    idx_row = idxr_ref[...]             # (G, 1, u)    i32  same, lane layout

    scores = jnp.einsum('gud,gdk->guk', q, kt,
                        preferred_element_type=jnp.float32) * scale  # f32

    if mask_flag:
        # ProbMask: key k is masked for selected query row j iff k > index[j].
        # The "diagonal" key (k == index[j]) is always unmasked, so every row
        # keeps at least one finite score and the softmax below is NaN-free.
        kpos = jax.lax.broadcasted_iota(jnp.int32, scores.shape, 2)
        scores = jnp.where(kpos > idx_col, -jnp.inf, scores)

    # numerically-stable softmax (f32); reciprocal on the EUP slot
    scores = scores - jnp.max(scores, axis=-1, keepdims=True)
    p = jnp.exp(scores)
    inv = pl.reciprocal(jnp.sum(p, axis=-1, keepdims=True), approx=True)
    attn = p * inv

    upd = jnp.einsum('guk,gkd->gud', attn.astype(v.dtype), v,
                     preferred_element_type=jnp.float32)             # (G, u, D)

    # Fused scatter: one-hot selector applied on the MXU (bf16 operands).
    g, n_top, _ = upd.shape
    l_q = out_ref.shape[1]
    lpos = jax.lax.broadcasted_iota(jnp.int32, (g, l_q, n_top), 1)
    one_hot = lpos == idx_row                                        # (G, L_Q, u)
    # lax.top_k indices are distinct per row, so `hit` is exactly 0 or 1.
    hit = jnp.sum(one_hot.astype(jnp.float32), axis=-1, keepdims=True)
    scat = jnp.einsum('glu,gud->gld', one_hot.astype(jnp.bfloat16),
                      upd.astype(jnp.bfloat16),
                      preferred_element_type=jnp.float32)            # (G,L_Q,D)
    ctx0 = ctx0_ref[...].astype(jnp.float32)
    out_ref[...] = (ctx0 * (1.0 - hit) + scat).astype(out_ref.dtype)


# ----------------------------------------------------------------------------
# Wrapper: ProbAttention.forward
# ----------------------------------------------------------------------------
def prob_attention(queries, keys, values, attn_mask=None, *, index_sample,
                   mask_flag=True, factor=5, scale=None, head_block=None,
                   return_debug=False):
    """queries/keys/values: (B, L, H, D).  index_sample: (L_Q, U_part) i32 —
    the torch.randint sample, passed in so the op is deterministic/functional.
    Returns (context (B, L_Q, H, D), None)."""
    B, L_Q, H, D = queries.shape
    L_K = keys.shape[1]
    L_V = values.shape[1]
    BH = B * H
    G = _pick_head_block(BH, head_block)
    assert L_K == L_V
    if mask_flag:
        assert L_Q == L_V, "ProbMask path requires L_Q == L_V"

    U_part = min(factor * int(np.ceil(np.log(L_K))), L_K)
    u = min(factor * int(np.ceil(np.log(L_Q))), L_Q)
    assert index_sample.shape == (L_Q, U_part)

    out_dtype = queries.dtype

    # Single bf16 copies, head-major; K pre-transposed to (BH, D, L_K) so every
    # matmul is in natural (M,K)x(K,N) MXU orientation with L_K lane-dense.
    Qb = jnp.transpose(queries, (0, 2, 1, 3)).reshape(BH, L_Q, D).astype(jnp.bfloat16)
    Ktb = jnp.transpose(keys, (0, 2, 3, 1)).reshape(BH, D, L_K).astype(jnp.bfloat16)
    V_heads = jnp.transpose(values, (0, 2, 1, 3)).reshape(BH, L_V, D)
    Vb = V_heads.astype(jnp.bfloat16)

    # Sample-count matrix (duplicates from randint counted exactly) and the
    # additive -1e30 mask used for the sampled-column max inside kernel 1.
    cnt = jnp.zeros((L_Q, L_K), jnp.float32).at[
        jnp.arange(L_Q)[:, None], index_sample].add(1.0)
    bias = jnp.where(cnt > 0.0, 0.0, -1e30).astype(jnp.float32)

    # --- kernel 1: masked max of QK^T over sampled columns (bf16 MXU, f32 acc)
    TK = _pick_k_block(L_K)
    n_k = L_K // TK
    vmem1 = _vmem_limit_bytes(
        spec_bytes=(G * L_Q * D * 2 + G * D * TK * 2 + L_Q * TK * 4 + G * L_Q * 4),
        body_bytes=2 * G * L_Q * TK * 4)
    qk_max = pl.pallas_call(
        _masked_max_kernel,
        out_shape=jax.ShapeDtypeStruct((BH, L_Q), jnp.float32),
        grid=(BH // G, n_k),
        in_specs=[
            pl.BlockSpec((G, L_Q, D), lambda i, k: (i, 0, 0)),
            pl.BlockSpec((G, D, TK), lambda i, k: (i, 0, k)),
            pl.BlockSpec((L_Q, TK), lambda i, k: (0, k)),
        ],
        out_specs=pl.BlockSpec((G, L_Q), lambda i, k: (i, 0)),
        compiler_params=pltpu.CompilerParams(
            dimension_semantics=("parallel", "arbitrary"),
            vmem_limit_bytes=vmem1),
    )(Qb, Ktb, bias)

    # Duplicate-weighted sampled sum via two MXU-friendly contractions (XLA):
    #   qk_sum[g, q] = sum_k cnt[q, k] * (Q[g, q] . K[g, k])
    #               = Q[g, q, :] . (cnt @ K_g)[q, :]
    ckt = jnp.einsum('qk,gdk->gqd', cnt, Ktb)            # (BH, L_Q, D) f32
    qk_sum = jnp.einsum('gqd,gqd->gq', Qb, ckt)          # (BH, L_Q)    f32
    M = qk_max - qk_sum * (1.0 / L_K)

    # top-u queries (torch topk(sorted=False) => set semantics; indices are
    # distinct, so the one-hot scatter in kernel 2 never overlaps).
    _, M_top = jax.lax.top_k(M, u)                                   # (BH, u)
    Q_red = jnp.take_along_axis(Qb, M_top[..., None], axis=1)        # (BH, u, D)

    scale_val = float(scale) if scale is not None else 1.0 / math.sqrt(D)

    # Initial context in XLA, carried in bf16 (halves kernel-2's dominant HBM
    # bytes); the cumsum itself accumulates in f32 before the cast.
    # TODO(synk): fully fuse the cumsum into kernel 2 (log-step roll scan on the
    # already-loaded V block) to drop this extra HBM pass entirely.
    if mask_flag:
        ctx0 = jnp.cumsum(V_heads.astype(jnp.float32), axis=1).astype(jnp.bfloat16)
    else:
        ctx0 = jnp.broadcast_to(
            jnp.mean(V_heads.astype(jnp.float32), axis=1, keepdims=True),
            (BH, L_Q, D)).astype(jnp.bfloat16)

    idx_col = M_top[..., None].astype(jnp.int32)                     # (BH, u, 1)
    idx_row = M_top[:, None, :].astype(jnp.int32)                    # (BH, 1, u)

    # --- kernel 2: masked softmax attention + fused one-hot scatter (bf16 MXU
    # operands, f32 accumulation); ctx0 aliased to the bf16 output.
    vmem2 = _vmem_limit_bytes(
        spec_bytes=(G * u * D * 2 + G * D * L_K * 2 + G * L_V * D * 2
                    + G * u * 4 * 2 + 2 * G * L_Q * D * 2),
        body_bytes=(2 * G * u * L_K * 4 + G * L_Q * u * 2
                    + G * L_Q * D * 4 + 2 * G * u * D * 4))
    context = pl.pallas_call(
        functools.partial(_sparse_attn_kernel, scale=scale_val, mask_flag=mask_flag),
        out_shape=jax.ShapeDtypeStruct((BH, L_Q, D), jnp.bfloat16),
        grid=(BH // G,),
        in_specs=[
            pl.BlockSpec((G, u, D), lambda i: (i, 0, 0)),
            pl.BlockSpec((G, D, L_K), lambda i: (i, 0, 0)),
            pl.BlockSpec((G, L_V, D), lambda i: (i, 0, 0)),
            pl.BlockSpec((G, u, 1), lambda i: (i, 0, 0)),
            pl.BlockSpec((G, 1, u), lambda i: (i, 0, 0)),
            pl.BlockSpec((G, L_Q, D), lambda i: (i, 0, 0)),
        ],
        out_specs=pl.BlockSpec((G, L_Q, D), lambda i: (i, 0, 0)),
        input_output_aliases={5: 0},
        compiler_params=pltpu.CompilerParams(
            dimension_semantics=("parallel",),
            vmem_limit_bytes=vmem2),
    )(Q_red, Ktb, Vb, idx_col, idx_row, ctx0)

    context = context.reshape(B, H, L_Q, D).transpose(0, 2, 1, 3).astype(out_dtype)
    # output_attention=False -> attn is None; nn.Dropout is never applied in forward.
    if return_debug:
        return context, None, (M, M_top)
    return context, None


# ----------------------------------------------------------------------------
# Pure-JAX reference (mirrors the PyTorch semantics) for verification.
# `index_override` makes the check selection-tolerant: bf16 matmuls in the
# kernel path can flip near-tied top-k picks of the heuristic M measure.
# ----------------------------------------------------------------------------
def prob_attention_reference(queries, keys, values, index_sample, *,
                             mask_flag=True, factor=5, scale=None,
                             index_override=None):
    B, L_Q, H, D = queries.shape
    L_K = keys.shape[1]
    Q = jnp.transpose(queries, (0, 2, 1, 3))
    K = jnp.transpose(keys, (0, 2, 1, 3))
    V = jnp.transpose(values, (0, 2, 1, 3))
    u = min(factor * int(np.ceil(np.log(L_Q))), L_Q)

    if index_override is not None:
        M_top = jnp.asarray(index_override).reshape(B, H, u)
    else:
        K_sample = K[:, :, index_sample, :]                          # (B,H,L_Q,S,D)
        QKs = jnp.einsum('bhqd,bhqsd->bhqs', Q, K_sample)
        M = QKs.max(-1) - QKs.sum(-1) / L_K
        _, M_top = jax.lax.top_k(M, u)                               # (B,H,u)

    Q_red = jnp.take_along_axis(Q, M_top[..., None], axis=2)
    scores = jnp.einsum('bhud,bhkd->bhuk', Q_red, K)
    sc = scale if scale is not None else 1.0 / math.sqrt(D)
    scores = scores * sc

    if mask_flag:
        context = jnp.cumsum(V, axis=2)
        kpos = jnp.arange(L_K)[None, None, None, :]
        scores = jnp.where(kpos > M_top[..., None], -jnp.inf, scores)
    else:
        context = jnp.broadcast_to(V.mean(axis=2, keepdims=True), (B, H, L_Q, D))

    attn = jax.nn.softmax(scores, axis=-1)
    upd = jnp.einsum('bhuk,bhkd->bhud', attn, V)
    b_idx = jnp.arange(B)[:, None, None]
    h_idx = jnp.arange(H)[None, :, None]
    context = context.at[b_idx, h_idx, M_top, :].set(upd)
    return context.transpose(0, 2, 1, 3)


if __name__ == "__main__":
    key = jax.random.PRNGKey(0)
    kq, kk, kv, ksamp = jax.random.split(key, 4)

    B, L, H, D = 2, 64, 4, 32          # L_Q = L_K = L_V (mask_flag needs L_Q == L_V)
    factor = 5

    queries = jax.random.normal(kq, (B, L, H, D), dtype=jnp.float32)
    keys_ = jax.random.normal(kk, (B, L, H, D), dtype=jnp.float32)
    values = jax.random.normal(kv, (B, L, H, D), dtype=jnp.float32)

    U_part = min(factor * int(np.ceil(np.log(L))), L)
    # torch.randint(L_K, (L_Q, sample_k)) equivalent, deterministic via PRNGKey(0)
    index_sample = jax.random.randint(ksamp, (L, U_part), 0, L, dtype=jnp.int32)

    fwd = jax.jit(functools.partial(prob_attention, mask_flag=True, factor=factor,
                                    scale=None, return_debug=True))
    ctx, attn, (M_k, M_top_k) = fwd(queries, keys_, values, None,
                                    index_sample=index_sample)
    ctx = jax.block_until_ready(ctx)
    assert attn is None                 # output_attention=False

    # --- check kernel 1's sparsity measure against an XLA reference that uses
    # the same bf16-quantized Q/K (the kernel's matmuls are bf16 by design).
    Qq = queries.astype(jnp.bfloat16).astype(jnp.float32)
    Kq = keys_.astype(jnp.bfloat16).astype(jnp.float32)
    Qh = jnp.transpose(Qq, (0, 2, 1, 3)).reshape(B * H, L, D)
    Kh = jnp.transpose(Kq, (0, 2, 1, 3)).reshape(B * H, L, D)
    K_samp = Kh[:, index_sample, :]                                  # (BH,L,S,D)
    QKs = jnp.einsum('gqd,gqsd->gqs', Qh, K_samp)
    M_ref = QKs.max(-1) - QKs.sum(-1) / L
    np.testing.assert_allclose(np.asarray(M_k), np.asarray(M_ref),
                               rtol=1e-2, atol=1e-2)

    # --- selection-tolerant end-to-end check: evaluate the f32 reference at the
    # kernel's own top-k selection (bf16 can flip near-tied heuristic picks).
    ref = prob_attention_reference(queries, keys_, values, index_sample,
                                   mask_flag=True, factor=factor, scale=None,
                                   index_override=M_top_k)
    np.testing.assert_allclose(np.asarray(ctx), np.asarray(ref),
                               rtol=4e-2, atol=4e-2)

    print("KERNEL_OK")
</pallas_src>

<mosaic_0001>
module attributes {stable_mosaic.version = 11 : i64} {
  func.func private @main(%arg0: i32) attributes {dimension_semantics = [#tpu.dimension_semantics<core_parallel>], iteration_bounds = array<i64: 2>, tpu.core_type = #tpu.core_type<sc_scalar_subcore>, window_params = []} {
    return
  }
}

module attributes {stable_mosaic.version = 11 : i64} {
  func.func private @main(%arg0: i32) attributes {dimension_semantics = [#tpu.dimension_semantics<core_parallel>], iteration_bounds = array<i64: 2>, tpu.core_type = #tpu.core_type<sc_scalar_subcore>, window_params = []} {
    return
  }
}

module attributes {stable_mosaic.version = 11 : i64} {
  func.func @_masked_max_kernel(%arg0: i32, %arg1: i32, %arg2: memref<8x64x32xbf16, #tpu.memory_space<vmem>>, %arg3: memref<8x32x64xbf16, #tpu.memory_space<vmem>>, %arg4: memref<64x64xf32, #tpu.memory_space<vmem>>, %arg5: memref<8x64xf32, #tpu.memory_space<vmem>>) attributes {dimension_semantics = [#tpu.dimension_semantics<parallel>, #tpu.dimension_semantics<arbitrary>], iteration_bounds = array<i64: 1, 1>, scalar_prefetch = 0 : i64, scratch_operands = 0 : i64, tpu.core_type = #tpu.core_type<tc>, window_params = [{transform_indices = @transform_0, window_bounds = array<i64: 8, 64, 32>}, {transform_indices = @transform_1, window_bounds = array<i64: 8, 32, 64>}, {transform_indices = @transform_2, window_bounds = array<i64: 64, 64>}, {transform_indices = @transform_3, window_bounds = array<i64: 8, 64>}]} {
    %c0 = arith.constant 0 : index
    %c0_0 = arith.constant 0 : index
    %c0_1 = arith.constant 0 : index
    %0 = vector.load %arg2[%c0, %c0_0, %c0_1] : memref<8x64x32xbf16, #tpu.memory_space<vmem>>, vector<8x64x32xbf16>
    %c0_2 = arith.constant 0 : index
    %c0_3 = arith.constant 0 : index
    %c0_4 = arith.constant 0 : index
    %1 = vector.load %arg3[%c0_2, %c0_3, %c0_4] : memref<8x32x64xbf16, #tpu.memory_space<vmem>>, vector<8x32x64xbf16>
    "tpu.trace_start"() <{level = 10 : i32, message = "gqd,gdk->gqk"}> : () -> ()
    %cst = arith.constant dense<0.000000e+00> : vector<8x64x64xf32>
    %2 = tpu.matmul %0, %1, %cst {dimension_numbers = #tpu.dot_dimension_numbers<[2], [1], [1], [2], [0, 0, 0, 1, 1, 2], [0], [0]>} : vector<8x64x32xbf16>, vector<8x32x64xbf16>, vector<8x64x64xf32> -> vector<8x64x64xf32>
    "tpu.trace_stop"() : () -> ()
    %c0_5 = arith.constant 0 : index
    %c0_6 = arith.constant 0 : index
    %3 = vector.load %arg4[%c0_5, %c0_6] : memref<64x64xf32, #tpu.memory_space<vmem>>, vector<64x64xf32>
    %4 = vector.shape_cast %3 : vector<64x64xf32> to vector<1x64x64xf32>
    %5 = vector.broadcast %4 : vector<1x64x64xf32> to vector<8x64x64xf32>
    %6 = arith.addf %2, %5 : vector<8x64x64xf32>
    %cst_7 = arith.constant dense<0xFF800000> : vector<8x64xf32>
    %7 = vector.multi_reduction <maximumf>, %6, %cst_7 [2] : vector<8x64x64xf32> to vector<8x64xf32>
    %c0_i32 = arith.constant 0 : i32
    %8 = arith.cmpi eq, %arg1, %c0_i32 : i32
    %9 = arith.extui %8 : i1 to i32
    %c0_i32_8 = arith.constant 0 : i32
    %10 = arith.cmpi ne, %9, %c0_i32_8 : i32
    scf.if %10 {
      %c0_11 = arith.constant 0 : index
      %c0_12 = arith.constant 0 : index
      %14 = vector.load %arg5[%c0_11, %c0_12] : memref<8x64xf32, #tpu.memory_space<vmem>>, vector<8x64xf32>
      tpu.vector_store %arg5[%c0_11, %c0_12], %7 {strides = array<i32>} : memref<8x64xf32, #tpu.memory_space<vmem>>, vector<8x64xf32>,
    } else {
    }
    %c0_i32_9 = arith.constant 0 : i32
    %11 = arith.cmpi sgt, %arg1, %c0_i32_9 : i32
    %12 = arith.extui %11 : i1 to i32
    %c0_i32_10 = arith.constant 0 : i32
    %13 = arith.cmpi ne, %12, %c0_i32_10 : i32
    scf.if %13 {
      %c0_11 = arith.constant 0 : index
      %c0_12 = arith.constant 0 : index
      %14 = vector.load %arg5[%c0_11, %c0_12] : memref<8x64xf32, #tpu.memory_space<vmem>>, vector<8x64xf32>
      %15 = arith.maximumf %14, %7 : vector<8x64xf32>
      %c0_13 = arith.constant 0 : index
      %c0_14 = arith.constant 0 : index
      %16 = vector.load %arg5[%c0_13, %c0_14] : memref<8x64xf32, #tpu.memory_space<vmem>>, vector<8x64xf32>
      tpu.vector_store %arg5[%c0_13, %c0_14], %15 {strides = array<i32>} : memref<8x64xf32, #tpu.memory_space<vmem>>, vector<8x64xf32>,
    } else {
    }
    return
  }
  func.func @transform_0(%arg0: i32, %arg1: i32) -> (i32, i32, i32) {
    %c0_i32 = arith.constant 0 : i32
    %c0_i32_0 = arith.constant 0 : i32
    %c0_i32_1 = arith.constant 0 : i32
    return %arg0, %c0_i32, %c0_i32_0 : i32, i32, i32
  }
  func.func @transform_1(%arg0: i32, %arg1: i32) -> (i32, i32, i32) {
    %c0_i32 = arith.constant 0 : i32
    %c0_i32_0 = arith.constant 0 : i32
    return %arg0, %c0_i32, %arg1 : i32, i32, i32
  }
  func.func @transform_2(%arg0: i32, %arg1: i32) -> (i32, i32) {
    %c0_i32 = arith.constant 0 : i32
    %c0_i32_0 = arith.constant 0 : i32
    return %c0_i32, %arg1 : i32, i32
  }
  func.func @transform_3(%arg0: i32, %arg1: i32) -> (i32, i32) {
    %c0_i32 = arith.constant 0 : i32
    %c0_i32_0 = arith.constant 0 : i32
    return %arg0, %c0_i32 : i32, i32
  }
}

module attributes {stable_mosaic.version = 11 : i64} {
  func.func @_sparse_attn_kernel(%arg0: i32, %arg1: memref<8x25x32xbf16, #tpu.memory_space<vmem>>, %arg2: memref<8x32x64xbf16, #tpu.memory_space<vmem>>, %arg3: memref<8x64x32xbf16, #tpu.memory_space<vmem>>, %arg4: memref<8x25x1xi32, #tpu.memory_space<vmem>>, %arg5: memref<8x1x25xi32, #tpu.memory_space<vmem>>, %arg6: memref<8x64x32xbf16, #tpu.memory_space<vmem>>, %arg7: memref<8x64x32xbf16, #tpu.memory_space<vmem>>) attributes {dimension_semantics = [#tpu.dimension_semantics<parallel>], iteration_bounds = array<i64: 1>, scalar_prefetch = 0 : i64, scratch_operands = 0 : i64, tpu.core_type = #tpu.core_type<tc>, window_params = [{transform_indices = @transform_0, window_bounds = array<i64: 8, 25, 32>}, {transform_indices = @transform_1, window_bounds = array<i64: 8, 32, 64>}, {transform_indices = @transform_2, window_bounds = array<i64: 8, 64, 32>}, {transform_indices = @transform_3, window_bounds = array<i64: 8, 25, 1>}, {transform_indices = @transform_4, window_bounds = array<i64: 8, 1, 25>}, {transform_indices = @transform_5, window_bounds = array<i64: 8, 64, 32>}, {transform_indices = @transform_6, window_bounds = array<i64: 8, 64, 32>}]} {
    %c0 = arith.constant 0 : index
    %c0_0 = arith.constant 0 : index
    %c0_1 = arith.constant 0 : index
    %0 = vector.load %arg1[%c0, %c0_0, %c0_1] : memref<8x25x32xbf16, #tpu.memory_space<vmem>>, vector<8x25x32xbf16>
    %c0_2 = arith.constant 0 : index
    %c0_3 = arith.constant 0 : index
    %c0_4 = arith.constant 0 : index
    %1 = vector.load %arg2[%c0_2, %c0_3, %c0_4] : memref<8x32x64xbf16, #tpu.memory_space<vmem>>, vector<8x32x64xbf16>
    %c0_5 = arith.constant 0 : index
    %c0_6 = arith.constant 0 : index
    %c0_7 = arith.constant 0 : index
    %2 = vector.load %arg3[%c0_5, %c0_6, %c0_7] : memref<8x64x32xbf16, #tpu.memory_space<vmem>>, vector<8x64x32xbf16>
    %c0_8 = arith.constant 0 : index
    %c0_9 = arith.constant 0 : index
    %c0_10 = arith.constant 0 : index
    %3 = vector.load %arg4[%c0_8, %c0_9, %c0_10] : memref<8x25x1xi32, #tpu.memory_space<vmem>>, vector<8x25x1xi32>
    %c0_11 = arith.constant 0 : index
    %c0_12 = arith.constant 0 : index
    %c0_13 = arith.constant 0 : index
    %4 = vector.load %arg5[%c0_11, %c0_12, %c0_13] : memref<8x1x25xi32, #tpu.memory_space<vmem>>, vector<8x1x25xi32>
    "tpu.trace_start"() <{level = 10 : i32, message = "gud,gdk->guk"}> : () -> ()
    %cst = arith.constant dense<0.000000e+00> : vector<8x25x64xf32>
    %5 = tpu.matmul %0, %1, %cst {dimension_numbers = #tpu.dot_dimension_numbers<[2], [1], [1], [2], [0, 0, 0, 1, 1, 2], [0], [0]>} : vector<8x25x32xbf16>, vector<8x32x64xbf16>, vector<8x25x64xf32> -> vector<8x25x64xf32>
    "tpu.trace_stop"() : () -> ()
    %cst_14 = arith.constant 0.176776692 : f32
    %6 = vector.broadcast %cst_14 : f32 to vector<8x25x64xf32>
    %7 = arith.mulf %5, %6 : vector<8x25x64xf32>
    %8 = tpu.iota {dimensions = array<i32: 2>} : vector<8x25x64xi32>
    %9 = vector.broadcast %3 : vector<8x25x1xi32> to vector<8x25x64xi32>
    %10 = arith.cmpi sgt, %8, %9 : vector<8x25x64xi32>
    %cst_15 = arith.constant 0xFF800000 : f32
    %11 = vector.broadcast %cst_15 : f32 to vector<8x25x64xf32>
    %12 = arith.select %10, %11, %7 : vector<8x25x64xi1>, vector<8x25x64xf32>
    %cst_16 = arith.constant dense<0xFF800000> : vector<8x25xf32>
    %13 = vector.multi_reduction <maximumf>, %12, %cst_16 [2] : vector<8x25x64xf32> to vector<8x25xf32>
    %14 = vector.shape_cast %13 : vector<8x25xf32> to vector<8x25x1xf32>
    %15 = vector.broadcast %14 : vector<8x25x1xf32> to vector<8x25x64xf32>
    %16 = arith.subf %12, %15 : vector<8x25x64xf32>
    %17 = math.exp %16 : vector<8x25x64xf32>
    %cst_17 = arith.constant dense<0.000000e+00> : vector<8x25xf32>
    %18 = vector.multi_reduction <add>, %17, %cst_17 [2] : vector<8x25x64xf32> to vector<8x25xf32>
    %19 = vector.shape_cast %18 : vector<8x25xf32> to vector<8x25x1xf32>
    %20 = tpu.reciprocal %19 {approx = true} : vector<8x25x1xf32> -> vector<8x25x1xf32>
    %21 = vector.broadcast %20 : vector<8x25x1xf32> to vector<8x25x64xf32>
    %22 = arith.mulf %17, %21 : vector<8x25x64xf32>
    %23 = arith.truncf %22 : vector<8x25x64xf32> to vector<8x25x64xbf16>
    "tpu.trace_start"() <{level = 10 : i32, message = "guk,gkd->gud"}> : () -> ()
    %cst_18 = arith.constant dense<0.000000e+00> : vector<8x25x32xf32>
    %24 = tpu.matmul %23, %2, %cst_18 {dimension_numbers = #tpu.dot_dimension_numbers<[2], [1], [1], [2], [0, 0, 0, 1, 1, 2], [0], [0]>} : vector<8x25x64xbf16>, vector<8x64x32xbf16>, vector<8x25x32xf32> -> vector<8x25x32xf32>
    "tpu.trace_stop"() : () -> ()
    %25 = tpu.iota {dimensions = array<i32: 1>} : vector<8x64x25xi32>
    %26 = vector.broadcast %4 : vector<8x1x25xi32> to vector<8x64x25xi32>
    %27 = arith.cmpi eq, %25, %26 : vector<8x64x25xi32>
    %28 = arith.extui %27 : vector<8x64x25xi1> to vector<8x64x25xi32>
    %29 = arith.sitofp %28 : vector<8x64x25xi32> to vector<8x64x25xf32>
    %cst_19 = arith.constant dense<0.000000e+00> : vector<8x64xf32>
    %30 = vector.multi_reduction <add>, %29, %cst_19 [2] : vector<8x64x25xf32> to vector<8x64xf32>
    %31 = vector.shape_cast %30 : vector<8x64xf32> to vector<8x64x1xf32>
    %32 = arith.extui %27 : vector<8x64x25xi1> to vector<8x64x25xi32>
    %33 = arith.sitofp %32 : vector<8x64x25xi32> to vector<8x64x25xf32>
    %34 = arith.truncf %33 : vector<8x64x25xf32> to vector<8x64x25xbf16>
    %35 = arith.truncf %24 : vector<8x25x32xf32> to vector<8x25x32xbf16>
    "tpu.trace_start"() <{level = 10 : i32, message = "glu,gud->gld"}> : () -> ()
    %cst_20 = arith.constant dense<0.000000e+00> : vector<8x64x32xf32>
    %36 = tpu.matmul %34, %35, %cst_20 {dimension_numbers = #tpu.dot_dimension_numbers<[2], [1], [1], [2], [0, 0, 0, 1, 1, 2], [0], [0]>} : vector<8x64x25xbf16>, vector<8x25x32xbf16>, vector<8x64x32xf32> -> vector<8x64x32xf32>
    "tpu.trace_stop"() : () -> ()
    %c0_21 = arith.constant 0 : index
    %c0_22 = arith.constant 0 : index
    %c0_23 = arith.constant 0 : index
    %37 = vector.load %arg6[%c0_21, %c0_22, %c0_23] : memref<8x64x32xbf16, #tpu.memory_space<vmem>>, vector<8x64x32xbf16>
    %38 = arith.extf %37 : vector<8x64x32xbf16> to vector<8x64x32xf32>
    %cst_24 = arith.constant 1.000000e+00 : f32
    %39 = vector.broadcast %cst_24 : f32 to vector<8x64x1xf32>
    %40 = arith.subf %39, %31 : vector<8x64x1xf32>
    %41 = vector.broadcast %40 : vector<8x64x1xf32> to vector<8x64x32xf32>
    %42 = arith.mulf %38, %41 : vector<8x64x32xf32>
    %43 = arith.addf %42, %36 : vector<8x64x32xf32>
    %44 = arith.truncf %43 : vector<8x64x32xf32> to vector<8x64x32xbf16>
    %c0_25 = arith.constant 0 : index
    %c0_26 = arith.constant 0 : index
    %c0_27 = arith.constant 0 : index
    %45 = vector.load %arg7[%c0_25, %c0_26, %c0_27] : memref<8x64x32xbf16, #tpu.memory_space<vmem>>, vector<8x64x32xbf16>
    tpu.vector_store %arg7[%c0_25, %c0_26, %c0_27], %44 {strides = array<i32>} : memref<8x64x32xbf16, #tpu.memory_space<vmem>>, vector<8x64x32xbf16>,
    return
  }
  func.func @transform_0(%arg0: i32) -> (i32, i32, i32) {
    %c0_i32 = arith.constant 0 : i32
    %c0_i32_0 = arith.constant 0 : i32
    %c0_i32_1 = arith.constant 0 : i32
    return %arg0, %c0_i32, %c0_i32_0 : i32, i32, i32
  }
  func.func @transform_1(%arg0: i32) -> (i32, i32, i32) {
    %c0_i32 = arith.constant 0 : i32
    %c0_i32_0 = arith.constant 0 : i32
    %c0_i32_1 = arith.constant 0 : i32
    return %arg0, %c0_i32, %c0_i32_0 : i32, i32, i32
  }
  func.func @transform_2(%arg0: i32) -> (i32, i32, i32) {
    %c0_i32 = arith.constant 0 : i32
    %c0_i32_0 = arith.constant 0 : i32
    %c0_i32_1 = arith.constant 0 : i32
    return %arg0, %c0_i32, %c0_i32_0 : i32, i32, i32
  }
  func.func @transform_3(%arg0: i32) -> (i32, i32, i32) {
    %c0_i32 = arith.constant 0 : i32
    %c0_i32_0 = arith.constant 0 : i32
    %c0_i32_1 = arith.constant 0 : i32
    return %arg0, %c0_i32, %c0_i32_0 : i32, i32, i32
  }
  func.func @transform_4(%arg0: i32) -> (i32, i32, i32) {
    %c0_i32 = arith.constant 0 : i32
    %c0_i32_0 = arith.constant 0 : i32
    %c0_i32_1 = arith.constant 0 : i32
    return %arg0, %c0_i32, %c0_i32_0 : i32, i32, i32
  }
  func.func @transform_5(%arg0: i32) -> (i32, i32, i32) {
    %c0_i32 = arith.constant 0 : i32
    %c0_i32_0 = arith.constant 0 : i32
    %c0_i32_1 = arith.constant 0 : i32
    return %arg0, %c0_i32, %c0_i32_0 : i32, i32, i32
  }
  func.func @transform_6(%arg0: i32) -> (i32, i32, i32) {
    %c0_i32 = arith.constant 0 : i32
    %c0_i32_0 = arith.constant 0 : i32
    %c0_i32_1 = arith.constant 0 : i32
    return %arg0, %c0_i32, %c0_i32_0 : i32, i32, i32
  }
}

</mosaic_0001>

<llo_original>
// kernel: prob_attention.2
$region0: #{prob_attention.2}
  #allocation0 [shape = 'u32[]', space=smem, size = 0x4, offset = 0x4, fixed_abs, tag = 'smem constant byte address 0x4 - core index']
  #allocation1 [shape = 'u32[144,128]{1,0:T(1,128)}', space=vmem, size = 0x12000, scoped, tag = 'internal scratch']
  %s0 = inlined_call_operand.vmem [shape: bf16[8,64,32], index: 0, kind: input, shape index: {}]
  %s1 = inlined_call_operand.vmem [shape: bf16[8,32,64], index: 1, kind: input, shape index: {}]
  %s2 = inlined_call_operand.vmem [shape: f32[64,64], index: 2, kind: input, shape index: {}]
  %s3 = inlined_call_operand.vmem [shape: f32[8,64], index: 3, kind: output, shape index: {}]
  %s4 = sld [smem:[#allocation0]]
  $region30: #{prob_attention.2} parent=0
    _
  %s6 = ssub.s32 1, %s4
  %s7 = scalar_select 0, %s6, %s4
  // Predicated region
  $region2: #{prob_attention.2} parent=0 // pred_check
    _
  $region3: #{prob_attention.2} parent=0 // pred_check_branch
    %9 = sbr.rel (0) target = $region5
  $region4: #{prob_attention.2} parent=0 // pred_region
    _
  $region5: #{prob_attention.2} parent=0 // pred_fallthru
    _
  // Predicated region
  $region6: #{prob_attention.2} parent=0 // pred_check
    _
  $region7: #{prob_attention.2} parent=0 // pred_check_branch
    %11 = sbr.rel (0) target = $region9
  $region8: #{prob_attention.2} parent=0 // pred_region
    _
  $region9: #{prob_attention.2} parent=0 // pred_fallthru
    _
  // Predicated region
  $region10: #{prob_attention.2} parent=0 // pred_check
    _
  $region11: #{prob_attention.2} parent=0 // pred_check_branch
    %13 = sbr.rel (0) target = $region13
  $region12: #{prob_attention.2} parent=0 // pred_region
    _
  $region13: #{prob_attention.2} parent=0 // pred_fallthru
    _
  %v15 = vld [vmem:[%s0] sm:$0xf]
  %v16 = vld [vmem:[%s0 + $0x4] sm:$0xf]
  %v17 = vld [vmem:[%s0 + $0x8] sm:$0xf]
  %v18 = vld [vmem:[%s0 + $0xc] sm:$0xf]
  %v19 = vld [vmem:[%s0 + $0x10] sm:$0xf]
  %v20 = vld [vmem:[%s0 + $0x14] sm:$0xf]
  %v21 = vld [vmem:[%s0 + $0x18] sm:$0xf]
  %v22 = vld [vmem:[%s0 + $0x1c] sm:$0xf]
  %v23 = vld [vmem:[%s0 + $0x20] sm:$0xf]
  %v24 = vld [vmem:[%s0 + $0x24] sm:$0xf]
  %v25 = vld [vmem:[%s0 + $0x28] sm:$0xf]
  %v26 = vld [vmem:[%s0 + $0x2c] sm:$0xf]
  %v27 = vld [vmem:[%s0 + $0x30] sm:$0xf]
  %v28 = vld [vmem:[%s0 + $0x34] sm:$0xf]
  %v29 = vld [vmem:[%s0 + $0x38] sm:$0xf]
  %v30 = vld [vmem:[%s0 + $0x3c] sm:$0xf]
  %v31 = vld [vmem:[%s0 + $0x40] sm:$0xf]
  %v32 = vld [vmem:[%s0 + $0x44] sm:$0xf]
  %v33 = vld [vmem:[%s0 + $0x48] sm:$0xf]
  %v34 = vld [vmem:[%s0 + $0x4c] sm:$0xf]
  %v35 = vld [vmem:[%s0 + $0x50] sm:$0xf]
  %v36 = vld [vmem:[%s0 + $0x54] sm:$0xf]
  %v37 = vld [vmem:[%s0 + $0x58] sm:$0xf]
  %v38 = vld [vmem:[%s0 + $0x5c] sm:$0xf]
  %v39 = vld [vmem:[%s0 + $0x60] sm:$0xf]
  %v40 = vld [vmem:[%s0 + $0x64] sm:$0xf]
  %v41 = vld [vmem:[%s0 + $0x68] sm:$0xf]
  %v42 = vld [vmem:[%s0 + $0x6c] sm:$0xf]
  %v43 = vld [vmem:[%s0 + $0x70] sm:$0xf]
  %v44 = vld [vmem:[%s0 + $0x74] sm:$0xf]
  %v45 = vld [vmem:[%s0 + $0x78] sm:$0xf]
  %v46 = vld [vmem:[%s0 + $0x7c] sm:$0xf]
  %v47 = vld [vmem:[%s0 + $0x80] sm:$0xf]
  %v48 = vld [vmem:[%s0 + $0x84] sm:$0xf]
  %v49 = vld [vmem:[%s0 + $0x88] sm:$0xf]
  %v50 = vld [vmem:[%s0 + $0x8c] sm:$0xf]
  %v51 = vld [vmem:[%s0 + $0x90] sm:$0xf]
  %v52 = vld [vmem:[%s0 + $0x94] sm:$0xf]
  %v53 = vld [vmem:[%s0 + $0x98] sm:$0xf]
  %v54 = vld [vmem:[%s0 + $0x9c] sm:$0xf]
  %v55 = vld [vmem:[%s0 + $0xa0] sm:$0xf]
  %v56 = vld [vmem:[%s0 + $0xa4] sm:$0xf]
  %v57 = vld [vmem:[%s0 + $0xa8] sm:$0xf]
  %v58 = vld [vmem:[%s0 + $0xac] sm:$0xf]
  %v59 = vld [vmem:[%s0 + $0xb0] sm:$0xf]
  %v60 = vld [vmem:[%s0 + $0xb4] sm:$0xf]
  %v61 = vld [vmem:[%s0 + $0xb8] sm:$0xf]
  %v62 = vld [vmem:[%s0 + $0xbc] sm:$0xf]
  %v63 = vld [vmem:[%s0 + $0xc0] sm:$0xf]
  %v64 = vld [vmem:[%s0 + $0xc4] sm:$0xf]
  %v65 = vld [vmem:[%s0 + $0xc8] sm:$0xf]
  %v66 = vld [vmem:[%s0 + $0xcc] sm:$0xf]
  %v67 = vld [vmem:[%s0 + $0xd0] sm:$0xf]
  %v68 = vld [vmem:[%s0 + $0xd4] sm:$0xf]
  %v69 = vld [vmem:[%s0 + $0xd8] sm:$0xf]
  %v70 = vld [vmem:[%s0 + $0xdc] sm:$0xf]
  %v71 = vld [vmem:[%s0 + $0xe0] sm:$0xf]
  %v72 = vld [vmem:[%s0 + $0xe4] sm:$0xf]
  %v73 = vld [vmem:[%s0 + $0xe8] sm:$0xf]
  %v74 = vld [vmem:[%s0 + $0xec] sm:$0xf]
  %v75 = vld [vmem:[%s0 + $0xf0] sm:$0xf]
  %v76 = vld [vmem:[%s0 + $0xf4] sm:$0xf]
  %v77 = vld [vmem:[%s0 + $0xf8] sm:$0xf]
  %v78 = vld [vmem:[%s0 + $0xfc] sm:$0xf]
  %v79 = vld [vmem:[%s1] sm:$0xf]
  %v80 = vld [vmem:[%s1 + $0x4] sm:$0xf]
  %v81 = vld [vmem:[%s1 + $0x8] sm:$0xf]
  %v82 = vld [vmem:[%s1 + $0xc] sm:$0xf]
  %v83 = vld [vmem:[%s1 + $0x10] sm:$0xf]
  %v84 = vld [vmem:[%s1 + $0x14] sm:$0xf]
  %v85 = vld [vmem:[%s1 + $0x18] sm:$0xf]
  %v86 = vld [vmem:[%s1 + $0x1c] sm:$0xf]
  %v87 = vld [vmem:[%s1 + $0x20] sm:$0xf]
  %v88 = vld [vmem:[%s1 + $0x24] sm:$0xf]
  %v89 = vld [vmem:[%s1 + $0x28] sm:$0xf]
  %v90 = vld [vmem:[%s1 + $0x2c] sm:$0xf]
  %v91 = vld [vmem:[%s1 + $0x30] sm:$0xf]
  %v92 = vld [vmem:[%s1 + $0x34] sm:$0xf]
  %v93 = vld [vmem:[%s1 + $0x38] sm:$0xf]
  %v94 = vld [vmem:[%s1 + $0x3c] sm:$0xf]
  %v95 = vld [vmem:[%s1 + $0x40] sm:$0xf]
  %v96 = vld [vmem:[%s1 + $0x44] sm:$0xf]
  %v97 = vld [vmem:[%s1 + $0x48] sm:$0xf]
  %v98 = vld [vmem:[%s1 + $0x4c] sm:$0xf]
  %v99 = vld [vmem:[%s1 + $0x50] sm:$0xf]
  %v100 = vld [vmem:[%s1 + $0x54] sm:$0xf]
  %v101 = vld [vmem:[%s1 + $0x58] sm:$0xf]
  %v102 = vld [vmem:[%s1 + $0x5c] sm:$0xf]
  %v103 = vld [vmem:[%s1 + $0x60] sm:$0xf]
  %v104 = vld [vmem:[%s1 + $0x64] sm:$0xf]
  %v105 = vld [vmem:[%s1 + $0x68] sm:$0xf]
  %v106 = vld [vmem:[%s1 + $0x6c] sm:$0xf]
  %v107 = vld [vmem:[%s1 + $0x70] sm:$0xf]
  %v108 = vld [vmem:[%s1 + $0x74] sm:$0xf]
  %v109 = vld [vmem:[%s1 + $0x78] sm:$0xf]
  %v110 = vld [vmem:[%s1 + $0x7c] sm:$0xf]
  %v111 = vld [vmem:[%s2] sm:$0xff]
  %v112 = vld [vmem:[%s2 + $0x8] sm:$0xff]
  %v113 = vld [vmem:[%s2 + $0x10] sm:$0xff]
  %v114 = vld [vmem:[%s2 + $0x18] sm:$0xff]
  %v115 = vld [vmem:[%s2 + $0x20] sm:$0xff]
  %v116 = vld [vmem:[%s2 + $0x28] sm:$0xff]
  %v117 = vld [vmem:[%s2 + $0x30] sm:$0xff]
  %v118 = vld [vmem:[%s2 + $0x38] sm:$0xff]
  %v127 = vunpack.c.l.b16 %v15
  %v128 = vunpack.c.l.b16 %v16
  %v129 = vunpack.c.l.b16 %v17
  %v130 = vunpack.c.l.b16 %v18
  %v131 = vunpack.c.l.b16 %v19
  %v132 = vunpack.c.l.b16 %v20
  %v133 = vunpack.c.l.b16 %v21
  %v134 = vunpack.c.l.b16 %v22
  %v135 = vpack.c.b16 %v128, %v127
  %v136 = vpack.c.b16 %v130, %v129
  %v137 = vpack.c.b16 %v132, %v131
  %v138 = vpack.c.b16 %v134, %v133
  %v143 = vunpack.c.l.b16 %v79
  %v144 = vunpack.c.l.b16 %v80
  %v145 = vunpack.c.l.b16 %v81
  %v146 = vunpack.c.l.b16 %v82
  %v147 = vpack.c.b16 %v144, %v143
  %v148 = vpack.c.b16 %v146, %v145
  %vm151 = vcmask 261120
  %v153 = vsel %vm151, %v135, 0
  %v156 = vsel %vm151, %v136, 0
  %v159 = vsel %vm151, %v137, 0
  %v162 = vsel %vm151, %v138, 0
  %164 = vmatprep.subr.bf16.mxu0 0
  %165 = vmatpush1.bf16.msra.mxu0 0
  %166 = vmatprep.subr.bf16.mxu0 0
  %167 = vmatpush1.bf16.msra.mxu0 0
  %168 = vmatprep.subr.bf16.mxu0 0
  %169 = vmatpush1.bf16.msra.mxu0 0
  %170 = vmatprep.subr.bf16.mxu0 0
  %171 = vmatpush1.bf16.msra.mxu0 0
  %172 = vmatprep.subr.bf16.mxu0 0
  %173 = vmatpush1.bf16.msra.mxu0 0
  %174 = vmatprep.subr.bf16.mxu0 0
  %175 = vmatpush1.bf16.msra.mxu0 0
  %176 = vmatprep.subr.bf16.mxu0 0
  %177 = vmatpush1.bf16.msra.mxu0 %v148
  %178 = vmatprep.subr.bf16.mxu0 0
  %179 = vmatpush1.bf16.msra.mxu0 %v147
  %180 = vmatprep.subr.bf16.mxu0 0
  %181 = vmatpush2.bf16.msra.mxu0 0
  %182 = vmatprep.subr.bf16.mxu0 0
  %183 = vmatpush2.bf16.msra.mxu0 0
  %184 = vmatprep.subr.bf16.mxu0 0
  %185 = vmatpush2.bf16.msra.mxu0 0
  %186 = vmatprep.subr.bf16.mxu0 0
  %187 = vmatpush2.bf16.msra.mxu0 0
  %188 = vmatprep.subr.bf16.mxu0 0
  %189 = vmatpush2.bf16.msra.mxu0 0
  %190 = vmatprep.subr.bf16.mxu0 0
  %191 = vmatpush2.bf16.msra.mxu0 0
  %192 = vmatprep.subr.bf16.mxu0 0
  %193 = vmatpush2.bf16.msra.mxu0 0
  %194 = vmatprep.subr.bf16.mxu0 0
  %195 = vmatpush2.bf16.msra.mxu0 0
  %196 = vmatprep.mubr.bf16.mxu0 0
  %197 = vmatmul.mubr.bf16.gmra.mxu0 %v153
  %v198 = vpop.f32.mrf.mxu0
  %v199 = vadd.f32 %v111, %v198
  %v200 = vpop.f32.mrf.mxu0
  %v201 = vpop.f32.mrf.mxu0
  %v202 = vadd.f32 %v112, %v201
  %v203 = vpop.f32.mrf.mxu0
  %204 = vmatprep.mubr.bf16.mxu0 0
  %205 = vmatmul.mubr.bf16.gmra.mxu0 %v156
  %v206 = vpop.f32.mrf.mxu0
  %v207 = vadd.f32 %v113, %v206
  %v208 = vpop.f32.mrf.mxu0
  %v209 = vpop.f32.mrf.mxu0
  %v210 = vadd.f32 %v114, %v209
  %v211 = vpop.f32.mrf.mxu0
  %212 = vmatprep.mubr.bf16.mxu0 0
  %213 = vmatmul.mubr.bf16.gmra.mxu0 %v159
  %v214 = vpop.f32.mrf.mxu0
  %v215 = vadd.f32 %v115, %v214
  %v216 = vpop.f32.mrf.mxu0
  %v217 = vpop.f32.mrf.mxu0
  %v218 = vadd.f32 %v116, %v217
  %v219 = vpop.f32.mrf.mxu0
  %220 = vmatprep.mubr.bf16.mxu0 0
  %221 = vmatmul.mubr.bf16.gmra.mxu0 %v162
  %v222 = vpop.f32.mrf.mxu0
  %v223 = vadd.f32 %v117, %v222
  %v224 = vpop.f32.mrf.mxu0
  %v225 = vpop.f32.mrf.mxu0
  %v226 = vadd.f32 %v118, %v225
  %v227 = vpop.f32.mrf.mxu0
  %228 = vdwg.mxu0
  %v237 = vunpack.c.l.b16 %v23
  %v238 = vunpack.c.l.b16 %v24
  %v239 = vunpack.c.l.b16 %v25
  %v240 = vunpack.c.l.b16 %v26
  %v241 = vunpack.c.l.b16 %v27
  %v242 = vunpack.c.l.b16 %v28
  %v243 = vunpack.c.l.b16 %v29
  %v244 = vunpack.c.l.b16 %v30
  %v245 = vpack.c.b16 %v238, %v237
  %v246 = vpack.c.b16 %v240, %v239
  %v247 = vpack.c.b16 %v242, %v241
  %v248 = vpack.c.b16 %v244, %v243
  %v253 = vunpack.c.l.b16 %v83
  %v254 = vunpack.c.l.b16 %v84
  %v255 = vunpack.c.l.b16 %v85
  %v256 = vunpack.c.l.b16 %v86
  %v257 = vpack.c.b16 %v254, %v253
  %v258 = vpack.c.b16 %v256, %v255
  %v262 = vsel %vm151, %v245, 0
  %v265 = vsel %vm151, %v246, 0
  %v268 = vsel %vm151, %v247, 0
  %v271 = vsel %vm151, %v248, 0
  %273 = vmatprep.subr.bf16.mxu0 0
  %274 = vmatpush1.bf16.msra.mxu0 0
  %275 = vmatprep.subr.bf16.mxu0 0
  %276 = vmatpush1.bf16.msra.mxu0 0
  %277 = vmatprep.subr.bf16.mxu0 0
  %278 = vmatpush1.bf16.msra.mxu0 0
  %279 = vmatprep.subr.bf16.mxu0 0
  %280 = vmatpush1.bf16.msra.mxu0 0
  %281 = vmatprep.subr.bf16.mxu0 0
  %282 = vmatpush1.bf16.msra.mxu0 0
  %283 = vmatprep.subr.bf16.mxu0 0
  %284 = vmatpush1.bf16.msra.mxu0 0
  %285 = vmatprep.subr.bf16.mxu0 0
  %286 = vmatpush1.bf16.msra.mxu0 %v258
  %287 = vmatprep.subr.bf16.mxu0 0
  %288 = vmatpush1.bf16.msra.mxu0 %v257
  %289 = vmatprep.subr.bf16.mxu0 0
  %290 = vmatpush2.bf16.msra.mxu0 0
  %291 = vmatprep.subr.bf16.mxu0 0
  %292 = vmatpush2.bf16.msra.mxu0 0
  %293 = vmatprep.subr.bf16.mxu0 0
  %294 = vmatpush2.bf16.msra.mxu0 0
  %295 = vmatprep.subr.bf16.mxu0 0
  %296 = vmatpush2.bf16.msra.mxu0 0
  %297 = vmatprep.subr.bf16.mxu0 0
  %298 = vmatpush2.bf16.msra.mxu0 0
  %299 = vmatprep.subr.bf16.mxu0 0
  %300 = vmatpush2.bf16.msra.mxu0 0
  %301 = vmatprep.subr.bf16.mxu0 0
  %302 = vmatpush2.bf16.msra.mxu0 0
  %303 = vmatprep.subr.bf16.mxu0 0
  %304 = vmatpush2.bf16.msra.mxu0 0
  %305 = vmatprep.mubr.bf16.mxu0 0
  %306 = vmatmul.mubr.bf16.gmra.mxu0 %v262
  %v307 = vpop.f32.mrf.mxu0
  %v308 = vadd.f32 %v111, %v307
  %v309 = vpop.f32.mrf.mxu0
  %v310 = vpop.f32.mrf.mxu0
  %v311 = vadd.f32 %v112, %v310
  %v312 = vpop.f32.mrf.mxu0
  %313 = vmatprep.mubr.bf16.mxu0 0
  %314 = vmatmul.mubr.bf16.gmra.mxu0 %v265
  %v315 = vpop.f32.mrf.mxu0
  %v316 = vadd.f32 %v113, %v315
  %v317 = vpop.f32.mrf.mxu0
  %v318 = vpop.f32.mrf.mxu0
  %v319 = vadd.f32 %v114, %v318
  %v320 = vpop.f32.mrf.mxu0
  %321 = vmatprep.mubr.bf16.mxu0 0
  %322 = vmatmul.mubr.bf16.gmra.mxu0 %v268
  %v323 = vpop.f32.mrf.mxu0
  %v324 = vadd.f32 %v115, %v323
  %v325 = vpop.f32.mrf.mxu0
  %v326 = vpop.f32.mrf.mxu0
  %v327 = vadd.f32 %v116, %v326
  %v328 = vpop.f32.mrf.mxu0
  %329 = vmatprep.mubr.bf16.mxu0 0
  %330 = vmatmul.mubr.bf16.gmra.mxu0 %v271
  %v331 = vpop.f32.mrf.mxu0
  %v332 = vadd.f32 %v117, %v331
  %v333 = vpop.f32.mrf.mxu0
  %v334 = vpop.f32.mrf.mxu0
  %v335 = vadd.f32 %v118, %v334
  %v336 = vpop.f32.mrf.mxu0
  %337 = vdwg.mxu0
  %v346 = vunpack.c.l.b16 %v31
  %v347 = vunpack.c.l.b16 %v32
  %v348 = vunpack.c.l.b16 %v33
  %v349 = vunpack.c.l.b16 %v34
  %v350 = vunpack.c.l.b16 %v35
  %v351 = vunpack.c.l.b16 %v36
  %v352 = vunpack.c.l.b16 %v37
  %v353 = vunpack.c.l.b16 %v38
  %v354 = vpack.c.b16 %v347, %v346
  %v355 = vpack.c.b16 %v349, %v348
  %v356 = vpack.c.b16 %v351, %v350
  %v357 = vpack.c.b16 %v353, %v352
  %v362 = vunpack.c.l.b16 %v87
  %v363 = vunpack.c.l.b16 %v88
  %v364 = vunpack.c.l.b16 %v89
  %v365 = vunpack.c.l.b16 %v90
  %v366 = vpack.c.b16 %v363, %v362
  %v367 = vpack.c.b16 %v365, %v364
  %v371 = vsel %vm151, %v354, 0
  %v374 = vsel %vm151, %v355, 0
  %v377 = vsel %vm151, %v356, 0
  %v380 = vsel %vm151, %v357, 0
  %382 = vmatprep.subr.bf16.mxu0 0
  %383 = vmatpush1.bf16.msra.mxu0 0
  %384 = vmatprep.subr.bf16.mxu0 0
  %385 = vmatpush1.bf16.msra.mxu0 0
  %386 = vmatprep.subr.bf16.mxu0 0
  %387 = vmatpush1.bf16.msra.mxu0 0
  %388 = vmatprep.subr.bf16.mxu0 0
  %389 = vmatpush1.bf16.msra.mxu0 0
  %390 = vmatprep.subr.bf16.mxu0 0
  %391 = vmatpush1.bf16.msra.mxu0 0
  %392 = vmatprep.subr.bf16.mxu0 0
  %393 = vmatpush1.bf16.msra.mxu0 0
  %394 = vmatprep.subr.bf16.mxu0 0
  %395 = vmatpush1.bf16.msra.mxu0 %v367
  %396 = vmatprep.subr.bf16.mxu0 0
  %397 = vmatpush1.bf16.msra.mxu0 %v366
  %398 = vmatprep.subr.bf16.mxu0 0
  %399 = vmatpush2.bf16.msra.mxu0 0
  %400 = vmatprep.subr.bf16.mxu0 0
  %401 = vmatpush2.bf16.msra.mxu0 0
  %402 = vmatprep.subr.bf16.mxu0 0
  %403 = vmatpush2.bf16.msra.mxu0 0
  %404 = vmatprep.subr.bf16.mxu0 0
  %405 = vmatpush2.bf16.msra.mxu0 0
  %406 = vmatprep.subr.bf16.mxu0 0
  %407 = vmatpush2.bf16.msra.mxu0 0
  %408 = vmatprep.subr.bf16.mxu0 0
  %409 = vmatpush2.bf16.msra.mxu0 0
  %410 = vmatprep.subr.bf16.mxu0 0
  %411 = vmatpush2.bf16.msra.mxu0 0
  %412 = vmatprep.subr.bf16.mxu0 0
  %413 = vmatpush2.bf16.msra.mxu0 0
  %414 = vmatprep.mubr.bf16.mxu0 0
  %415 = vmatmul.mubr.bf16.gmra.mxu0 %v371
  %v416 = vpop.f32.mrf.mxu0
  %v417 = vadd.f32 %v111, %v416
  %v418 = vpop.f32.mrf.mxu0
  %v419 = vpop.f32.mrf.mxu0
  %v420 = vadd.f32 %v112, %v419
  %v421 = vpop.f32.mrf.mxu0
  %422 = vmatprep.mubr.bf16.mxu0 0
  %423 = vmatmul.mubr.bf16.gmra.mxu0 %v374
  %v424 = vpop.f32.mrf.mxu0
  %v425 = vadd.f32 %v113, %v424
  %v426 = vpop.f32.mrf.mxu0
  %v427 = vpop.f32.mrf.mxu0
  %v428 = vadd.f32 %v114, %v427
  %v429 = vpop.f32.mrf.mxu0
  %430 = vmatprep.mubr.bf16.mxu0 0
  %431 = vmatmul.mubr.bf16.gmra.mxu0 %v377
  %v432 = vpop.f32.mrf.mxu0
  %v433 = vadd.f32 %v115, %v432
  %v434 = vpop.f32.mrf.mxu0
  %v435 = vpop.f32.mrf.mxu0
  %v436 = vadd.f32 %v116, %v435
  %v437 = vpop.f32.mrf.mxu0
  %438 = vmatprep.mubr.bf16.mxu0 0
  %439 = vmatmul.mubr.bf16.gmra.mxu0 %v380
  %v440 = vpop.f32.mrf.mxu0
  %v441 = vadd.f32 %v117, %v440
  %v442 = vpop.f32.mrf.mxu0
  %v443 = vpop.f32.mrf.mxu0
  %v444 = vadd.f32 %v118, %v443
  %v445 = vpop.f32.mrf.mxu0
  %446 = vdwg.mxu0
  %v455 = vunpack.c.l.b16 %v39
  %v456 = vunpack.c.l.b16 %v40
  %v457 = vunpack.c.l.b16 %v41
  %v458 = vunpack.c.l.b16 %v42
  %v459 = vunpack.c.l.b16 %v43
  %v460 = vunpack.c.l.b16 %v44
  %v461 = vunpack.c.l.b16 %v45
  %v462 = vunpack.c.l.b16 %v46
  %v463 = vpack.c.b16 %v456, %v455
  %v464 = vpack.c.b16 %v458, %v457
  %v465 = vpack.c.b16 %v460, %v459
  %v466 = vpack.c.b16 %v462, %v461
  %v471 = vunpack.c.l.b16 %v91
  %v472 = vunpack.c.l.b16 %v92
  %v473 = vunpack.c.l.b16 %v93
  %v474 = vunpack.c.l.b16 %v94
  %v475 = vpack.c.b16 %v472, %v471
  %v476 = vpack.c.b16 %v474, %v473
  %v480 = vsel %vm151, %v463, 0
  %v483 = vsel %vm151, %v464, 0
  %v486 = vsel %vm151, %v465, 0
  %v489 = vsel %vm151, %v466, 0
  %491 = vmatprep.subr.bf16.mxu0 0
  %492 = vmatpush1.bf16.msra.mxu0 0
  %493 = vmatprep.subr.bf16.mxu0 0
  %494 = vmatpush1.bf16.msra.mxu0 0
  %495 = vmatprep.subr.bf16.mxu0 0
  %496 = vmatpush1.bf16.msra.mxu0 0
  %497 = vmatprep.subr.bf16.mxu0 0
  %498 = vmatpush1.bf16.msra.mxu0 0
  %499 = vmatprep.subr.bf16.mxu0 0
  %500 = vmatpush1.bf16.msra.mxu0 0
  %501 = vmatprep.subr.bf16.mxu0 0
  %502 = vmatpush1.bf16.msra.mxu0 0
  %503 = vmatprep.subr.bf16.mxu0 0
  %504 = vmatpush1.bf16.msra.mxu0 %v476
  %505 = vmatprep.subr.bf16.mxu0 0
  %506 = vmatpush1.bf16.msra.mxu0 %v475
  %507 = vmatprep.subr.bf16.mxu0 0
  %508 = vmatpush2.bf16.msra.mxu0 0
  %509 = vmatprep.subr.bf16.mxu0 0
  %510 = vmatpush2.bf16.msra.mxu0 0
  %511 = vmatprep.subr.bf16.mxu0 0
  %512 = vmatpush2.bf16.msra.mxu0 0
  %513 = vmatprep.subr.bf16.mxu0 0
  %514 = vmatpush2.bf16.msra.mxu0 0
  %515 = vmatprep.subr.bf16.mxu0 0
  %516 = vmatpush2.bf16.msra.mxu0 0
  %517 = vmatprep.subr.bf16.mxu0 0
  %518 = vmatpush2.bf16.msra.mxu0 0
  %519 = vmatprep.subr.bf16.mxu0 0
  %520 = vmatpush2.bf16.msra.mxu0 0
  %521 = vmatprep.subr.bf16.mxu0 0
  %522 = vmatpush2.bf16.msra.mxu0 0
  %523 = vmatprep.mubr.bf16.mxu0 0
  %524 = vmatmul.mubr.bf16.gmra.mxu0 %v480
  %v525 = vpop.f32.mrf.mxu0
  %v526 = vadd.f32 %v111, %v525
  %v527 = vpop.f32.mrf.mxu0
  %v528 = vpop.f32.mrf.mxu0
  %v529 = vadd.f32 %v112, %v528
  %v530 = vpop.f32.mrf.mxu0
  %531 = vmatprep.mubr.bf16.mxu0 0
  %532 = vmatmul.mubr.bf16.gmra.mxu0 %v483
  %v533 = vpop.f32.mrf.mxu0
  %v534 = vadd.f32 %v113, %v533
  %v535 = vpop.f32.mrf.mxu0
  %v536 = vpop.f32.mrf.mxu0
  %v537 = vadd.f32 %v114, %v536
  %v538 = vpop.f32.mrf.mxu0
  %539 = vmatprep.mubr.bf16.mxu0 0
  %540 = vmatmul.mubr.bf16.gmra.mxu0 %v486
  %v541 = vpop.f32.mrf.mxu0
  %v542 = vadd.f32 %v115, %v541
  %v543 = vpop.f32.mrf.mxu0
  %v544 = vpop.f32.mrf.mxu0
  %v545 = vadd.f32 %v116, %v544
  %v546 = vpop.f32.mrf.mxu0
  %547 = vmatprep.mubr.bf16.mxu0 0
  %548 = vmatmul.mubr.bf16.gmra.mxu0 %v489
  %v549 = vpop.f32.mrf.mxu0
  %v550 = vadd.f32 %v117, %v549
  %v551 = vpop.f32.mrf.mxu0
  %v552 = vpop.f32.mrf.mxu0
  %v553 = vadd.f32 %v118, %v552
  %v554 = vpop.f32.mrf.mxu0
  %555 = vdwg.mxu0
  %v564 = vunpack.c.l.b16 %v47
  %v565 = vunpack.c.l.b16 %v48
  %v566 = vunpack.c.l.b16 %v49
  %v567 = vunpack.c.l.b16 %v50
  %v568 = vunpack.c.l.b16 %v51
  %v569 = vunpack.c.l.b16 %v52
  %v570 = vunpack.c.l.b16 %v53
  %v571 = vunpack.c.l.b16 %v54
  %v572 = vpack.c.b16 %v565, %v564
  %v573 = vpack.c.b16 %v567, %v566
  %v574 = vpack.c.b16 %v569, %v568
  %v575 = vpack.c.b16 %v571, %v570
  %v580 = vunpack.c.l.b16 %v95
  %v581 = vunpack.c.l.b16 %v96
  %v582 = vunpack.c.l.b16 %v97
  %v583 = vunpack.c.l.b16 %v98
  %v584 = vpack.c.b16 %v581, %v580
  %v585 = vpack.c.b16 %v583, %v582
  %v589 = vsel %vm151, %v572, 0
  %v592 = vsel %vm151, %v573, 0
  %v595 = vsel %vm151, %v574, 0
  %v598 = vsel %vm151, %v575, 0
  %600 = vmatprep.subr.bf16.mxu0 0
  %601 = vmatpush1.bf16.msra.mxu0 0
  %602 = vmatprep.subr.bf16.mxu0 0
  %603 = vmatpush1.bf16.msra.mxu0 0
  %604 = vmatprep.subr.bf16.mxu0 0
  %605 = vmatpush1.bf16.msra.mxu0 0
  %606 = vmatprep.subr.bf16.mxu0 0
  %607 = vmatpush1.bf16.msra.mxu0 0
  %608 = vmatprep.subr.bf16.mxu0 0
  %609 = vmatpush1.bf16.msra.mxu0 0
  %610 = vmatprep.subr.bf16.mxu0 0
  %611 = vmatpush1.bf16.msra.mxu0 0
  %612 = vmatprep.subr.bf16.mxu0 0
  %613 = vmatpush1.bf16.msra.mxu0 %v585
  %614 = vmatprep.subr.bf16.mxu0 0
  %615 = vmatpush1.bf16.msra.mxu0 %v584
  %616 = vmatprep.subr.bf16.mxu0 0
  %617 = vmatpush2.bf16.msra.mxu0 0
  %618 = vmatprep.subr.bf16.mxu0 0
  %619 = vmatpush2.bf16.msra.mxu0 0
  %620 = vmatprep.subr.bf16.mxu0 0
  %621 = vmatpush2.bf16.msra.mxu0 0
  %622 = vmatprep.subr.bf16.mxu0 0
  %623 = vmatpush2.bf16.msra.mxu0 0
  %624 = vmatprep.subr.bf16.mxu0 0
  %625 = vmatpush2.bf16.msra.mxu0 0
  %626 = vmatprep.subr.bf16.mxu0 0
  %627 = vmatpush2.bf16.msra.mxu0 0
  %628 = vmatprep.subr.bf16.mxu0 0
  %629 = vmatpush2.bf16.msra.mxu0 0
  %630 = vmatprep.subr.bf16.mxu0 0
  %631 = vmatpush2.bf16.msra.mxu0 0
  %632 = vmatprep.mubr.bf16.mxu0 0
  %633 = vmatmul.mubr.bf16.gmra.mxu0 %v589
  %v634 = vpop.f32.mrf.mxu0
  %v635 = vadd.f32 %v111, %v634
  %v636 = vpop.f32.mrf.mxu0
  %v637 = vpop.f32.mrf.mxu0
  %v638 = vadd.f32 %v112, %v637
  %v639 = vpop.f32.mrf.mxu0
  %640 = vmatprep.mubr.bf16.mxu0 0
  %641 = vmatmul.mubr.bf16.gmra.mxu0 %v592
  %v642 = vpop.f32.mrf.mxu0
  %v643 = vadd.f32 %v113, %v642
  %v644 = vpop.f32.mrf.mxu0
  %v645 = vpop.f32.mrf.mxu0
  %v646 = vadd.f32 %v114, %v645
  %v647 = vpop.f32.mrf.mxu0
  %648 = vmatprep.mubr.bf16.mxu0 0
  %649 = vmatmul.mubr.bf16.gmra.mxu0 %v595
  %v650 = vpop.f32.mrf.mxu0
  %v651 = vadd.f32 %v115, %v650
  %v652 = vpop.f32.mrf.mxu0
  %v653 = vpop.f32.mrf.mxu0
  %v654 = vadd.f32 %v116, %v653
  %v655 = vpop.f32.mrf.mxu0
  %656 = vmatprep.mubr.bf16.mxu0 0
  %657 = vmatmul.mubr.bf16.gmra.mxu0 %v598
  %v658 = vpop.f32.mrf.mxu0
  %v659 = vadd.f32 %v117, %v658
  %v660 = vpop.f32.mrf.mxu0
  %v661 = vpop.f32.mrf.mxu0
  %v662 = vadd.f32 %v118, %v661
  %v663 = vpop.f32.mrf.mxu0
  %664 = vdwg.mxu0
  %v673 = vunpack.c.l.b16 %v55
  %v674 = vunpack.c.l.b16 %v56
  %v675 = vunpack.c.l.b16 %v57
  %v676 = vunpack.c.l.b16 %v58
  %v677 = vunpack.c.l.b16 %v59
  %v678 = vunpack.c.l.b16 %v60
  %v679 = vunpack.c.l.b16 %v61
  %v680 = vunpack.c.l.b16 %v62
  %v681 = vpack.c.b16 %v674, %v673
  %v682 = vpack.c.b16 %v676, %v675
  %v683 = vpack.c.b16 %v678, %v677
  %v684 = vpack.c.b16 %v680, %v679
  %v689 = vunpack.c.l.b16 %v99
  %v690 = vunpack.c.l.b16 %v100
  %v691 = vunpack.c.l.b16 %v101
  %v692 = vunpack.c.l.b16 %v102
  %v693 = vpack.c.b16 %v690, %v689
  %v694 = vpack.c.b16 %v692, %v691
  %v698 = vsel %vm151, %v681, 0
  %v701 = vsel %vm151, %v682, 0
  %v704 = vsel %vm151, %v683, 0
  %v707 = vsel %vm151, %v684, 0
  %709 = vmatprep.subr.bf16.mxu0 0
  %710 = vmatpush1.bf16.msra.mxu0 0
  %711 = vmatprep.subr.bf16.mxu0 0
  %712 = vmatpush1.bf16.msra.mxu0 0
  %713 = vmatprep.subr.bf16.mxu0 0
  %714 = vmatpush1.bf16.msra.mxu0 0
  %715 = vmatprep.subr.bf16.mxu0 0
  %716 = vmatpush1.bf16.msra.mxu0 0
  %717 = vmatprep.subr.bf16.mxu0 0
  %718 = vmatpush1.bf16.msra.mxu0 0
  %719 = vmatprep.subr.bf16.mxu0 0
  %720 = vmatpush1.bf16.msra.mxu0 0
  %721 = vmatprep.subr.bf16.mxu0 0
  %722 = vmatpush1.bf16.msra.mxu0 %v694
  %723 = vmatprep.subr.bf16.mxu0 0
  %724 = vmatpush1.bf16.msra.mxu0 %v693
  %725 = vmatprep.subr.bf16.mxu0 0
  %726 = vmatpush2.bf16.msra.mxu0 0
  %727 = vmatprep.subr.bf16.mxu0 0
  %728 = vmatpush2.bf16.msra.mxu0 0
  %729 = vmatprep.subr.bf16.mxu0 0
  %730 = vmatpush2.bf16.msra.mxu0 0
  %731 = vmatprep.subr.bf16.mxu0 0
  %732 = vmatpush2.bf16.msra.mxu0 0
  %733 = vmatprep.subr.bf16.mxu0 0
  %734 = vmatpush2.bf16.msra.mxu0 0
  %735 = vmatprep.subr.bf16.mxu0 0
  %736 = vmatpush2.bf16.msra.mxu0 0
  %737 = vmatprep.subr.bf16.mxu0 0
  %738 = vmatpush2.bf16.msra.mxu0 0
  %739 = vmatprep.subr.bf16.mxu0 0
  %740 = vmatpush2.bf16.msra.mxu0 0
  %741 = vmatprep.mubr.bf16.mxu0 0
  %742 = vmatmul.mubr.bf16.gmra.mxu0 %v698
  %v743 = vpop.f32.mrf.mxu0
  %v744 = vadd.f32 %v111, %v743
  %v745 = vpop.f32.mrf.mxu0
  %v746 = vpop.f32.mrf.mxu0
  %v747 = vadd.f32 %v112, %v746
  %v748 = vpop.f32.mrf.mxu0
  %749 = vmatprep.mubr.bf16.mxu0 0
  %750 = vmatmul.mubr.bf16.gmra.mxu0 %v701
  %v751 = vpop.f32.mrf.mxu0
  %v752 = vadd.f32 %v113, %v751
  %v753 = vpop.f32.mrf.mxu0
  %v754 = vpop.f32.mrf.mxu0
  %v755 = vadd.f32 %v114, %v754
  %v756 = vpop.f32.mrf.mxu0
  %757 = vmatprep.mubr.bf16.mxu0 0
  %758 = vmatmul.mubr.bf16.gmra.mxu0 %v704
  %v759 = vpop.f32.mrf.mxu0
  %v760 = vadd.f32 %v115, %v759
  %v761 = vpop.f32.mrf.mxu0
  %v762 = vpop.f32.mrf.mxu0
  %v763 = vadd.f32 %v116, %v762
  %v764 = vpop.f32.mrf.mxu0
  %765 = vmatprep.mubr.bf16.mxu0 0
  %766 = vmatmul.mubr.bf16.gmra.mxu0 %v707
  %v767 = vpop.f32.mrf.mxu0
  %v768 = vadd.f32 %v117, %v767
  %v769 = vpop.f32.mrf.mxu0
  %v770 = vpop.f32.mrf.mxu0
  %v771 = vadd.f32 %v118, %v770
  %v772 = vpop.f32.mrf.mxu0
  %773 = vdwg.mxu0
  %v782 = vunpack.c.l.b16 %v63
  %v783 = vunpack.c.l.b16 %v64
  %v784 = vunpack.c.l.b16 %v65
  %v785 = vunpack.c.l.b16 %v66
  %v786 = vunpack.c.l.b16 %v67
  %v787 = vunpack.c.l.b16 %v68
  %v788 = vunpack.c.l.b16 %v69
  %v789 = vunpack.c.l.b16 %v70
  %v790 = vpack.c.b16 %v783, %v782
  %v791 = vpack.c.b16 %v785, %v784
  %v792 = vpack.c.b16 %v787, %v786
  %v793 = vpack.c.b16 %v789, %v788
  %v798 = vunpack.c.l.b16 %v103
  %v799 = vunpack.c.l.b16 %v104
  %v800 = vunpack.c.l.b16 %v105
  %v801 = vunpack.c.l.b16 %v106
  %v802 = vpack.c.b16 %v799, %v798
  %v803 = vpack.c.b16 %v801, %v800
  %v807 = vsel %vm151, %v790, 0
  %v810 = vsel %vm151, %v791, 0
  %v813 = vsel %vm151, %v792, 0
  %v816 = vsel %vm151, %v793, 0
  %818 = vmatprep.subr.bf16.mxu0 0
  %819 = vmatpush1.bf16.msra.mxu0 0
  %820 = vmatprep.subr.bf16.mxu0 0
  %821 = vmatpush1.bf16.msra.mxu0 0
  %822 = vmatprep.subr.bf16.mxu0 0
  %823 = vmatpush1.bf16.msra.mxu0 0
  %824 = vmatprep.subr.bf16.mxu0 0
  %825 = vmatpush1.bf16.msra.mxu0 0
  %826 = vmatprep.subr.bf16.mxu0 0
  %827 = vmatpush1.bf16.msra.mxu0 0
  %828 = vmatprep.subr.bf16.mxu0 0
  %829 = vmatpush1.bf16.msra.mxu0 0
  %830 = vmatprep.subr.bf16.mxu0 0
  %831 = vmatpush1.bf16.msra.mxu0 %v803
  %832 = vmatprep.subr.bf16.mxu0 0
  %833 = vmatpush1.bf16.msra.mxu0 %v802
  %834 = vmatprep.subr.bf16.mxu0 0
  %835 = vmatpush2.bf16.msra.mxu0 0
  %836 = vmatprep.subr.bf16.mxu0 0
  %837 = vmatpush2.bf16.msra.mxu0 0
  %838 = vmatprep.subr.bf16.mxu0 0
  %839 = vmatpush2.bf16.msra.mxu0 0
  %840 = vmatprep.subr.bf16.mxu0 0
  %841 = vmatpush2.bf16.msra.mxu0 0
  %842 = vmatprep.subr.bf16.mxu0 0
  %843 = vmatpush2.bf16.msra.mxu0 0
  %844 = vmatprep.subr.bf16.mxu0 0
  %845 = vmatpush2.bf16.msra.mxu0 0
  %846 = vmatprep.subr.bf16.mxu0 0
  %847 = vmatpush2.bf16.msra.mxu0 0
  %848 = vmatprep.subr.bf16.mxu0 0
  %849 = vmatpush2.bf16.msra.mxu0 0
  %850 = vmatprep.mubr.bf16.mxu0 0
  %851 = vmatmul.mubr.bf16.gmra.mxu0 %v807
  %v852 = vpop.f32.mrf.mxu0
  %v853 = vadd.f32 %v111, %v852
  %v854 = vpop.f32.mrf.mxu0
  %v855 = vpop.f32.mrf.mxu0
  %v856 = vadd.f32 %v112, %v855
  %v857 = vpop.f32.mrf.mxu0
  %858 = vmatprep.mubr.bf16.mxu0 0
  %859 = vmatmul.mubr.bf16.gmra.mxu0 %v810
  %v860 = vpop.f32.mrf.mxu0
  %v861 = vadd.f32 %v113, %v860
  %v862 = vpop.f32.mrf.mxu0
  %v863 = vpop.f32.mrf.mxu0
  %v864 = vadd.f32 %v114, %v863
  %v865 = vpop.f32.mrf.mxu0
  %866 = vmatprep.mubr.bf16.mxu0 0
  %867 = vmatmul.mubr.bf16.gmra.mxu0 %v813
  %v868 = vpop.f32.mrf.mxu0
  %v869 = vadd.f32 %v115, %v868
  %v870 = vpop.f32.mrf.mxu0
  %v871 = vpop.f32.mrf.mxu0
  %v872 = vadd.f32 %v116, %v871
  %v873 = vpop.f32.mrf.mxu0
  %874 = vmatprep.mubr.bf16.mxu0 0
  %875 = vmatmul.mubr.bf16.gmra.mxu0 %v816
  %v876 = vpop.f32.mrf.mxu0
  %v877 = vadd.f32 %v117, %v876
  %v878 = vpop.f32.mrf.mxu0
  %v879 = vpop.f32.mrf.mxu0
  %v880 = vadd.f32 %v118, %v879
  %v881 = vpop.f32.mrf.mxu0
  %882 = vdwg.mxu0
  %v891 = vunpack.c.l.b16 %v71
  %v892 = vunpack.c.l.b16 %v72
  %v893 = vunpack.c.l.b16 %v73
  %v894 = vunpack.c.l.b16 %v74
  %v895 = vunpack.c.l.b16 %v75
  %v896 = vunpack.c.l.b16 %v76
  %v897 = vunpack.c.l.b16 %v77
  %v898 = vunpack.c.l.b16 %v78
  %v899 = vpack.c.b16 %v892, %v891
  %v900 = vpack.c.b16 %v894, %v893
  %v901 = vpack.c.b16 %v896, %v895
  %v902 = vpack.c.b16 %v898, %v897
  %v907 = vunpack.c.l.b16 %v107
  %v908 = vunpack.c.l.b16 %v108
  %v909 = vunpack.c.l.b16 %v109
  %v910 = vunpack.c.l.b16 %v110
  %v911 = vpack.c.b16 %v908, %v907
  %v912 = vpack.c.b16 %v910, %v909
  %v916 = vsel %vm151, %v899, 0
  %v919 = vsel %vm151, %v900, 0
  %v922 = vsel %vm151, %v901, 0
  %v925 = vsel %vm151, %v902, 0
  %927 = vmatprep.subr.bf16.mxu0 0
  %928 = vmatpush1.bf16.msra.mxu0 0
  %929 = vmatprep.subr.bf16.mxu0 0
  %930 = vmatpush1.bf16.msra.mxu0 0
  %931 = vmatprep.subr.bf16.mxu0 0
  %932 = vmatpush1.bf16.msra.mxu0 0
  %933 = vmatprep.subr.bf16.mxu0 0
  %934 = vmatpush1.bf16.msra.mxu0 0
  %935 = vmatprep.subr.bf16.mxu0 0
  %936 = vmatpush1.bf16.msra.mxu0 0
  %937 = vmatprep.subr.bf16.mxu0 0
  %938 = vmatpush1.bf16.msra.mxu0 0
  %939 = vmatprep.subr.bf16.mxu0 0
  %940 = vmatpush1.bf16.msra.mxu0 %v912
  %941 = vmatprep.subr.bf16.mxu0 0
  %942 = vmatpush1.bf16.msra.mxu0 %v911
  %943 = vmatprep.subr.bf16.mxu0 0
  %944 = vmatpush2.bf16.msra.mxu0 0
  %945 = vmatprep.subr.bf16.mxu0 0
  %946 = vmatpush2.bf16.msra.mxu0 0
  %947 = vmatprep.subr.bf16.mxu0 0
  %948 = vmatpush2.bf16.msra.mxu0 0
  %949 = vmatprep.subr.bf16.mxu0 0
  %950 = vmatpush2.bf16.msra.mxu0 0
  %951 = vmatprep.subr.bf16.mxu0 0
  %952 = vmatpush2.bf16.msra.mxu0 0
  %953 = vmatprep.subr.bf16.mxu0 0
  %954 = vmatpush2.bf16.msra.mxu0 0
  %955 = vmatprep.subr.bf16.mxu0 0
  %956 = vmatpush2.bf16.msra.mxu0 0
  %957 = vmatprep.subr.bf16.mxu0 0
  %958 = vmatpush2.bf16.msra.mxu0 0
  %959 = vmatprep.mubr.bf16.mxu0 0
  %960 = vmatmul.mubr.bf16.gmra.mxu0 %v916
  %v961 = vpop.f32.mrf.mxu0
  %v962 = vadd.f32 %v111, %v961
  %v963 = vpop.f32.mrf.mxu0
  %v964 = vpop.f32.mrf.mxu0
  %v965 = vadd.f32 %v112, %v964
  %v966 = vpop.f32.mrf.mxu0
  %967 = vmatprep.mubr.bf16.mxu0 0
  %968 = vmatmul.mubr.bf16.gmra.mxu0 %v919
  %v969 = vpop.f32.mrf.mxu0
  %v970 = vadd.f32 %v113, %v969
  %v971 = vpop.f32.mrf.mxu0
  %v972 = vpop.f32.mrf.mxu0
  %v973 = vadd.f32 %v114, %v972
  %v974 = vpop.f32.mrf.mxu0
  %975 = vmatprep.mubr.bf16.mxu0 0
  %976 = vmatmul.mubr.bf16.gmra.mxu0 %v922
  %v977 = vpop.f32.mrf.mxu0
  %v978 = vadd.f32 %v115, %v977
  %v979 = vpop.f32.mrf.mxu0
  %v980 = vpop.f32.mrf.mxu0
  %v981 = vadd.f32 %v116, %v980
  %v982 = vpop.f32.mrf.mxu0
  %983 = vmatprep.mubr.bf16.mxu0 0
  %984 = vmatmul.mubr.bf16.gmra.mxu0 %v925
  %v985 = vpop.f32.mrf.mxu0
  %v986 = vadd.f32 %v117, %v985
  %v987 = vpop.f32.mrf.mxu0
  %v988 = vpop.f32.mrf.mxu0
  %v989 = vadd.f32 %v118, %v988
  %v990 = vpop.f32.mrf.mxu0
  %991 = vdwg.mxu0
  %vm992 = vcmask 523264
  %v993 = vsel %vm992, %v199, -inf
  %994 = vmax.xlane.f32.xlu0 %v993
  %v995 = vpop.xlane.xlu0 %994
  %v996 = vsel %vm992, %v202, -inf
  %997 = vmax.xlane.f32.xlu0 %v996
  %v998 = vpop.xlane.xlu0 %997
  %v999 = vsel %vm992, %v207, -inf
  %1000 = vmax.xlane.f32.xlu0 %v999
  %v1001 = vpop.xlane.xlu0 %1000
  %v1002 = vsel %vm992, %v210, -inf
  %1003 = vmax.xlane.f32.xlu0 %v1002
  %v1004 = vpop.xlane.xlu0 %1003
  %v1005 = vsel %vm992, %v215, -inf
  %1006 = vmax.xlane.f32.xlu0 %v1005
  %v1007 = vpop.xlane.xlu0 %1006
  %v1008 = vsel %vm992, %v218, -inf
  %1009 = vmax.xlane.f32.xlu0 %v1008
  %v1010 = vpop.xlane.xlu0 %1009
  %v1011 = vsel %vm992, %v223, -inf
  %1012 = vmax.xlane.f32.xlu0 %v1011
  %v1013 = vpop.xlane.xlu0 %1012
  %v1014 = vsel %vm992, %v226, -inf
  %1015 = vmax.xlane.f32.xlu0 %v1014
  %v1016 = vpop.xlane.xlu0 %1015
  %v1017 = vsel %vm992, %v308, -inf
  %1018 = vmax.xlane.f32.xlu0 %v1017
  %v1019 = vpop.xlane.xlu0 %1018
  %v1020 = vsel %vm992, %v311, -inf
  %1021 = vmax.xlane.f32.xlu0 %v1020
  %v1022 = vpop.xlane.xlu0 %1021
  %v1023 = vsel %vm992, %v316, -inf
  %1024 = vmax.xlane.f32.xlu0 %v1023
  %v1025 = vpop.xlane.xlu0 %1024
  %v1026 = vsel %vm992, %v319, -inf
  %1027 = vmax.xlane.f32.xlu0 %v1026
  %v1028 = vpop.xlane.xlu0 %1027
  %v1029 = vsel %vm992, %v324, -inf
  %1030 = vmax.xlane.f32.xlu0 %v1029
  %v1031 = vpop.xlane.xlu0 %1030
  %v1032 = vsel %vm992, %v327, -inf
  %1033 = vmax.xlane.f32.xlu0 %v1032
  %v1034 = vpop.xlane.xlu0 %1033
  %v1035 = vsel %vm992, %v332, -inf
  %1036 = vmax.xlane.f32.xlu0 %v1035
  %v1037 = vpop.xlane.xlu0 %1036
  %v1038 = vsel %vm992, %v335, -inf
  %1039 = vmax.xlane.f32.xlu0 %v1038
  %v1040 = vpop.xlane.xlu0 %1039
  %v1041 = vsel %vm992, %v417, -inf
  %1042 = vmax.xlane.f32.xlu0 %v1041
  %v1043 = vpop.xlane.xlu0 %1042
  %v1044 = vsel %vm992, %v420, -inf
  %1045 = vmax.xlane.f32.xlu0 %v1044
  %v1046 = vpop.xlane.xlu0 %1045
  %v1047 = vsel %vm992, %v425, -inf
  %1048 = vmax.xlane.f32.xlu0 %v1047
  %v1049 = vpop.xlane.xlu0 %1048
  %v1050 = vsel %vm992, %v428, -inf
  %1051 = vmax.xlane.f32.xlu0 %v1050
  %v1052 = vpop.xlane.xlu0 %1051
  %v1053 = vsel %vm992, %v433, -inf
  %1054 = vmax.xlane.f32.xlu0 %v1053
  %v1055 = vpop.xlane.xlu0 %1054
  %v1056 = vsel %vm992, %v436, -inf
  %1057 = vmax.xlane.f32.xlu0 %v1056
  %v1058 = vpop.xlane.xlu0 %1057
  %v1059 = vsel %vm992, %v441, -inf
  %1060 = vmax.xlane.f32.xlu0 %v1059
  %v1061 = vpop.xlane.xlu0 %1060
  %v1062 = vsel %vm992, %v444, -inf
  %1063 = vmax.xlane.f32.xlu0 %v1062
  %v1064 = vpop.xlane.xlu0 %1063
  %v1065 = vsel %vm992, %v526, -inf
  %1066 = vmax.xlane.f32.xlu0 %v1065
  %v1067 = vpop.xlane.xlu0 %1066
  %v1068 = vsel %vm992, %v529, -inf
  %1069 = vmax.xlane.f32.xlu0 %v1068
  %v1070 = vpop.xlane.xlu0 %1069
  %v1071 = vsel %vm992, %v534, -inf
  %1072 = vmax.xlane.f32.xlu0 %v1071
  %v1073 = vpop.xlane.xlu0 %1072
  %v1074 = vsel %vm992, %v537, -inf
  %1075 = vmax.xlane.f32.xlu0 %v1074
  %v1076 = vpop.xlane.xlu0 %1075
  %v1077 = vsel %vm992, %v542, -inf
  %1078 = vmax.xlane.f32.xlu0 %v1077
  %v1079 = vpop.xlane.xlu0 %1078
  %v1080 = vsel %vm992, %v545, -inf
  %1081 = vmax.xlane.f32.xlu0 %v1080
  %v1082 = vpop.xlane.xlu0 %1081
  %v1083 = vsel %vm992, %v550, -inf
  %1084 = vmax.xlane.f32.xlu0 %v1083
  %v1085 = vpop.xlane.xlu0 %1084
  %v1086 = vsel %vm992, %v553, -inf
  %1087 = vmax.xlane.f32.xlu0 %v1086
  %v1088 = vpop.xlane.xlu0 %1087
  %v1089 = vsel %vm992, %v635, -inf
  %1090 = vmax.xlane.f32.xlu0 %v1089
  %v1091 = vpop.xlane.xlu0 %1090
  %v1092 = vsel %vm992, %v638, -inf
  %1093 = vmax.xlane.f32.xlu0 %v1092
  %v1094 = vpop.xlane.xlu0 %1093
  %v1095 = vsel %vm992, %v643, -inf
  %1096 = vmax.xlane.f32.xlu0 %v1095
  %v1097 = vpop.xlane.xlu0 %1096
  %v1098 = vsel %vm992, %v646, -inf
  %1099 = vmax.xlane.f32.xlu0 %v1098
  %v1100 = vpop.xlane.xlu0 %1099
  %v1101 = vsel %vm992, %v651, -inf
  %1102 = vmax.xlane.f32.xlu0 %v1101
  %v1103 = vpop.xlane.xlu0 %1102
  %v1104 = vsel %vm992, %v654, -inf
  %1105 = vmax.xlane.f32.xlu0 %v1104
  %v1106 = vpop.xlane.xlu0 %1105
  %v1107 = vsel %vm992, %v659, -inf
  %1108 = vmax.xlane.f32.xlu0 %v1107
  %v1109 = vpop.xlane.xlu0 %1108
  %v1110 = vsel %vm992, %v662, -inf
  %1111 = vmax.xlane.f32.xlu0 %v1110
  %v1112 = vpop.xlane.xlu0 %1111
  %v1113 = vsel %vm992, %v744, -inf
  %1114 = vmax.xlane.f32.xlu0 %v1113
  %v1115 = vpop.xlane.xlu0 %1114
  %v1116 = vsel %vm992, %v747, -inf
  %1117 = vmax.xlane.f32.xlu0 %v1116
  %v1118 = vpop.xlane.xlu0 %1117
  %v1119 = vsel %vm992, %v752, -inf
  %1120 = vmax.xlane.f32.xlu0 %v1119
  %v1121 = vpop.xlane.xlu0 %1120
  %v1122 = vsel %vm992, %v755, -inf
  %1123 = vmax.xlane.f32.xlu0 %v1122
  %v1124 = vpop.xlane.xlu0 %1123
  %v1125 = vsel %vm992, %v760, -inf
  %1126 = vmax.xlane.f32.xlu0 %v1125
  %v1127 = vpop.xlane.xlu0 %1126
  %v1128 = vsel %vm992, %v763, -inf
  %1129 = vmax.xlane.f32.xlu0 %v1128
  %v1130 = vpop.xlane.xlu0 %1129
  %v1131 = vsel %vm992, %v768, -inf
  %1132 = vmax.xlane.f32.xlu0 %v1131
  %v1133 = vpop.xlane.xlu0 %1132
  %v1134 = vsel %vm992, %v771, -inf
  %1135 = vmax.xlane.f32.xlu0 %v1134
  %v1136 = vpop.xlane.xlu0 %1135
  %v1137 = vsel %vm992, %v853, -inf
  %1138 = vmax.xlane.f32.xlu0 %v1137
  %v1139 = vpop.xlane.xlu0 %1138
  %v1140 = vsel %vm992, %v856, -inf
  %1141 = vmax.xlane.f32.xlu0 %v1140
  %v1142 = vpop.xlane.xlu0 %1141
  %v1143 = vsel %vm992, %v861, -inf
  %1144 = vmax.xlane.f32.xlu0 %v1143
  %v1145 = vpop.xlane.xlu0 %1144
  %v1146 = vsel %vm992, %v864, -inf
  %1147 = vmax.xlane.f32.xlu0 %v1146
  %v1148 = vpop.xlane.xlu0 %1147
  %v1149 = vsel %vm992, %v869, -inf
  %1150 = vmax.xlane.f32.xlu0 %v1149
  %v1151 = vpop.xlane.xlu0 %1150
  %v1152 = vsel %vm992, %v872, -inf
  %1153 = vmax.xlane.f32.xlu0 %v1152
  %v1154 = vpop.xlane.xlu0 %1153
  %v1155 = vsel %vm992, %v877, -inf
  %1156 = vmax.xlane.f32.xlu0 %v1155
  %v1157 = vpop.xlane.xlu0 %1156
  %v1158 = vsel %vm992, %v880, -inf
  %1159 = vmax.xlane.f32.xlu0 %v1158
  %v1160 = vpop.xlane.xlu0 %1159
  %v1161 = vsel %vm992, %v962, -inf
  %1162 = vmax.xlane.f32.xlu0 %v1161
  %v1163 = vpop.xlane.xlu0 %1162
  %v1164 = vsel %vm992, %v965, -inf
  %1165 = vmax.xlane.f32.xlu0 %v1164
  %v1166 = vpop.xlane.xlu0 %1165
  %v1167 = vsel %vm992, %v970, -inf
  %1168 = vmax.xlane.f32.xlu0 %v1167
  %v1169 = vpop.xlane.xlu0 %1168
  %v1170 = vsel %vm992, %v973, -inf
  %1171 = vmax.xlane.f32.xlu0 %v1170
  %v1172 = vpop.xlane.xlu0 %1171
  %v1173 = vsel %vm992, %v978, -inf
  %1174 = vmax.xlane.f32.xlu0 %v1173
  %v1175 = vpop.xlane.xlu0 %1174
  %v1176 = vsel %vm992, %v981, -inf
  %1177 = vmax.xlane.f32.xlu0 %v1176
  %v1178 = vpop.xlane.xlu0 %1177
  %v1179 = vsel %vm992, %v986, -inf
  %1180 = vmax.xlane.f32.xlu0 %v1179
  %v1181 = vpop.xlane.xlu0 %1180
  %v1182 = vsel %vm992, %v989, -inf
  %1183 = vmax.xlane.f32.xlu0 %v1182
  %v1184 = vpop.xlane.xlu0 %1183
  %p1185 = scmp.eq.s32.totalorder 0, 0
  // Predicated region
  $region14: #{prob_attention.2} parent=0 // pred_check
    %p1186 = pneg %p1185
  $region15: #{prob_attention.2} parent=0 // pred_check_branch
    %1188 = sbr.rel (%p1186) target = $region17
  $region16: #{prob_attention.2} parent=0 // pred_region
    %v1253 = vlaneseq
    %v1254 = vand.u32 %v1253, 127
    %v1255 = vlaneseq
    %v1256 = vshrl.u32 %v1255, 7
    %v1257 = vsub.s32 %v1254, %v1256
    %v1258 = vrot.slane %v995, %v1257
    %v1259 = vadd.s32 %v1254, 4294967288
    %v1260 = vlaneseq
    %v1261 = vshrl.u32 %v1260, 7
    %v1262 = vsub.s32 %v1259, %v1261
    %v1263 = vrot.slane %v998, %v1262
    %vm1264 = vcmask 130112
    %v1265 = vsel %vm1264, %v1263, %v1258
    %v1266 = vadd.s32 %v1254, 4294967280
    %v1267 = vlaneseq
    %v1268 = vshrl.u32 %v1267, 7
    %v1269 = vsub.s32 %v1266, %v1268
    %v1270 = vrot.slane %v1001, %v1269
    %vm1271 = vcmask 195712
    %v1272 = vsel %vm1271, %v1270, %v1265
    %v1273 = vadd.s32 %v1254, 4294967272
    %v1274 = vlaneseq
    %v1275 = vshrl.u32 %v1274, 7
    %v1276 = vsub.s32 %v1273, %v1275
    %v1277 = vrot.slane %v1004, %v1276
    %vm1278 = vcmask 261312
    %v1279 = vsel %vm1278, %v1277, %v1272
    %v1280 = vadd.s32 %v1254, 4294967264
    %v1281 = vlaneseq
    %v1282 = vshrl.u32 %v1281, 7
    %v1283 = vsub.s32 %v1280, %v1282
    %v1284 = vrot.slane %v1007, %v1283
    %vm1285 = vcmask 326912
    %v1286 = vsel %vm1285, %v1284, %v1279
    %v1287 = vadd.s32 %v1254, 4294967256
    %v1288 = vlaneseq
    %v1289 = vshrl.u32 %v1288, 7
    %v1290 = vsub.s32 %v1287, %v1289
    %v1291 = vrot.slane %v1010, %v1290
    %vm1292 = vcmask 392512
    %v1293 = vsel %vm1292, %v1291, %v1286
    %v1294 = vadd.s32 %v1254, 4294967248
    %v1295 = vlaneseq
    %v1296 = vshrl.u32 %v1295, 7
    %v1297 = vsub.s32 %v1294, %v1296
    %v1298 = vrot.slane %v1013, %v1297
    %vm1299 = vcmask 458112
    %v1300 = vsel %vm1299, %v1298, %v1293
    %v1301 = vadd.s32 %v1254, 4294967240
    %v1302 = vlaneseq
    %v1303 = vshrl.u32 %v1302, 7
    %v1304 = vsub.s32 %v1301, %v1303
    %v1305 = vrot.slane %v1016, %v1304
    %vm1306 = vcmask 523712
    %v1307 = vsel %vm1306, %v1305, %v1300
    %v1308 = vlaneseq
    %v1309 = vshrl.u32 %v1308, 7
    %v1310 = vsub.s32 %v1254, %v1309
    %v1311 = vrot.slane %v1019, %v1310
    %v1312 = vlaneseq
    %v1313 = vshrl.u32 %v1312, 7
    %v1314 = vsub.s32 %v1259, %v1313
    %v1315 = vrot.slane %v1022, %v1314
    %v1316 = vsel %vm1264, %v1315, %v1311
    %v1317 = vlaneseq
    %v1318 = vshrl.u32 %v1317, 7
    %v1319 = vsub.s32 %v1266, %v1318
    %v1320 = vrot.slane %v1025, %v1319
    %v1321 = vsel %vm1271, %v1320, %v1316
    %v1322 = vlaneseq
    %v1323 = vshrl.u32 %v1322, 7
    %v1324 = vsub.s32 %v1273, %v1323
    %v1325 = vrot.slane %v1028, %v1324
    %v1326 = vsel %vm1278, %v1325, %v1321
    %v1327 = vlaneseq
    %v1328 = vshrl.u32 %v1327, 7
    %v1329 = vsub.s32 %v1280, %v1328
    %v1330 = vrot.slane %v1031, %v1329
    %v1331 = vsel %vm1285, %v1330, %v1326
    %v1332 = vlaneseq
    %v1333 = vshrl.u32 %v1332, 7
    %v1334 = vsub.s32 %v1287, %v1333
    %v1335 = vrot.slane %v1034, %v1334
    %v1336 = vsel %vm1292, %v1335, %v1331
    %v1337 = vlaneseq
    %v1338 = vshrl.u32 %v1337, 7
    %v1339 = vsub.s32 %v1294, %v1338
    %v1340 = vrot.slane %v1037, %v1339
    %v1341 = vsel %vm1299, %v1340, %v1336
    %v1342 = vlaneseq
    %v1343 = vshrl.u32 %v1342, 7
    %v1344 = vsub.s32 %v1301, %v1343
    %v1345 = vrot.slane %v1040, %v1344
    %v1346 = vsel %vm1306, %v1345, %v1341
    %v1347 = vlaneseq
    %v1348 = vshrl.u32 %v1347, 7
    %v1349 = vsub.s32 %v1254, %v1348
    %v1350 = vrot.slane %v1043, %v1349
    %v1351 = vlaneseq
    %v1352 = vshrl.u32 %v1351, 7
    %v1353 = vsub.s32 %v1259, %v1352
    %v1354 = vrot.slane %v1046, %v1353
    %v1355 = vsel %vm1264, %v1354, %v1350
    %v1356 = vlaneseq
    %v1357 = vshrl.u32 %v1356, 7
    %v1358 = vsub.s32 %v1266, %v1357
    %v1359 = vrot.slane %v1049, %v1358
    %v1360 = vsel %vm1271, %v1359, %v1355
    %v1361 = vlaneseq
    %v1362 = vshrl.u32 %v1361, 7
    %v1363 = vsub.s32 %v1273, %v1362
    %v1364 = vrot.slane %v1052, %v1363
    %v1365 = vsel %vm1278, %v1364, %v1360
    %v1366 = vlaneseq
    %v1367 = vshrl.u32 %v1366, 7
    %v1368 = vsub.s32 %v1280, %v1367
    %v1369 = vrot.slane %v1055, %v1368
    %v1370 = vsel %vm1285, %v1369, %v1365
    %v1371 = vlaneseq
    %v1372 = vshrl.u32 %v1371, 7
    %v1373 = vsub.s32 %v1287, %v1372
    %v1374 = vrot.slane %v1058, %v1373
    %v1375 = vsel %vm1292, %v1374, %v1370
    %v1376 = vlaneseq
    %v1377 = vshrl.u32 %v1376, 7
    %v1378 = vsub.s32 %v1294, %v1377
    %v1379 = vrot.slane %v1061, %v1378
    %v1380 = vsel %vm1299, %v1379, %v1375
    %v1381 = vlaneseq
    %v1382 = vshrl.u32 %v1381, 7
    %v1383 = vsub.s32 %v1301, %v1382
    %v1384 = vrot.slane %v1064, %v1383
    %v1385 = vsel %vm1306, %v1384, %v1380
    %v1386 = vlaneseq
    %v1387 = vshrl.u32 %v1386, 7
    %v1388 = vsub.s32 %v1254, %v1387
    %v1389 = vrot.slane %v1067, %v1388
    %v1390 = vlaneseq
    %v1391 = vshrl.u32 %v1390, 7
    %v1392 = vsub.s32 %v1259, %v1391
    %v1393 = vrot.slane %v1070, %v1392
    %v1394 = vsel %vm1264, %v1393, %v1389
    %v1395 = vlaneseq
    %v1396 = vshrl.u32 %v1395, 7
    %v1397 = vsub.s32 %v1266, %v1396
    %v1398 = vrot.slane %v1073, %v1397
    %v1399 = vsel %vm1271, %v1398, %v1394
    %v1400 = vlaneseq
    %v1401 = vshrl.u32 %v1400, 7
    %v1402 = vsub.s32 %v1273, %v1401
    %v1403 = vrot.slane %v1076, %v1402
    %v1404 = vsel %vm1278, %v1403, %v1399
    %v1405 = vlaneseq
    %v1406 = vshrl.u32 %v1405, 7
    %v1407 = vsub.s32 %v1280, %v1406
    %v1408 = vrot.slane %v1079, %v1407
    %v1409 = vsel %vm1285, %v1408, %v1404
    %v1410 = vlaneseq
    %v1411 = vshrl.u32 %v1410, 7
    %v1412 = vsub.s32 %v1287, %v1411
    %v1413 = vrot.slane %v1082, %v1412
    %v1414 = vsel %vm1292, %v1413, %v1409
    %v1415 = vlaneseq
    %v1416 = vshrl.u32 %v1415, 7
    %v1417 = vsub.s32 %v1294, %v1416
    %v1418 = vrot.slane %v1085, %v1417
    %v1419 = vsel %vm1299, %v1418, %v1414
    %v1420 = vlaneseq
    %v1421 = vshrl.u32 %v1420, 7
    %v1422 = vsub.s32 %v1301, %v1421
    %v1423 = vrot.slane %v1088, %v1422
    %v1424 = vsel %vm1306, %v1423, %v1419
    %v1425 = vlaneseq
    %v1426 = vshrl.u32 %v1425, 7
    %v1427 = vsub.s32 %v1254, %v1426
    %v1428 = vrot.slane %v1091, %v1427
    %v1429 = vlaneseq
    %v1430 = vshrl.u32 %v1429, 7
    %v1431 = vsub.s32 %v1259, %v1430
    %v1432 = vrot.slane %v1094, %v1431
    %v1433 = vsel %vm1264, %v1432, %v1428
    %v1434 = vlaneseq
    %v1435 = vshrl.u32 %v1434, 7
    %v1436 = vsub.s32 %v1266, %v1435
    %v1437 = vrot.slane %v1097, %v1436
    %v1438 = vsel %vm1271, %v1437, %v1433
    %v1439 = vlaneseq
    %v1440 = vshrl.u32 %v1439, 7
    %v1441 = vsub.s32 %v1273, %v1440
    %v1442 = vrot.slane %v1100, %v1441
    %v1443 = vsel %vm1278, %v1442, %v1438
    %v1444 = vlaneseq
    %v1445 = vshrl.u32 %v1444, 7
    %v1446 = vsub.s32 %v1280, %v1445
    %v1447 = vrot.slane %v1103, %v1446
    %v1448 = vsel %vm1285, %v1447, %v1443
    %v1449 = vlaneseq
    %v1450 = vshrl.u32 %v1449, 7
    %v1451 = vsub.s32 %v1287, %v1450
    %v1452 = vrot.slane %v1106, %v1451
    %v1453 = vsel %vm1292, %v1452, %v1448
    %v1454 = vlaneseq
    %v1455 = vshrl.u32 %v1454, 7
    %v1456 = vsub.s32 %v1294, %v1455
    %v1457 = vrot.slane %v1109, %v1456
    %v1458 = vsel %vm1299, %v1457, %v1453
    %v1459 = vlaneseq
    %v1460 = vshrl.u32 %v1459, 7
    %v1461 = vsub.s32 %v1301, %v1460
    %v1462 = vrot.slane %v1112, %v1461
    %v1463 = vsel %vm1306, %v1462, %v1458
    %v1464 = vlaneseq
    %v1465 = vshrl.u32 %v1464, 7
    %v1466 = vsub.s32 %v1254, %v1465
    %v1467 = vrot.slane %v1115, %v1466
    %v1468 = vlaneseq
    %v1469 = vshrl.u32 %v1468, 7
    %v1470 = vsub.s32 %v1259, %v1469
    %v1471 = vrot.slane %v1118, %v1470
    %v1472 = vsel %vm1264, %v1471, %v1467
    %v1473 = vlaneseq
    %v1474 = vshrl.u32 %v1473, 7
    %v1475 = vsub.s32 %v1266, %v1474
    %v1476 = vrot.slane %v1121, %v1475
    %v1477 = vsel %vm1271, %v1476, %v1472
    %v1478 = vlaneseq
    %v1479 = vshrl.u32 %v1478, 7
    %v1480 = vsub.s32 %v1273, %v1479
    %v1481 = vrot.slane %v1124, %v1480
    %v1482 = vsel %vm1278, %v1481, %v1477
    %v1483 = vlaneseq
    %v1484 = vshrl.u32 %v1483, 7
    %v1485 = vsub.s32 %v1280, %v1484
    %v1486 = vrot.slane %v1127, %v1485
    %v1487 = vsel %vm1285, %v1486, %v1482
    %v1488 = vlaneseq
    %v1489 = vshrl.u32 %v1488, 7
    %v1490 = vsub.s32 %v1287, %v1489
    %v1491 = vrot.slane %v1130, %v1490
    %v1492 = vsel %vm1292, %v1491, %v1487
    %v1493 = vlaneseq
    %v1494 = vshrl.u32 %v1493, 7
    %v1495 = vsub.s32 %v1294, %v1494
    %v1496 = vrot.slane %v1133, %v1495
    %v1497 = vsel %vm1299, %v1496, %v1492
    %v1498 = vlaneseq
    %v1499 = vshrl.u32 %v1498, 7
    %v1500 = vsub.s32 %v1301, %v1499
    %v1501 = vrot.slane %v1136, %v1500
    %v1502 = vsel %vm1306, %v1501, %v1497
    %v1503 = vlaneseq
    %v1504 = vshrl.u32 %v1503, 7
    %v1505 = vsub.s32 %v1254, %v1504
    %v1506 = vrot.slane %v1139, %v1505
    %v1507 = vlaneseq
    %v1508 = vshrl.u32 %v1507, 7
    %v1509 = vsub.s32 %v1259, %v1508
    %v1510 = vrot.slane %v1142, %v1509
    %v1511 = vsel %vm1264, %v1510, %v1506
    %v1512 = vlaneseq
    %v1513 = vshrl.u32 %v1512, 7
    %v1514 = vsub.s32 %v1266, %v1513
    %v1515 = vrot.slane %v1145, %v1514
    %v1516 = vsel %vm1271, %v1515, %v1511
    %v1517 = vlaneseq
    %v1518 = vshrl.u32 %v1517, 7
    %v1519 = vsub.s32 %v1273, %v1518
    %v1520 = vrot.slane %v1148, %v1519
    %v1521 = vsel %vm1278, %v1520, %v1516
    %v1522 = vlaneseq
    %v1523 = vshrl.u32 %v1522, 7
    %v1524 = vsub.s32 %v1280, %v1523
    %v1525 = vrot.slane %v1151, %v1524
    %v1526 = vsel %vm1285, %v1525, %v1521
    %v1527 = vlaneseq
    %v1528 = vshrl.u32 %v1527, 7
    %v1529 = vsub.s32 %v1287, %v1528
    %v1530 = vrot.slane %v1154, %v1529
    %v1531 = vsel %vm1292, %v1530, %v1526
    %v1532 = vlaneseq
    %v1533 = vshrl.u32 %v1532, 7
    %v1534 = vsub.s32 %v1294, %v1533
    %v1535 = vrot.slane %v1157, %v1534
    %v1536 = vsel %vm1299, %v1535, %v1531
    %v1537 = vlaneseq
    %v1538 = vshrl.u32 %v1537, 7
    %v1539 = vsub.s32 %v1301, %v1538
    %v1540 = vrot.slane %v1160, %v1539
    %v1541 = vsel %vm1306, %v1540, %v1536
    %v1542 = vlaneseq
    %v1543 = vshrl.u32 %v1542, 7
    %v1544 = vsub.s32 %v1254, %v1543
    %v1545 = vrot.slane %v1163, %v1544
    %v1546 = vlaneseq
    %v1547 = vshrl.u32 %v1546, 7
    %v1548 = vsub.s32 %v1259, %v1547
    %v1549 = vrot.slane %v1166, %v1548
    %v1550 = vsel %vm1264, %v1549, %v1545
    %v1551 = vlaneseq
    %v1552 = vshrl.u32 %v1551, 7
    %v1553 = vsub.s32 %v1266, %v1552
    %v1554 = vrot.slane %v1169, %v1553
    %v1555 = vsel %vm1271, %v1554, %v1550
    %v1556 = vlaneseq
    %v1557 = vshrl.u32 %v1556, 7
    %v1558 = vsub.s32 %v1273, %v1557
    %v1559 = vrot.slane %v1172, %v1558
    %v1560 = vsel %vm1278, %v1559, %v1555
    %v1561 = vlaneseq
    %v1562 = vshrl.u32 %v1561, 7
    %v1563 = vsub.s32 %v1280, %v1562
    %v1564 = vrot.slane %v1175, %v1563
    %v1565 = vsel %vm1285, %v1564, %v1560
    %v1566 = vlaneseq
    %v1567 = vshrl.u32 %v1566, 7
    %v1568 = vsub.s32 %v1287, %v1567
    %v1569 = vrot.slane %v1178, %v1568
    %v1570 = vsel %vm1292, %v1569, %v1565
    %v1571 = vlaneseq
    %v1572 = vshrl.u32 %v1571, 7
    %v1573 = vsub.s32 %v1294, %v1572
    %v1574 = vrot.slane %v1181, %v1573
    %v1575 = vsel %vm1299, %v1574, %v1570
    %v1576 = vlaneseq
    %v1577 = vshrl.u32 %v1576, 7
    %v1578 = vsub.s32 %v1301, %v1577
    %v1579 = vrot.slane %v1184, %v1578
    %v1580 = vsel %vm1306, %v1579, %v1575
    %vm1581 = vcmask 1041409
    %v1582 = vsel %vm1581, %v1346, %v1307
    %vm1583 = vcmask 1042434
    %v1584 = vsel %vm1583, %v1385, %v1582
    %vm1585 = vcmask 1043459
    %v1586 = vsel %vm1585, %v1424, %v1584
    %vm1587 = vcmask 1044484
    %v1588 = vsel %vm1587, %v1463, %v1586
    %vm1589 = vcmask 1045509
    %v1590 = vsel %vm1589, %v1502, %v1588
    %vm1591 = vcmask 1046534
    %v1592 = vsel %vm1591, %v1541, %v1590
    %vm1593 = vcmask 1047559
    %v1594 = vsel %vm1593, %v1580, %v1592
    %1596 = vst.msk [vmem:[%s3] sm:$0xff] %vm992, %v1594
  $region17: #{prob_attention.2} parent=0 // pred_fallthru
    _
  %p1597 = scmp.gt.s32.totalorder 0, 0
  // Predicated region
  $region18: #{prob_attention.2} parent=0 // pred_check
    %p1598 = pneg %p1597
  $region19: #{prob_attention.2} parent=0 // pred_check_branch
    %1600 = sbr.rel (%p1598) target = $region21
  $region20: #{prob_attention.2} parent=0 // pred_region
    %v1601 = vld [vmem:[%s3] sm:$0xff]
    %v1666 = vlaneseq
    %v1667 = vand.u32 %v1666, 127
    %v1668 = vlaneseq
    %v1669 = vshrl.u32 %v1668, 7
    %v1670 = vsub.s32 %v1667, %v1669
    %v1671 = vrot.slane %v995, %v1670
    %v1672 = vadd.s32 %v1667, 4294967288
    %v1673 = vlaneseq
    %v1674 = vshrl.u32 %v1673, 7
    %v1675 = vsub.s32 %v1672, %v1674
    %v1676 = vrot.slane %v998, %v1675
    %vm1677 = vcmask 130112
    %v1678 = vsel %vm1677, %v1676, %v1671
    %v1679 = vadd.s32 %v1667, 4294967280
    %v1680 = vlaneseq
    %v1681 = vshrl.u32 %v1680, 7
    %v1682 = vsub.s32 %v1679, %v1681
    %v1683 = vrot.slane %v1001, %v1682
    %vm1684 = vcmask 195712
    %v1685 = vsel %vm1684, %v1683, %v1678
    %v1686 = vadd.s32 %v1667, 4294967272
    %v1687 = vlaneseq
    %v1688 = vshrl.u32 %v1687, 7
    %v1689 = vsub.s32 %v1686, %v1688
    %v1690 = vrot.slane %v1004, %v1689
    %vm1691 = vcmask 261312
    %v1692 = vsel %vm1691, %v1690, %v1685
    %v1693 = vadd.s32 %v1667, 4294967264
    %v1694 = vlaneseq
    %v1695 = vshrl.u32 %v1694, 7
    %v1696 = vsub.s32 %v1693, %v1695
    %v1697 = vrot.slane %v1007, %v1696
    %vm1698 = vcmask 326912
    %v1699 = vsel %vm1698, %v1697, %v1692
    %v1700 = vadd.s32 %v1667, 4294967256
    %v1701 = vlaneseq
    %v1702 = vshrl.u32 %v1701, 7
    %v1703 = vsub.s32 %v1700, %v1702
    %v1704 = vrot.slane %v1010, %v1703
    %vm1705 = vcmask 392512
    %v1706 = vsel %vm1705, %v1704, %v1699
    %v1707 = vadd.s32 %v1667, 4294967248
    %v1708 = vlaneseq
    %v1709 = vshrl.u32 %v1708, 7
    %v1710 = vsub.s32 %v1707, %v1709
    %v1711 = vrot.slane %v1013, %v1710
    %vm1712 = vcmask 458112
    %v1713 = vsel %vm1712, %v1711, %v1706
    %v1714 = vadd.s32 %v1667, 4294967240
    %v1715 = vlaneseq
    %v1716 = vshrl.u32 %v1715, 7
    %v1717 = vsub.s32 %v1714, %v1716
    %v1718 = vrot.slane %v1016, %v1717
    %vm1719 = vcmask 523712
    %v1720 = vsel %vm1719, %v1718, %v1713
    %v1721 = vlaneseq
    %v1722 = vshrl.u32 %v1721, 7
    %v1723 = vsub.s32 %v1667, %v1722
    %v1724 = vrot.slane %v1019, %v1723
    %v1725 = vlaneseq
    %v1726 = vshrl.u32 %v1725, 7
    %v1727 = vsub.s32 %v1672, %v1726
    %v1728 = vrot.slane %v1022, %v1727
    %v1729 = vsel %vm1677, %v1728, %v1724
    %v1730 = vlaneseq
    %v1731 = vshrl.u32 %v1730, 7
    %v1732 = vsub.s32 %v1679, %v1731
    %v1733 = vrot.slane %v1025, %v1732
    %v1734 = vsel %vm1684, %v1733, %v1729
    %v1735 = vlaneseq
    %v1736 = vshrl.u32 %v1735, 7
    %v1737 = vsub.s32 %v1686, %v1736
    %v1738 = vrot.slane %v1028, %v1737
    %v1739 = vsel %vm1691, %v1738, %v1734
    %v1740 = vlaneseq
    %v1741 = vshrl.u32 %v1740, 7
    %v1742 = vsub.s32 %v1693, %v1741
    %v1743 = vrot.slane %v1031, %v1742
    %v1744 = vsel %vm1698, %v1743, %v1739
    %v1745 = vlaneseq
    %v1746 = vshrl.u32 %v1745, 7
    %v1747 = vsub.s32 %v1700, %v1746
    %v1748 = vrot.slane %v1034, %v1747
    %v1749 = vsel %vm1705, %v1748, %v1744
    %v1750 = vlaneseq
    %v1751 = vshrl.u32 %v1750, 7
    %v1752 = vsub.s32 %v1707, %v1751
    %v1753 = vrot.slane %v1037, %v1752
    %v1754 = vsel %vm1712, %v1753, %v1749
    %v1755 = vlaneseq
    %v1756 = vshrl.u32 %v1755, 7
    %v1757 = vsub.s32 %v1714, %v1756
    %v1758 = vrot.slane %v1040, %v1757
    %v1759 = vsel %vm1719, %v1758, %v1754
    %v1760 = vlaneseq
    %v1761 = vshrl.u32 %v1760, 7
    %v1762 = vsub.s32 %v1667, %v1761
    %v1763 = vrot.slane %v1043, %v1762
    %v1764 = vlaneseq
    %v1765 = vshrl.u32 %v1764, 7
    %v1766 = vsub.s32 %v1672, %v1765
    %v1767 = vrot.slane %v1046, %v1766
    %v1768 = vsel %vm1677, %v1767, %v1763
    %v1769 = vlaneseq
    %v1770 = vshrl.u32 %v1769, 7
    %v1771 = vsub.s32 %v1679, %v1770
    %v1772 = vrot.slane %v1049, %v1771
    %v1773 = vsel %vm1684, %v1772, %v1768
    %v1774 = vlaneseq
    %v1775 = vshrl.u32 %v1774, 7
    %v1776 = vsub.s32 %v1686, %v1775
    %v1777 = vrot.slane %v1052, %v1776
    %v1778 = vsel %vm1691, %v1777, %v1773
    %v1779 = vlaneseq
    %v1780 = vshrl.u32 %v1779, 7
    %v1781 = vsub.s32 %v1693, %v1780
    %v1782 = vrot.slane %v1055, %v1781
    %v1783 = vsel %vm1698, %v1782, %v1778
    %v1784 = vlaneseq
    %v1785 = vshrl.u32 %v1784, 7
    %v1786 = vsub.s32 %v1700, %v1785
    %v1787 = vrot.slane %v1058, %v1786
    %v1788 = vsel %vm1705, %v1787, %v1783
    %v1789 = vlaneseq
    %v1790 = vshrl.u32 %v1789, 7
    %v1791 = vsub.s32 %v1707, %v1790
    %v1792 = vrot.slane %v1061, %v1791
    %v1793 = vsel %vm1712, %v1792, %v1788
    %v1794 = vlaneseq
    %v1795 = vshrl.u32 %v1794, 7
    %v1796 = vsub.s32 %v1714, %v1795
    %v1797 = vrot.slane %v1064, %v1796
    %v1798 = vsel %vm1719, %v1797, %v1793
    %v1799 = vlaneseq
    %v1800 = vshrl.u32 %v1799, 7
    %v1801 = vsub.s32 %v1667, %v1800
    %v1802 = vrot.slane %v1067, %v1801
    %v1803 = vlaneseq
    %v1804 = vshrl.u32 %v1803, 7
    %v1805 = vsub.s32 %v1672, %v1804
    %v1806 = vrot.slane %v1070, %v1805
    %v1807 = vsel %vm1677, %v1806, %v1802
    %v1808 = vlaneseq
    %v1809 = vshrl.u32 %v1808, 7
    %v1810 = vsub.s32 %v1679, %v1809
    %v1811 = vrot.slane %v1073, %v1810
    %v1812 = vsel %vm1684, %v1811, %v1807
    %v1813 = vlaneseq
    %v1814 = vshrl.u32 %v1813, 7
    %v1815 = vsub.s32 %v1686, %v1814
    %v1816 = vrot.slane %v1076, %v1815
    %v1817 = vsel %vm1691, %v1816, %v1812
    %v1818 = vlaneseq
    %v1819 = vshrl.u32 %v1818, 7
    %v1820 = vsub.s32 %v1693, %v1819
    %v1821 = vrot.slane %v1079, %v1820
    %v1822 = vsel %vm1698, %v1821, %v1817
    %v1823 = vlaneseq
    %v1824 = vshrl.u32 %v1823, 7
    %v1825 = vsub.s32 %v1700, %v1824
    %v1826 = vrot.slane %v1082, %v1825
    %v1827 = vsel %vm1705, %v1826, %v1822
    %v1828 = vlaneseq
    %v1829 = vshrl.u32 %v1828, 7
    %v1830 = vsub.s32 %v1707, %v1829
    %v1831 = vrot.slane %v1085, %v1830
    %v1832 = vsel %vm1712, %v1831, %v1827
    %v1833 = vlaneseq
    %v1834 = vshrl.u32 %v1833, 7
    %v1835 = vsub.s32 %v1714, %v1834
    %v1836 = vrot.slane %v1088, %v1835
    %v1837 = vsel %vm1719, %v1836, %v1832
    %v1838 = vlaneseq
    %v1839 = vshrl.u32 %v1838, 7
    %v1840 = vsub.s32 %v1667, %v1839
    %v1841 = vrot.slane %v1091, %v1840
    %v1842 = vlaneseq
    %v1843 = vshrl.u32 %v1842, 7
    %v1844 = vsub.s32 %v1672, %v1843
    %v1845 = vrot.slane %v1094, %v1844
    %v1846 = vsel %vm1677, %v1845, %v1841
    %v1847 = vlaneseq
    %v1848 = vshrl.u32 %v1847, 7
    %v1849 = vsub.s32 %v1679, %v1848
    %v1850 = vrot.slane %v1097, %v1849
    %v1851 = vsel %vm1684, %v1850, %v1846
    %v1852 = vlaneseq
    %v1853 = vshrl.u32 %v1852, 7
    %v1854 = vsub.s32 %v1686, %v1853
    %v1855 = vrot.slane %v1100, %v1854
    %v1856 = vsel %vm1691, %v1855, %v1851
    %v1857 = vlaneseq
    %v1858 = vshrl.u32 %v1857, 7
    %v1859 = vsub.s32 %v1693, %v1858
    %v1860 = vrot.slane %v1103, %v1859
    %v1861 = vsel %vm1698, %v1860, %v1856
    %v1862 = vlaneseq
    %v1863 = vshrl.u32 %v1862, 7
    %v1864 = vsub.s32 %v1700, %v1863
    %v1865 = vrot.slane %v1106, %v1864
    %v1866 = vsel %vm1705, %v1865, %v1861
    %v1867 = vlaneseq
    %v1868 = vshrl.u32 %v1867, 7
    %v1869 = vsub.s32 %v1707, %v1868
    %v1870 = vrot.slane %v1109, %v1869
    %v1871 = vsel %vm1712, %v1870, %v1866
    %v1872 = vlaneseq
    %v1873 = vshrl.u32 %v1872, 7
    %v1874 = vsub.s32 %v1714, %v1873
    %v1875 = vrot.slane %v1112, %v1874
    %v1876 = vsel %vm1719, %v1875, %v1871
    %v1877 = vlaneseq
    %v1878 = vshrl.u32 %v1877, 7
    %v1879 = vsub.s32 %v1667, %v1878
    %v1880 = vrot.slane %v1115, %v1879
    %v1881 = vlaneseq
    %v1882 = vshrl.u32 %v1881, 7
    %v1883 = vsub.s32 %v1672, %v1882
    %v1884 = vrot.slane %v1118, %v1883
    %v1885 = vsel %vm1677, %v1884, %v1880
    %v1886 = vlaneseq
    %v1887 = vshrl.u32 %v1886, 7
    %v1888 = vsub.s32 %v1679, %v1887
    %v1889 = vrot.slane %v1121, %v1888
    %v1890 = vsel %vm1684, %v1889, %v1885
    %v1891 = vlaneseq
    %v1892 = vshrl.u32 %v1891, 7
    %v1893 = vsub.s32 %v1686, %v1892
    %v1894 = vrot.slane %v1124, %v1893
    %v1895 = vsel %vm1691, %v1894, %v1890
    %v1896 = vlaneseq
    %v1897 = vshrl.u32 %v1896, 7
    %v1898 = vsub.s32 %v1693, %v1897
    %v1899 = vrot.slane %v1127, %v1898
    %v1900 = vsel %vm1698, %v1899, %v1895
    %v1901 = vlaneseq
    %v1902 = vshrl.u32 %v1901, 7
    %v1903 = vsub.s32 %v1700, %v1902
    %v1904 = vrot.slane %v1130, %v1903
    %v1905 = vsel %vm1705, %v1904, %v1900
    %v1906 = vlaneseq
    %v1907 = vshrl.u32 %v1906, 7
    %v1908 = vsub.s32 %v1707, %v1907
    %v1909 = vrot.slane %v1133, %v1908
    %v1910 = vsel %vm1712, %v1909, %v1905
    %v1911 = vlaneseq
    %v1912 = vshrl.u32 %v1911, 7
    %v1913 = vsub.s32 %v1714, %v1912
    %v1914 = vrot.slane %v1136, %v1913
    %v1915 = vsel %vm1719, %v1914, %v1910
    %v1916 = vlaneseq
    %v1917 = vshrl.u32 %v1916, 7
    %v1918 = vsub.s32 %v1667, %v1917
    %v1919 = vrot.slane %v1139, %v1918
    %v1920 = vlaneseq
    %v1921 = vshrl.u32 %v1920, 7
    %v1922 = vsub.s32 %v1672, %v1921
    %v1923 = vrot.slane %v1142, %v1922
    %v1924 = vsel %vm1677, %v1923, %v1919
    %v1925 = vlaneseq
    %v1926 = vshrl.u32 %v1925, 7
    %v1927 = vsub.s32 %v1679, %v1926
    %v1928 = vrot.slane %v1145, %v1927
    %v1929 = vsel %vm1684, %v1928, %v1924
    %v1930 = vlaneseq
    %v1931 = vshrl.u32 %v1930, 7
    %v1932 = vsub.s32 %v1686, %v1931
    %v1933 = vrot.slane %v1148, %v1932
    %v1934 = vsel %vm1691, %v1933, %v1929
    %v1935 = vlaneseq
    %v1936 = vshrl.u32 %v1935, 7
    %v1937 = vsub.s32 %v1693, %v1936
    %v1938 = vrot.slane %v1151, %v1937
    %v1939 = vsel %vm1698, %v1938, %v1934
    %v1940 = vlaneseq
    %v1941 = vshrl.u32 %v1940, 7
    %v1942 = vsub.s32 %v1700, %v1941
    %v1943 = vrot.slane %v1154, %v1942
    %v1944 = vsel %vm1705, %v1943, %v1939
    %v1945 = vlaneseq
    %v1946 = vshrl.u32 %v1945, 7
    %v1947 = vsub.s32 %v1707, %v1946
    %v1948 = vrot.slane %v1157, %v1947
    %v1949 = vsel %vm1712, %v1948, %v1944
    %v1950 = vlaneseq
    %v1951 = vshrl.u32 %v1950, 7
    %v1952 = vsub.s32 %v1714, %v1951
    %v1953 = vrot.slane %v1160, %v1952
    %v1954 = vsel %vm1719, %v1953, %v1949
    %v1955 = vlaneseq
    %v1956 = vshrl.u32 %v1955, 7
    %v1957 = vsub.s32 %v1667, %v1956
    %v1958 = vrot.slane %v1163, %v1957
    %v1959 = vlaneseq
    %v1960 = vshrl.u32 %v1959, 7
    %v1961 = vsub.s32 %v1672, %v1960
    %v1962 = vrot.slane %v1166, %v1961
    %v1963 = vsel %vm1677, %v1962, %v1958
    %v1964 = vlaneseq
    %v1965 = vshrl.u32 %v1964, 7
    %v1966 = vsub.s32 %v1679, %v1965
    %v1967 = vrot.slane %v1169, %v1966
    %v1968 = vsel %vm1684, %v1967, %v1963
    %v1969 = vlaneseq
    %v1970 = vshrl.u32 %v1969, 7
    %v1971 = vsub.s32 %v1686, %v1970
    %v1972 = vrot.slane %v1172, %v1971
    %v1973 = vsel %vm1691, %v1972, %v1968
    %v1974 = vlaneseq
    %v1975 = vshrl.u32 %v1974, 7
    %v1976 = vsub.s32 %v1693, %v1975
    %v1977 = vrot.slane %v1175, %v1976
    %v1978 = vsel %vm1698, %v1977, %v1973
    %v1979 = vlaneseq
    %v1980 = vshrl.u32 %v1979, 7
    %v1981 = vsub.s32 %v1700, %v1980
    %v1982 = vrot.slane %v1178, %v1981
    %v1983 = vsel %vm1705, %v1982, %v1978
    %v1984 = vlaneseq
    %v1985 = vshrl.u32 %v1984, 7
    %v1986 = vsub.s32 %v1707, %v1985
    %v1987 = vrot.slane %v1181, %v1986
    %v1988 = vsel %vm1712, %v1987, %v1983
    %v1989 = vlaneseq
    %v1990 = vshrl.u32 %v1989, 7
    %v1991 = vsub.s32 %v1714, %v1990
    %v1992 = vrot.slane %v1184, %v1991
    %v1993 = vsel %vm1719, %v1992, %v1988
    %vm1994 = vcmask 1041409
    %v1995 = vsel %vm1994, %v1759, %v1720
    %vm1996 = vcmask 1042434
    %v1997 = vsel %vm1996, %v1798, %v1995
    %vm1998 = vcmask 1043459
    %v1999 = vsel %vm1998, %v1837, %v1997
    %vm2000 = vcmask 1044484
    %v2001 = vsel %vm2000, %v1876, %v1999
    %vm2002 = vcmask 1045509
    %v2003 = vsel %vm2002, %v1915, %v2001
    %vm2004 = vcmask 1046534
    %v2005 = vsel %vm2004, %v1954, %v2003
    %vm2006 = vcmask 1047559
    %v2007 = vsel %vm2006, %v1993, %v2005
    %v2009 = vmax.f32 %v1601, %v2007
    %2010 = vst.msk [vmem:[%s3] sm:$0xff] %vm992, %v2009
  $region21: #{prob_attention.2} parent=0 // pred_fallthru
    _
  // Predicated region
  $region22: #{prob_attention.2} parent=0 // pred_check
    _
  $region23: #{prob_attention.2} parent=0 // pred_check_branch
    %2012 = sbr.rel (0) target = $region25
  $region24: #{prob_attention.2} parent=0 // pred_region
    _
  $region25: #{prob_attention.2} parent=0 // pred_fallthru
    _
  // Predicated region
  $region26: #{prob_attention.2} parent=0 // pred_check
    _
  $region27: #{prob_attention.2} parent=0 // pred_check_branch
    %2014 = sbr.rel (0) target = $region29
  $region28: #{prob_attention.2} parent=0 // pred_region
    _
  $region29: #{prob_attention.2} parent=0 // pred_fallthru
    _

// kernel: prob_attention.3
$region0: #{prob_attention.3}
  #allocation0 [shape = 'u32[]', space=smem, size = 0x4, offset = 0x4, fixed_abs, tag = 'smem constant byte address 0x4 - core index']
  #allocation1 [shape = 'u32[144,128]{1,0:T(1,128)}', space=vmem, size = 0x12000, scoped, tag = 'internal scratch']
  %s0 = inlined_call_operand.vmem [shape: bf16[8,25,32], index: 0, kind: input, shape index: {}]
  %s1 = inlined_call_operand.vmem [shape: bf16[8,32,64], index: 1, kind: input, shape index: {}]
  %s2 = inlined_call_operand.vmem [shape: bf16[8,64,32], index: 2, kind: input, shape index: {}]
  %s3 = inlined_call_operand.vmem [shape: s32[8,25,1], index: 3, kind: input, shape index: {}]
  %s4 = inlined_call_operand.vmem [shape: s32[8,1,25], index: 4, kind: input, shape index: {}]
  %s5 = inlined_call_operand.vmem [shape: bf16[8,64,32], index: 5, kind: input, shape index: {}, may-alias: {5,6}]
  %s6 = inlined_call_operand.vmem [shape: bf16[8,64,32], index: 6, kind: output, shape index: {}, may-alias: {5,6}]
  %s7 = sld [smem:[#allocation0]]
  $region34: #{prob_attention.3} parent=0
    _
  %s9 = ssub.s32 1, %s7
  %s10 = scalar_select 0, %s9, %s7
  // Predicated region
  $region2: #{prob_attention.3} parent=0 // pred_check
    _
  $region3: #{prob_attention.3} parent=0 // pred_check_branch
    %12 = sbr.rel (0) target = $region5
  $region4: #{prob_attention.3} parent=0 // pred_region
    _
  $region5: #{prob_attention.3} parent=0 // pred_fallthru
    _
  // Predicated region
  $region6: #{prob_attention.3} parent=0 // pred_check
    _
  $region7: #{prob_attention.3} parent=0 // pred_check_branch
    %14 = sbr.rel (0) target = $region9
  $region8: #{prob_attention.3} parent=0 // pred_region
    _
  $region9: #{prob_attention.3} parent=0 // pred_fallthru
    _
  // Predicated region
  $region10: #{prob_attention.3} parent=0 // pred_check
    _
  $region11: #{prob_attention.3} parent=0 // pred_check_branch
    %16 = sbr.rel (0) target = $region13
  $region12: #{prob_attention.3} parent=0 // pred_region
    _
  $region13: #{prob_attention.3} parent=0 // pred_fallthru
    _
  // Predicated region
  $region14: #{prob_attention.3} parent=0 // pred_check
    _
  $region15: #{prob_attention.3} parent=0 // pred_check_branch
    %18 = sbr.rel (0) target = $region17
  $region16: #{prob_attention.3} parent=0 // pred_region
    _
  $region17: #{prob_attention.3} parent=0 // pred_fallthru
    _
  // Predicated region
  $region18: #{prob_attention.3} parent=0 // pred_check
    _
  $region19: #{prob_attention.3} parent=0 // pred_check_branch
    %20 = sbr.rel (0) target = $region21
  $region20: #{prob_attention.3} parent=0 // pred_region
    _
  $region21: #{prob_attention.3} parent=0 // pred_fallthru
    _
  // Predicated region
  $region22: #{prob_attention.3} parent=0 // pred_check
    _
  $region23: #{prob_attention.3} parent=0 // pred_check_branch
    %22 = sbr.rel (0) target = $region25
  $region24: #{prob_attention.3} parent=0 // pred_region
    _
  $region25: #{prob_attention.3} parent=0 // pred_fallthru
    _
  %v24 = vld [vmem:[%s0] sm:$0xf]
  %v25 = vld [vmem:[%s0 + $0x4] sm:$0xf]
  %v26 = vld [vmem:[%s0 + $0x8] sm:$0xf]
  %v27 = vld [vmem:[%s0 + $0xc] sm:$0x1]
  %v28 = vld [vmem:[%s0 + $0x10] sm:$0xf]
  %v29 = vld [vmem:[%s0 + $0x14] sm:$0xf]
  %v30 = vld [vmem:[%s0 + $0x18] sm:$0xf]
  %v31 = vld [vmem:[%s0 + $0x1c] sm:$0x1]
  %v32 = vld [vmem:[%s0 + $0x20] sm:$0xf]
  %v33 = vld [vmem:[%s0 + $0x24] sm:$0xf]
  %v34 = vld [vmem:[%s0 + $0x28] sm:$0xf]
  %v35 = vld [vmem:[%s0 + $0x2c] sm:$0x1]
  %v36 = vld [vmem:[%s0 + $0x30] sm:$0xf]
  %v37 = vld [vmem:[%s0 + $0x34] sm:$0xf]
  %v38 = vld [vmem:[%s0 + $0x38] sm:$0xf]
  %v39 = vld [vmem:[%s0 + $0x3c] sm:$0x1]
  %v40 = vld [vmem:[%s0 + $0x40] sm:$0xf]
  %v41 = vld [vmem:[%s0 + $0x44] sm:$0xf]
  %v42 = vld [vmem:[%s0 + $0x48] sm:$0xf]
  %v43 = vld [vmem:[%s0 + $0x4c] sm:$0x1]
  %v44 = vld [vmem:[%s0 + $0x50] sm:$0xf]
  %v45 = vld [vmem:[%s0 + $0x54] sm:$0xf]
  %v46 = vld [vmem:[%s0 + $0x58] sm:$0xf]
  %v47 = vld [vmem:[%s0 + $0x5c] sm:$0x1]
  %v48 = vld [vmem:[%s0 + $0x60] sm:$0xf]
  %v49 = vld [vmem:[%s0 + $0x64] sm:$0xf]
  %v50 = vld [vmem:[%s0 + $0x68] sm:$0xf]
  %v51 = vld [vmem:[%s0 + $0x6c] sm:$0x1]
  %v52 = vld [vmem:[%s0 + $0x70] sm:$0xf]
  %v53 = vld [vmem:[%s0 + $0x74] sm:$0xf]
  %v54 = vld [vmem:[%s0 + $0x78] sm:$0xf]
  %v55 = vld [vmem:[%s0 + $0x7c] sm:$0x1]
  %v56 = vld [vmem:[%s1] sm:$0xf]
  %v57 = vld [vmem:[%s1 + $0x4] sm:$0xf]
  %v58 = vld [vmem:[%s1 + $0x8] sm:$0xf]
  %v59 = vld [vmem:[%s1 + $0xc] sm:$0xf]
  %v60 = vld [vmem:[%s1 + $0x10] sm:$0xf]
  %v61 = vld [vmem:[%s1 + $0x14] sm:$0xf]
  %v62 = vld [vmem:[%s1 + $0x18] sm:$0xf]
  %v63 = vld [vmem:[%s1 + $0x1c] sm:$0xf]
  %v64 = vld [vmem:[%s1 + $0x20] sm:$0xf]
  %v65 = vld [vmem:[%s1 + $0x24] sm:$0xf]
  %v66 = vld [vmem:[%s1 + $0x28] sm:$0xf]
  %v67 = vld [vmem:[%s1 + $0x2c] sm:$0xf]
  %v68 = vld [vmem:[%s1 + $0x30] sm:$0xf]
  %v69 = vld [vmem:[%s1 + $0x34] sm:$0xf]
  %v70 = vld [vmem:[%s1 + $0x38] sm:$0xf]
  %v71 = vld [vmem:[%s1 + $0x3c] sm:$0xf]
  %v72 = vld [vmem:[%s1 + $0x40] sm:$0xf]
  %v73 = vld [vmem:[%s1 + $0x44] sm:$0xf]
  %v74 = vld [vmem:[%s1 + $0x48] sm:$0xf]
  %v75 = vld [vmem:[%s1 + $0x4c] sm:$0xf]
  %v76 = vld [vmem:[%s1 + $0x50] sm:$0xf]
  %v77 = vld [vmem:[%s1 + $0x54] sm:$0xf]
  %v78 = vld [vmem:[%s1 + $0x58] sm:$0xf]
  %v79 = vld [vmem:[%s1 + $0x5c] sm:$0xf]
  %v80 = vld [vmem:[%s1 + $0x60] sm:$0xf]
  %v81 = vld [vmem:[%s1 + $0x64] sm:$0xf]
  %v82 = vld [vmem:[%s1 + $0x68] sm:$0xf]
  %v83 = vld [vmem:[%s1 + $0x6c] sm:$0xf]
  %v84 = vld [vmem:[%s1 + $0x70] sm:$0xf]
  %v85 = vld [vmem:[%s1 + $0x74] sm:$0xf]
  %v86 = vld [vmem:[%s1 + $0x78] sm:$0xf]
  %v87 = vld [vmem:[%s1 + $0x7c] sm:$0xf]
  %v88 = vld [vmem:[%s2] sm:$0xf]
  %v89 = vld [vmem:[%s2 + $0x4] sm:$0xf]
  %v90 = vld [vmem:[%s2 + $0x8] sm:$0xf]
  %v91 = vld [vmem:[%s2 + $0xc] sm:$0xf]
  %v92 = vld [vmem:[%s2 + $0x10] sm:$0xf]
  %v93 = vld [vmem:[%s2 + $0x14] sm:$0xf]
  %v94 = vld [vmem:[%s2 + $0x18] sm:$0xf]
  %v95 = vld [vmem:[%s2 + $0x1c] sm:$0xf]
  %v96 = vld [vmem:[%s2 + $0x20] sm:$0xf]
  %v97 = vld [vmem:[%s2 + $0x24] sm:$0xf]
  %v98 = vld [vmem:[%s2 + $0x28] sm:$0xf]
  %v99 = vld [vmem:[%s2 + $0x2c] sm:$0xf]
  %v100 = vld [vmem:[%s2 + $0x30] sm:$0xf]
  %v101 = vld [vmem:[%s2 + $0x34] sm:$0xf]
  %v102 = vld [vmem:[%s2 + $0x38] sm:$0xf]
  %v103 = vld [vmem:[%s2 + $0x3c] sm:$0xf]
  %v104 = vld [vmem:[%s2 + $0x40] sm:$0xf]
  %v105 = vld [vmem:[%s2 + $0x44] sm:$0xf]
  %v106 = vld [vmem:[%s2 + $0x48] sm:$0xf]
  %v107 = vld [vmem:[%s2 + $0x4c] sm:$0xf]
  %v108 = vld [vmem:[%s2 + $0x50] sm:$0xf]
  %v109 = vld [vmem:[%s2 + $0x54] sm:$0xf]
  %v110 = vld [vmem:[%s2 + $0x58] sm:$0xf]
  %v111 = vld [vmem:[%s2 + $0x5c] sm:$0xf]
  %v112 = vld [vmem:[%s2 + $0x60] sm:$0xf]
  %v113 = vld [vmem:[%s2 + $0x64] sm:$0xf]
  %v114 = vld [vmem:[%s2 + $0x68] sm:$0xf]
  %v115 = vld [vmem:[%s2 + $0x6c] sm:$0xf]
  %v116 = vld [vmem:[%s2 + $0x70] sm:$0xf]
  %v117 = vld [vmem:[%s2 + $0x74] sm:$0xf]
  %v118 = vld [vmem:[%s2 + $0x78] sm:$0xf]
  %v119 = vld [vmem:[%s2 + $0x7c] sm:$0xf]
  %v120 = vld [vmem:[%s2 + $0x80] sm:$0xf]
  %v121 = vld [vmem:[%s2 + $0x84] sm:$0xf]
  %v122 = vld [vmem:[%s2 + $0x88] sm:$0xf]
  %v123 = vld [vmem:[%s2 + $0x8c] sm:$0xf]
  %v124 = vld [vmem:[%s2 + $0x90] sm:$0xf]
  %v125 = vld [vmem:[%s2 + $0x94] sm:$0xf]
  %v126 = vld [vmem:[%s2 + $0x98] sm:$0xf]
  %v127 = vld [vmem:[%s2 + $0x9c] sm:$0xf]
  %v128 = vld [vmem:[%s2 + $0xa0] sm:$0xf]
  %v129 = vld [vmem:[%s2 + $0xa4] sm:$0xf]
  %v130 = vld [vmem:[%s2 + $0xa8] sm:$0xf]
  %v131 = vld [vmem:[%s2 + $0xac] sm:$0xf]
  %v132 = vld [vmem:[%s2 + $0xb0] sm:$0xf]
  %v133 = vld [vmem:[%s2 + $0xb4] sm:$0xf]
  %v134 = vld [vmem:[%s2 + $0xb8] sm:$0xf]
  %v135 = vld [vmem:[%s2 + $0xbc] sm:$0xf]
  %v136 = vld [vmem:[%s2 + $0xc0] sm:$0xf]
  %v137 = vld [vmem:[%s2 + $0xc4] sm:$0xf]
  %v138 = vld [vmem:[%s2 + $0xc8] sm:$0xf]
  %v139 = vld [vmem:[%s2 + $0xcc] sm:$0xf]
  %v140 = vld [vmem:[%s2 + $0xd0] sm:$0xf]
  %v141 = vld [vmem:[%s2 + $0xd4] sm:$0xf]
  %v142 = vld [vmem:[%s2 + $0xd8] sm:$0xf]
  %v143 = vld [vmem:[%s2 + $0xdc] sm:$0xf]
  %v144 = vld [vmem:[%s2 + $0xe0] sm:$0xf]
  %v145 = vld [vmem:[%s2 + $0xe4] sm:$0xf]
  %v146 = vld [vmem:[%s2 + $0xe8] sm:$0xf]
  %v147 = vld [vmem:[%s2 + $0xec] sm:$0xf]
  %v148 = vld [vmem:[%s2 + $0xf0] sm:$0xf]
  %v149 = vld [vmem:[%s2 + $0xf4] sm:$0xf]
  %v150 = vld [vmem:[%s2 + $0xf8] sm:$0xf]
  %v151 = vld [vmem:[%s2 + $0xfc] sm:$0xf]
  %v152 = vld [vmem:[%s3] sm:$0xff]
  %v153 = vld [vmem:[%s3 + $0x8] sm:$0xff]
  %v154 = vld [vmem:[%s3 + $0x10] sm:$0xff]
  %v155 = vld [vmem:[%s3 + $0x18] sm:$0x1]
  %v156 = vld [vmem:[%s3 + $0x20] sm:$0xff]
  %v157 = vld [vmem:[%s3 + $0x28] sm:$0xff]
  %v158 = vld [vmem:[%s3 + $0x30] sm:$0xff]
  %v159 = vld [vmem:[%s3 + $0x38] sm:$0x1]
  %v160 = vld [vmem:[%s3 + $0x40] sm:$0xff]
  %v161 = vld [vmem:[%s3 + $0x48] sm:$0xff]
  %v162 = vld [vmem:[%s3 + $0x50] sm:$0xff]
  %v163 = vld [vmem:[%s3 + $0x58] sm:$0x1]
  %v164 = vld [vmem:[%s3 + $0x60] sm:$0xff]
  %v165 = vld [vmem:[%s3 + $0x68] sm:$0xff]
  %v166 = vld [vmem:[%s3 + $0x70] sm:$0xff]
  %v167 = vld [vmem:[%s3 + $0x78] sm:$0x1]
  %v168 = vld [vmem:[%s3 + $0x80] sm:$0xff]
  %v169 = vld [vmem:[%s3 + $0x88] sm:$0xff]
  %v170 = vld [vmem:[%s3 + $0x90] sm:$0xff]
  %v171 = vld [vmem:[%s3 + $0x98] sm:$0x1]
  %v172 = vld [vmem:[%s3 + $0xa0] sm:$0xff]
  %v173 = vld [vmem:[%s3 + $0xa8] sm:$0xff]
  %v174 = vld [vmem:[%s3 + $0xb0] sm:$0xff]
  %v175 = vld [vmem:[%s3 + $0xb8] sm:$0x1]
  %v176 = vld [vmem:[%s3 + $0xc0] sm:$0xff]
  %v177 = vld [vmem:[%s3 + $0xc8] sm:$0xff]
  %v178 = vld [vmem:[%s3 + $0xd0] sm:$0xff]
  %v179 = vld [vmem:[%s3 + $0xd8] sm:$0x1]
  %v180 = vld [vmem:[%s3 + $0xe0] sm:$0xff]
  %v181 = vld [vmem:[%s3 + $0xe8] sm:$0xff]
  %v182 = vld [vmem:[%s3 + $0xf0] sm:$0xff]
  %v183 = vld [vmem:[%s3 + $0xf8] sm:$0x1]
  %v184 = vld [vmem:[%s4] sm:$0x1]
  %v185 = vld [vmem:[%s4 + $0x1] sm:$0x1]
  %v186 = vld [vmem:[%s4 + $0x2] sm:$0x1]
  %v187 = vld [vmem:[%s4 + $0x3] sm:$0x1]
  %v188 = vld [vmem:[%s4 + $0x4] sm:$0x1]
  %v189 = vld [vmem:[%s4 + $0x5] sm:$0x1]
  %v190 = vld [vmem:[%s4 + $0x6] sm:$0x1]
  %v191 = vld [vmem:[%s4 + $0x7] sm:$0x1]
  %v196 = vunpack.c.l.b16 %v24
  %v197 = vunpack.c.l.b16 %v25
  %v198 = vunpack.c.l.b16 %v26
  %v199 = vunpack.c.l.b16 %v27
  %v200 = vpack.c.b16 %v197, %v196
  %v201 = vpack.c.b16 %v199, %v198
  %v206 = vunpack.c.l.b16 %v56
  %v207 = vunpack.c.l.b16 %v57
  %v208 = vunpack.c.l.b16 %v58
  %v209 = vunpack.c.l.b16 %v59
  %v210 = vpack.c.b16 %v207, %v206
  %v211 = vpack.c.b16 %v209, %v208
  %vm214 = vcmask 261120
  %v216 = vsel %vm214, %v200, 0
  %v219 = vsel %vm214, %v201, 0
  %221 = vmatprep.subr.bf16.mxu0 0
  %222 = vmatpush1.bf16.msra.mxu0 0
  %223 = vmatprep.subr.bf16.mxu0 0
  %224 = vmatpush1.bf16.msra.mxu0 0
  %225 = vmatprep.subr.bf16.mxu0 0
  %226 = vmatpush1.bf16.msra.mxu0 0
  %227 = vmatprep.subr.bf16.mxu0 0
  %228 = vmatpush1.bf16.msra.mxu0 0
  %229 = vmatprep.subr.bf16.mxu0 0
  %230 = vmatpush1.bf16.msra.mxu0 0
  %231 = vmatprep.subr.bf16.mxu0 0
  %232 = vmatpush1.bf16.msra.mxu0 0
  %233 = vmatprep.subr.bf16.mxu0 0
  %234 = vmatpush1.bf16.msra.mxu0 %v211
  %235 = vmatprep.subr.bf16.mxu0 0
  %236 = vmatpush1.bf16.msra.mxu0 %v210
  %237 = vmatprep.subr.bf16.mxu0 0
  %238 = vmatpush2.bf16.msra.mxu0 0
  %239 = vmatprep.subr.bf16.mxu0 0
  %240 = vmatpush2.bf16.msra.mxu0 0
  %241 = vmatprep.subr.bf16.mxu0 0
  %242 = vmatpush2.bf16.msra.mxu0 0
  %243 = vmatprep.subr.bf16.mxu0 0
  %244 = vmatpush2.bf16.msra.mxu0 0
  %245 = vmatprep.subr.bf16.mxu0 0
  %246 = vmatpush2.bf16.msra.mxu0 0
  %247 = vmatprep.subr.bf16.mxu0 0
  %248 = vmatpush2.bf16.msra.mxu0 0
  %249 = vmatprep.subr.bf16.mxu0 0
  %250 = vmatpush2.bf16.msra.mxu0 0
  %251 = vmatprep.subr.bf16.mxu0 0
  %252 = vmatpush2.bf16.msra.mxu0 0
  %253 = vmatprep.mubr.bf16.mxu0 0
  %254 = vmatmul.mubr.bf16.gmra.mxu0 %v216
  %v255 = vpop.f32.mrf.mxu0
  %v256 = vadd.f32 0.0, %v255
  %v257 = vpop.f32.mrf.mxu0
  %v258 = vpop.f32.mrf.mxu0
  %v259 = vadd.f32 0.0, %v258
  %v260 = vpop.f32.mrf.mxu0
  %261 = vmatprep.mubr.bf16.mxu0 0
  %262 = vmatmul.mubr.bf16.gmra.mxu0 %v219
  %v263 = vpop.f32.mrf.mxu0
  %v264 = vadd.f32 0.0, %v263
  %v265 = vpop.f32.mrf.mxu0
  %v266 = vpop.f32.mrf.mxu0
  %v267 = vadd.f32 0.0, %v266
  %v268 = vpop.f32.mrf.mxu0
  %269 = vdwg.mxu0
  %v274 = vunpack.c.l.b16 %v28
  %v275 = vunpack.c.l.b16 %v29
  %v276 = vunpack.c.l.b16 %v30
  %v277 = vunpack.c.l.b16 %v31
  %v278 = vpack.c.b16 %v275, %v274
  %v279 = vpack.c.b16 %v277, %v276
  %v284 = vunpack.c.l.b16 %v60
  %v285 = vunpack.c.l.b16 %v61
  %v286 = vunpack.c.l.b16 %v62
  %v287 = vunpack.c.l.b16 %v63
  %v288 = vpack.c.b16 %v285, %v284
  %v289 = vpack.c.b16 %v287, %v286
  %v293 = vsel %vm214, %v278, 0
  %v296 = vsel %vm214, %v279, 0
  %298 = vmatprep.subr.bf16.mxu0 0
  %299 = vmatpush1.bf16.msra.mxu0 0
  %300 = vmatprep.subr.bf16.mxu0 0
  %301 = vmatpush1.bf16.msra.mxu0 0
  %302 = vmatprep.subr.bf16.mxu0 0
  %303 = vmatpush1.bf16.msra.mxu0 0
  %304 = vmatprep.subr.bf16.mxu0 0
  %305 = vmatpush1.bf16.msra.mxu0 0
  %306 = vmatprep.subr.bf16.mxu0 0
  %307 = vmatpush1.bf16.msra.mxu0 0
  %308 = vmatprep.subr.bf16.mxu0 0
  %309 = vmatpush1.bf16.msra.mxu0 0
  %310 = vmatprep.subr.bf16.mxu0 0
  %311 = vmatpush1.bf16.msra.mxu0 %v289
  %312 = vmatprep.subr.bf16.mxu0 0
  %313 = vmatpush1.bf16.msra.mxu0 %v288
  %314 = vmatprep.subr.bf16.mxu0 0
  %315 = vmatpush2.bf16.msra.mxu0 0
  %316 = vmatprep.subr.bf16.mxu0 0
  %317 = vmatpush2.bf16.msra.mxu0 0
  %318 = vmatprep.subr.bf16.mxu0 0
  %319 = vmatpush2.bf16.msra.mxu0 0
  %320 = vmatprep.subr.bf16.mxu0 0
  %321 = vmatpush2.bf16.msra.mxu0 0
  %322 = vmatprep.subr.bf16.mxu0 0
  %323 = vmatpush2.bf16.msra.mxu0 0
  %324 = vmatprep.subr.bf16.mxu0 0
  %325 = vmatpush2.bf16.msra.mxu0 0
  %326 = vmatprep.subr.bf16.mxu0 0
  %327 = vmatpush2.bf16.msra.mxu0 0
  %328 = vmatprep.subr.bf16.mxu0 0
  %329 = vmatpush2.bf16.msra.mxu0 0
  %330 = vmatprep.mubr.bf16.mxu0 0
  %331 = vmatmul.mubr.bf16.gmra.mxu0 %v293
  %v332 = vpop.f32.mrf.mxu0
  %v333 = vadd.f32 0.0, %v332
  %v334 = vpop.f32.mrf.mxu0
  %v335 = vpop.f32.mrf.mxu0
  %v336 = vadd.f32 0.0, %v335
  %v337 = vpop.f32.mrf.mxu0
  %338 = vmatprep.mubr.bf16.mxu0 0
  %339 = vmatmul.mubr.bf16.gmra.mxu0 %v296
  %v340 = vpop.f32.mrf.mxu0
  %v341 = vadd.f32 0.0, %v340
  %v342 = vpop.f32.mrf.mxu0
  %v343 = vpop.f32.mrf.mxu0
  %v344 = vadd.f32 0.0, %v343
  %v345 = vpop.f32.mrf.mxu0
  %346 = vdwg.mxu0
  %v351 = vunpack.c.l.b16 %v32
  %v352 = vunpack.c.l.b16 %v33
  %v353 = vunpack.c.l.b16 %v34
  %v354 = vunpack.c.l.b16 %v35
  %v355 = vpack.c.b16 %v352, %v351
  %v356 = vpack.c.b16 %v354, %v353
  %v361 = vunpack.c.l.b16 %v64
  %v362 = vunpack.c.l.b16 %v65
  %v363 = vunpack.c.l.b16 %v66
  %v364 = vunpack.c.l.b16 %v67
  %v365 = vpack.c.b16 %v362, %v361
  %v366 = vpack.c.b16 %v364, %v363
  %v370 = vsel %vm214, %v355, 0
  %v373 = vsel %vm214, %v356, 0
  %375 = vmatprep.subr.bf16.mxu0 0
  %376 = vmatpush1.bf16.msra.mxu0 0
  %377 = vmatprep.subr.bf16.mxu0 0
  %378 = vmatpush1.bf16.msra.mxu0 0
  %379 = vmatprep.subr.bf16.mxu0 0
  %380 = vmatpush1.bf16.msra.mxu0 0
  %381 = vmatprep.subr.bf16.mxu0 0
  %382 = vmatpush1.bf16.msra.mxu0 0
  %383 = vmatprep.subr.bf16.mxu0 0
  %384 = vmatpush1.bf16.msra.mxu0 0
  %385 = vmatprep.subr.bf16.mxu0 0
  %386 = vmatpush1.bf16.msra.mxu0 0
  %387 = vmatprep.subr.bf16.mxu0 0
  %388 = vmatpush1.bf16.msra.mxu0 %v366
  %389 = vmatprep.subr.bf16.mxu0 0
  %390 = vmatpush1.bf16.msra.mxu0 %v365
  %391 = vmatprep.subr.bf16.mxu0 0
  %392 = vmatpush2.bf16.msra.mxu0 0
  %393 = vmatprep.subr.bf16.mxu0 0
  %394 = vmatpush2.bf16.msra.mxu0 0
  %395 = vmatprep.subr.bf16.mxu0 0
  %396 = vmatpush2.bf16.msra.mxu0 0
  %397 = vmatprep.subr.bf16.mxu0 0
  %398 = vmatpush2.bf16.msra.mxu0 0
  %399 = vmatprep.subr.bf16.mxu0 0
  %400 = vmatpush2.bf16.msra.mxu0 0
  %401 = vmatprep.subr.bf16.mxu0 0
  %402 = vmatpush2.bf16.msra.mxu0 0
  %403 = vmatprep.subr.bf16.mxu0 0
  %404 = vmatpush2.bf16.msra.mxu0 0
  %405 = vmatprep.subr.bf16.mxu0 0
  %406 = vmatpush2.bf16.msra.mxu0 0
  %407 = vmatprep.mubr.bf16.mxu0 0
  %408 = vmatmul.mubr.bf16.gmra.mxu0 %v370
  %v409 = vpop.f32.mrf.mxu0
  %v410 = vadd.f32 0.0, %v409
  %v411 = vpop.f32.mrf.mxu0
  %v412 = vpop.f32.mrf.mxu0
  %v413 = vadd.f32 0.0, %v412
  %v414 = vpop.f32.mrf.mxu0
  %415 = vmatprep.mubr.bf16.mxu0 0
  %416 = vmatmul.mubr.bf16.gmra.mxu0 %v373
  %v417 = vpop.f32.mrf.mxu0
  %v418 = vadd.f32 0.0, %v417
  %v419 = vpop.f32.mrf.mxu0
  %v420 = vpop.f32.mrf.mxu0
  %v421 = vadd.f32 0.0, %v420
  %v422 = vpop.f32.mrf.mxu0
  %423 = vdwg.mxu0
  %v428 = vunpack.c.l.b16 %v36
  %v429 = vunpack.c.l.b16 %v37
  %v430 = vunpack.c.l.b16 %v38
  %v431 = vunpack.c.l.b16 %v39
  %v432 = vpack.c.b16 %v429, %v428
  %v433 = vpack.c.b16 %v431, %v430
  %v438 = vunpack.c.l.b16 %v68
  %v439 = vunpack.c.l.b16 %v69
  %v440 = vunpack.c.l.b16 %v70
  %v441 = vunpack.c.l.b16 %v71
  %v442 = vpack.c.b16 %v439, %v438
  %v443 = vpack.c.b16 %v441, %v440
  %v447 = vsel %vm214, %v432, 0
  %v450 = vsel %vm214, %v433, 0
  %452 = vmatprep.subr.bf16.mxu0 0
  %453 = vmatpush1.bf16.msra.mxu0 0
  %454 = vmatprep.subr.bf16.mxu0 0
  %455 = vmatpush1.bf16.msra.mxu0 0
  %456 = vmatprep.subr.bf16.mxu0 0
  %457 = vmatpush1.bf16.msra.mxu0 0
  %458 = vmatprep.subr.bf16.mxu0 0
  %459 = vmatpush1.bf16.msra.mxu0 0
  %460 = vmatprep.subr.bf16.mxu0 0
  %461 = vmatpush1.bf16.msra.mxu0 0
  %462 = vmatprep.subr.bf16.mxu0 0
  %463 = vmatpush1.bf16.msra.mxu0 0
  %464 = vmatprep.subr.bf16.mxu0 0
  %465 = vmatpush1.bf16.msra.mxu0 %v443
  %466 = vmatprep.subr.bf16.mxu0 0
  %467 = vmatpush1.bf16.msra.mxu0 %v442
  %468 = vmatprep.subr.bf16.mxu0 0
  %469 = vmatpush2.bf16.msra.mxu0 0
  %470 = vmatprep.subr.bf16.mxu0 0
  %471 = vmatpush2.bf16.msra.mxu0 0
  %472 = vmatprep.subr.bf16.mxu0 0
  %473 = vmatpush2.bf16.msra.mxu0 0
  %474 = vmatprep.subr.bf16.mxu0 0
  %475 = vmatpush2.bf16.msra.mxu0 0
  %476 = vmatprep.subr.bf16.mxu0 0
  %477 = vmatpush2.bf16.msra.mxu0 0
  %478 = vmatprep.subr.bf16.mxu0 0
  %479 = vmatpush2.bf16.msra.mxu0 0
  %480 = vmatprep.subr.bf16.mxu0 0
  %481 = vmatpush2.bf16.msra.mxu0 0
  %482 = vmatprep.subr.bf16.mxu0 0
  %483 = vmatpush2.bf16.msra.mxu0 0
  %484 = vmatprep.mubr.bf16.mxu0 0
  %485 = vmatmul.mubr.bf16.gmra.mxu0 %v447
  %v486 = vpop.f32.mrf.mxu0
  %v487 = vadd.f32 0.0, %v486
  %v488 = vpop.f32.mrf.mxu0
  %v489 = vpop.f32.mrf.mxu0
  %v490 = vadd.f32 0.0, %v489
  %v491 = vpop.f32.mrf.mxu0
  %492 = vmatprep.mubr.bf16.mxu0 0
  %493 = vmatmul.mubr.bf16.gmra.mxu0 %v450
  %v494 = vpop.f32.mrf.mxu0
  %v495 = vadd.f32 0.0, %v494
  %v496 = vpop.f32.mrf.mxu0
  %v497 = vpop.f32.mrf.mxu0
  %v498 = vadd.f32 0.0, %v497
  %v499 = vpop.f32.mrf.mxu0
  %500 = vdwg.mxu0
  %v505 = vunpack.c.l.b16 %v40
  %v506 = vunpack.c.l.b16 %v41
  %v507 = vunpack.c.l.b16 %v42
  %v508 = vunpack.c.l.b16 %v43
  %v509 = vpack.c.b16 %v506, %v505
  %v510 = vpack.c.b16 %v508, %v507
  %v515 = vunpack.c.l.b16 %v72
  %v516 = vunpack.c.l.b16 %v73
  %v517 = vunpack.c.l.b16 %v74
  %v518 = vunpack.c.l.b16 %v75
  %v519 = vpack.c.b16 %v516, %v515
  %v520 = vpack.c.b16 %v518, %v517
  %v524 = vsel %vm214, %v509, 0
  %v527 = vsel %vm214, %v510, 0
  %529 = vmatprep.subr.bf16.mxu0 0
  %530 = vmatpush1.bf16.msra.mxu0 0
  %531 = vmatprep.subr.bf16.mxu0 0
  %532 = vmatpush1.bf16.msra.mxu0 0
  %533 = vmatprep.subr.bf16.mxu0 0
  %534 = vmatpush1.bf16.msra.mxu0 0
  %535 = vmatprep.subr.bf16.mxu0 0
  %536 = vmatpush1.bf16.msra.mxu0 0
  %537 = vmatprep.subr.bf16.mxu0 0
  %538 = vmatpush1.bf16.msra.mxu0 0
  %539 = vmatprep.subr.bf16.mxu0 0
  %540 = vmatpush1.bf16.msra.mxu0 0
  %541 = vmatprep.subr.bf16.mxu0 0
  %542 = vmatpush1.bf16.msra.mxu0 %v520
  %543 = vmatprep.subr.bf16.mxu0 0
  %544 = vmatpush1.bf16.msra.mxu0 %v519
  %545 = vmatprep.subr.bf16.mxu0 0
  %546 = vmatpush2.bf16.msra.mxu0 0
  %547 = vmatprep.subr.bf16.mxu0 0
  %548 = vmatpush2.bf16.msra.mxu0 0
  %549 = vmatprep.subr.bf16.mxu0 0
  %550 = vmatpush2.bf16.msra.mxu0 0
  %551 = vmatprep.subr.bf16.mxu0 0
  %552 = vmatpush2.bf16.msra.mxu0 0
  %553 = vmatprep.subr.bf16.mxu0 0
  %554 = vmatpush2.bf16.msra.mxu0 0
  %555 = vmatprep.subr.bf16.mxu0 0
  %556 = vmatpush2.bf16.msra.mxu0 0
  %557 = vmatprep.subr.bf16.mxu0 0
  %558 = vmatpush2.bf16.msra.mxu0 0
  %559 = vmatprep.subr.bf16.mxu0 0
  %560 = vmatpush2.bf16.msra.mxu0 0
  %561 = vmatprep.mubr.bf16.mxu0 0
  %562 = vmatmul.mubr.bf16.gmra.mxu0 %v524
  %v563 = vpop.f32.mrf.mxu0
  %v564 = vadd.f32 0.0, %v563
  %v565 = vpop.f32.mrf.mxu0
  %v566 = vpop.f32.mrf.mxu0
  %v567 = vadd.f32 0.0, %v566
  %v568 = vpop.f32.mrf.mxu0
  %569 = vmatprep.mubr.bf16.mxu0 0
  %570 = vmatmul.mubr.bf16.gmra.mxu0 %v527
  %v571 = vpop.f32.mrf.mxu0
  %v572 = vadd.f32 0.0, %v571
  %v573 = vpop.f32.mrf.mxu0
  %v574 = vpop.f32.mrf.mxu0
  %v575 = vadd.f32 0.0, %v574
  %v576 = vpop.f32.mrf.mxu0
  %577 = vdwg.mxu0
  %v582 = vunpack.c.l.b16 %v44
  %v583 = vunpack.c.l.b16 %v45
  %v584 = vunpack.c.l.b16 %v46
  %v585 = vunpack.c.l.b16 %v47
  %v586 = vpack.c.b16 %v583, %v582
  %v587 = vpack.c.b16 %v585, %v584
  %v592 = vunpack.c.l.b16 %v76
  %v593 = vunpack.c.l.b16 %v77
  %v594 = vunpack.c.l.b16 %v78
  %v595 = vunpack.c.l.b16 %v79
  %v596 = vpack.c.b16 %v593, %v592
  %v597 = vpack.c.b16 %v595, %v594
  %v601 = vsel %vm214, %v586, 0
  %v604 = vsel %vm214, %v587, 0
  %606 = vmatprep.subr.bf16.mxu0 0
  %607 = vmatpush1.bf16.msra.mxu0 0
  %608 = vmatprep.subr.bf16.mxu0 0
  %609 = vmatpush1.bf16.msra.mxu0 0
  %610 = vmatprep.subr.bf16.mxu0 0
  %611 = vmatpush1.bf16.msra.mxu0 0
  %612 = vmatprep.subr.bf16.mxu0 0
  %613 = vmatpush1.bf16.msra.mxu0 0
  %614 = vmatprep.subr.bf16.mxu0 0
  %615 = vmatpush1.bf16.msra.mxu0 0
  %616 = vmatprep.subr.bf16.mxu0 0
  %617 = vmatpush1.bf16.msra.mxu0 0
  %618 = vmatprep.subr.bf16.mxu0 0
  %619 = vmatpush1.bf16.msra.mxu0 %v597
  %620 = vmatprep.subr.bf16.mxu0 0
  %621 = vmatpush1.bf16.msra.mxu0 %v596
  %622 = vmatprep.subr.bf16.mxu0 0
  %623 = vmatpush2.bf16.msra.mxu0 0
  %624 = vmatprep.subr.bf16.mxu0 0
  %625 = vmatpush2.bf16.msra.mxu0 0
  %626 = vmatprep.subr.bf16.mxu0 0
  %627 = vmatpush2.bf16.msra.mxu0 0
  %628 = vmatprep.subr.bf16.mxu0 0
  %629 = vmatpush2.bf16.msra.mxu0 0
  %630 = vmatprep.subr.bf16.mxu0 0
  %631 = vmatpush2.bf16.msra.mxu0 0
  %632 = vmatprep.subr.bf16.mxu0 0
  %633 = vmatpush2.bf16.msra.mxu0 0
  %634 = vmatprep.subr.bf16.mxu0 0
  %635 = vmatpush2.bf16.msra.mxu0 0
  %636 = vmatprep.subr.bf16.mxu0 0
  %637 = vmatpush2.bf16.msra.mxu0 0
  %638 = vmatprep.mubr.bf16.mxu0 0
  %639 = vmatmul.mubr.bf16.gmra.mxu0 %v601
  %v640 = vpop.f32.mrf.mxu0
  %v641 = vadd.f32 0.0, %v640
  %v642 = vpop.f32.mrf.mxu0
  %v643 = vpop.f32.mrf.mxu0
  %v644 = vadd.f32 0.0, %v643
  %v645 = vpop.f32.mrf.mxu0
  %646 = vmatprep.mubr.bf16.mxu0 0
  %647 = vmatmul.mubr.bf16.gmra.mxu0 %v604
  %v648 = vpop.f32.mrf.mxu0
  %v649 = vadd.f32 0.0, %v648
  %v650 = vpop.f32.mrf.mxu0
  %v651 = vpop.f32.mrf.mxu0
  %v652 = vadd.f32 0.0, %v651
  %v653 = vpop.f32.mrf.mxu0
  %654 = vdwg.mxu0
  %v659 = vunpack.c.l.b16 %v48
  %v660 = vunpack.c.l.b16 %v49
  %v661 = vunpack.c.l.b16 %v50
  %v662 = vunpack.c.l.b16 %v51
  %v663 = vpack.c.b16 %v660, %v659
  %v664 = vpack.c.b16 %v662, %v661
  %v669 = vunpack.c.l.b16 %v80
  %v670 = vunpack.c.l.b16 %v81
  %v671 = vunpack.c.l.b16 %v82
  %v672 = vunpack.c.l.b16 %v83
  %v673 = vpack.c.b16 %v670, %v669
  %v674 = vpack.c.b16 %v672, %v671
  %v678 = vsel %vm214, %v663, 0
  %v681 = vsel %vm214, %v664, 0
  %683 = vmatprep.subr.bf16.mxu0 0
  %684 = vmatpush1.bf16.msra.mxu0 0
  %685 = vmatprep.subr.bf16.mxu0 0
  %686 = vmatpush1.bf16.msra.mxu0 0
  %687 = vmatprep.subr.bf16.mxu0 0
  %688 = vmatpush1.bf16.msra.mxu0 0
  %689 = vmatprep.subr.bf16.mxu0 0
  %690 = vmatpush1.bf16.msra.mxu0 0
  %691 = vmatprep.subr.bf16.mxu0 0
  %692 = vmatpush1.bf16.msra.mxu0 0
  %693 = vmatprep.subr.bf16.mxu0 0
  %694 = vmatpush1.bf16.msra.mxu0 0
  %695 = vmatprep.subr.bf16.mxu0 0
  %696 = vmatpush1.bf16.msra.mxu0 %v674
  %697 = vmatprep.subr.bf16.mxu0 0
  %698 = vmatpush1.bf16.msra.mxu0 %v673
  %699 = vmatprep.subr.bf16.mxu0 0
  %700 = vmatpush2.bf16.msra.mxu0 0
  %701 = vmatprep.subr.bf16.mxu0 0
  %702 = vmatpush2.bf16.msra.mxu0 0
  %703 = vmatprep.subr.bf16.mxu0 0
  %704 = vmatpush2.bf16.msra.mxu0 0
  %705 = vmatprep.subr.bf16.mxu0 0
  %706 = vmatpush2.bf16.msra.mxu0 0
  %707 = vmatprep.subr.bf16.mxu0 0
  %708 = vmatpush2.bf16.msra.mxu0 0
  %709 = vmatprep.subr.bf16.mxu0 0
  %710 = vmatpush2.bf16.msra.mxu0 0
  %711 = vmatprep.subr.bf16.mxu0 0
  %712 = vmatpush2.bf16.msra.mxu0 0
  %713 = vmatprep.subr.bf16.mxu0 0
  %714 = vmatpush2.bf16.msra.mxu0 0
  %715 = vmatprep.mubr.bf16.mxu0 0
  %716 = vmatmul.mubr.bf16.gmra.mxu0 %v678
  %v717 = vpop.f32.mrf.mxu0
  %v718 = vadd.f32 0.0, %v717
  %v719 = vpop.f32.mrf.mxu0
  %v720 = vpop.f32.mrf.mxu0
  %v721 = vadd.f32 0.0, %v720
  %v722 = vpop.f32.mrf.mxu0
  %723 = vmatprep.mubr.bf16.mxu0 0
  %724 = vmatmul.mubr.bf16.gmra.mxu0 %v681
  %v725 = vpop.f32.mrf.mxu0
  %v726 = vadd.f32 0.0, %v725
  %v727 = vpop.f32.mrf.mxu0
  %v728 = vpop.f32.mrf.mxu0
  %v729 = vadd.f32 0.0, %v728
  %v730 = vpop.f32.mrf.mxu0
  %731 = vdwg.mxu0
  %v736 = vunpack.c.l.b16 %v52
  %v737 = vunpack.c.l.b16 %v53
  %v738 = vunpack.c.l.b16 %v54
  %v739 = vunpack.c.l.b16 %v55
  %v740 = vpack.c.b16 %v737, %v736
  %v741 = vpack.c.b16 %v739, %v738
  %v746 = vunpack.c.l.b16 %v84
  %v747 = vunpack.c.l.b16 %v85
  %v748 = vunpack.c.l.b16 %v86
  %v749 = vunpack.c.l.b16 %v87
  %v750 = vpack.c.b16 %v747, %v746
  %v751 = vpack.c.b16 %v749, %v748
  %v755 = vsel %vm214, %v740, 0
  %v758 = vsel %vm214, %v741, 0
  %760 = vmatprep.subr.bf16.mxu0 0
  %761 = vmatpush1.bf16.msra.mxu0 0
  %762 = vmatprep.subr.bf16.mxu0 0
  %763 = vmatpush1.bf16.msra.mxu0 0
  %764 = vmatprep.subr.bf16.mxu0 0
  %765 = vmatpush1.bf16.msra.mxu0 0
  %766 = vmatprep.subr.bf16.mxu0 0
  %767 = vmatpush1.bf16.msra.mxu0 0
  %768 = vmatprep.subr.bf16.mxu0 0
  %769 = vmatpush1.bf16.msra.mxu0 0
  %770 = vmatprep.subr.bf16.mxu0 0
  %771 = vmatpush1.bf16.msra.mxu0 0
  %772 = vmatprep.subr.bf16.mxu0 0
  %773 = vmatpush1.bf16.msra.mxu0 %v751
  %774 = vmatprep.subr.bf16.mxu0 0
  %775 = vmatpush1.bf16.msra.mxu0 %v750
  %776 = vmatprep.subr.bf16.mxu0 0
  %777 = vmatpush2.bf16.msra.mxu0 0
  %778 = vmatprep.subr.bf16.mxu0 0
  %779 = vmatpush2.bf16.msra.mxu0 0
  %780 = vmatprep.subr.bf16.mxu0 0
  %781 = vmatpush2.bf16.msra.mxu0 0
  %782 = vmatprep.subr.bf16.mxu0 0
  %783 = vmatpush2.bf16.msra.mxu0 0
  %784 = vmatprep.subr.bf16.mxu0 0
  %785 = vmatpush2.bf16.msra.mxu0 0
  %786 = vmatprep.subr.bf16.mxu0 0
  %787 = vmatpush2.bf16.msra.mxu0 0
  %788 = vmatprep.subr.bf16.mxu0 0
  %789 = vmatpush2.bf16.msra.mxu0 0
  %790 = vmatprep.subr.bf16.mxu0 0
  %791 = vmatpush2.bf16.msra.mxu0 0
  %792 = vmatprep.mubr.bf16.mxu0 0
  %793 = vmatmul.mubr.bf16.gmra.mxu0 %v755
  %v794 = vpop.f32.mrf.mxu0
  %v795 = vadd.f32 0.0, %v794
  %v796 = vpop.f32.mrf.mxu0
  %v797 = vpop.f32.mrf.mxu0
  %v798 = vadd.f32 0.0, %v797
  %v799 = vpop.f32.mrf.mxu0
  %800 = vmatprep.mubr.bf16.mxu0 0
  %801 = vmatmul.mubr.bf16.gmra.mxu0 %v758
  %v802 = vpop.f32.mrf.mxu0
  %v803 = vadd.f32 0.0, %v802
  %v804 = vpop.f32.mrf.mxu0
  %v805 = vpop.f32.mrf.mxu0
  %v806 = vadd.f32 0.0, %v805
  %v807 = vpop.f32.mrf.mxu0
  %808 = vdwg.mxu0
  %v809 = vmul.f32 %v256, 0.17677669
  %v810 = vmul.f32 %v259, 0.17677669
  %v811 = vmul.f32 %v264, 0.17677669
  %v812 = vmul.f32 %v267, 0.17677669
  %v813 = vmul.f32 %v333, 0.17677669
  %v814 = vmul.f32 %v336, 0.17677669
  %v815 = vmul.f32 %v341, 0.17677669
  %v816 = vmul.f32 %v344, 0.17677669
  %v817 = vmul.f32 %v410, 0.17677669
  %v818 = vmul.f32 %v413, 0.17677669
  %v819 = vmul.f32 %v418, 0.17677669
  %v820 = vmul.f32 %v421, 0.17677669
  %v821 = vmul.f32 %v487, 0.17677669
  %v822 = vmul.f32 %v490, 0.17677669
  %v823 = vmul.f32 %v495, 0.17677669
  %v824 = vmul.f32 %v498, 0.17677669
  %v825 = vmul.f32 %v564, 0.17677669
  %v826 = vmul.f32 %v567, 0.17677669
  %v827 = vmul.f32 %v572, 0.17677669
  %v828 = vmul.f32 %v575, 0.17677669
  %v829 = vmul.f32 %v641, 0.17677669
  %v830 = vmul.f32 %v644, 0.17677669
  %v831 = vmul.f32 %v649, 0.17677669
  %v832 = vmul.f32 %v652, 0.17677669
  %v833 = vmul.f32 %v718, 0.17677669
  %v834 = vmul.f32 %v721, 0.17677669
  %v835 = vmul.f32 %v726, 0.17677669
  %v836 = vmul.f32 %v729, 0.17677669
  %v837 = vmul.f32 %v795, 0.17677669
  %v838 = vmul.f32 %v798, 0.17677669
  %v839 = vmul.f32 %v803, 0.17677669
  %v840 = vmul.f32 %v806, 0.17677669
  %v841 = vlaneseq
  %v842 = vand.u32 %v841, 127
  %843 = vset.pattern.permute.xlu0 0
  %844 = vperm.xlu0 %843, %v152
  %v845 = vpop.permute.xlu0 %844
  %846 = vset.pattern.permute.xlu0 0
  %847 = vperm.xlu0 %846, %v153
  %v848 = vpop.permute.xlu0 %847
  %849 = vset.pattern.permute.xlu0 0
  %850 = vperm.xlu0 %849, %v154
  %v851 = vpop.permute.xlu0 %850
  %852 = vset.pattern.permute.xlu0 0
  %853 = vperm.xlu0 %852, %v155
  %v854 = vpop.permute.xlu0 %853
  %855 = vset.pattern.permute.xlu0 0
  %856 = vperm.xlu0 %855, %v156
  %v857 = vpop.permute.xlu0 %856
  %858 = vset.pattern.permute.xlu0 0
  %859 = vperm.xlu0 %858, %v157
  %v860 = vpop.permute.xlu0 %859
  %861 = vset.pattern.permute.xlu0 0
  %862 = vperm.xlu0 %861, %v158
  %v863 = vpop.permute.xlu0 %862
  %864 = vset.pattern.permute.xlu0 0
  %865 = vperm.xlu0 %864, %v159
  %v866 = vpop.permute.xlu0 %865
  %867 = vset.pattern.permute.xlu0 0
  %868 = vperm.xlu0 %867, %v160
  %v869 = vpop.permute.xlu0 %868
  %870 = vset.pattern.permute.xlu0 0
  %871 = vperm.xlu0 %870, %v161
  %v872 = vpop.permute.xlu0 %871
  %873 = vset.pattern.permute.xlu0 0
  %874 = vperm.xlu0 %873, %v162
  %v875 = vpop.permute.xlu0 %874
  %876 = vset.pattern.permute.xlu0 0
  %877 = vperm.xlu0 %876, %v163
  %v878 = vpop.permute.xlu0 %877
  %879 = vset.pattern.permute.xlu0 0
  %880 = vperm.xlu0 %879, %v164
  %v881 = vpop.permute.xlu0 %880
  %882 = vset.pattern.permute.xlu0 0
  %883 = vperm.xlu0 %882, %v165
  %v884 = vpop.permute.xlu0 %883
  %885 = vset.pattern.permute.xlu0 0
  %886 = vperm.xlu0 %885, %v166
  %v887 = vpop.permute.xlu0 %886
  %888 = vset.pattern.permute.xlu0 0
  %889 = vperm.xlu0 %888, %v167
  %v890 = vpop.permute.xlu0 %889
  %891 = vset.pattern.permute.xlu0 0
  %892 = vperm.xlu0 %891, %v168
  %v893 = vpop.permute.xlu0 %892
  %894 = vset.pattern.permute.xlu0 0
  %895 = vperm.xlu0 %894, %v169
  %v896 = vpop.permute.xlu0 %895
  %897 = vset.pattern.permute.xlu0 0
  %898 = vperm.xlu0 %897, %v170
  %v899 = vpop.permute.xlu0 %898
  %900 = vset.pattern.permute.xlu0 0
  %901 = vperm.xlu0 %900, %v171
  %v902 = vpop.permute.xlu0 %901
  %903 = vset.pattern.permute.xlu0 0
  %904 = vperm.xlu0 %903, %v172
  %v905 = vpop.permute.xlu0 %904
  %906 = vset.pattern.permute.xlu0 0
  %907 = vperm.xlu0 %906, %v173
  %v908 = vpop.permute.xlu0 %907
  %909 = vset.pattern.permute.xlu0 0
  %910 = vperm.xlu0 %909, %v174
  %v911 = vpop.permute.xlu0 %910
  %912 = vset.pattern.permute.xlu0 0
  %913 = vperm.xlu0 %912, %v175
  %v914 = vpop.permute.xlu0 %913
  %915 = vset.pattern.permute.xlu0 0
  %916 = vperm.xlu0 %915, %v176
  %v917 = vpop.permute.xlu0 %916
  %918 = vset.pattern.permute.xlu0 0
  %919 = vperm.xlu0 %918, %v177
  %v920 = vpop.permute.xlu0 %919
  %921 = vset.pattern.permute.xlu0 0
  %922 = vperm.xlu0 %921, %v178
  %v923 = vpop.permute.xlu0 %922
  %924 = vset.pattern.permute.xlu0 0
  %925 = vperm.xlu0 %924, %v179
  %v926 = vpop.permute.xlu0 %925
  %927 = vset.pattern.permute.xlu0 0
  %928 = vperm.xlu0 %927, %v180
  %v929 = vpop.permute.xlu0 %928
  %930 = vset.pattern.permute.xlu0 0
  %931 = vperm.xlu0 %930, %v181
  %v932 = vpop.permute.xlu0 %931
  %933 = vset.pattern.permute.xlu0 0
  %934 = vperm.xlu0 %933, %v182
  %v935 = vpop.permute.xlu0 %934
  %936 = vset.pattern.permute.xlu0 0
  %937 = vperm.xlu0 %936, %v183
  %v938 = vpop.permute.xlu0 %937
  %vm939 = vcmp.gt.s32.totalorder %v842, %v845
  %vm940 = vcmp.gt.s32.totalorder %v842, %v848
  %vm941 = vcmp.gt.s32.totalorder %v842, %v851
  %vm942 = vcmp.gt.s32.totalorder %v842, %v854
  %vm943 = vcmp.gt.s32.totalorder %v842, %v857
  %vm944 = vcmp.gt.s32.totalorder %v842, %v860
  %vm945 = vcmp.gt.s32.totalorder %v842, %v863
  %vm946 = vcmp.gt.s32.totalorder %v842, %v866
  %vm947 = vcmp.gt.s32.totalorder %v842, %v869
  %vm948 = vcmp.gt.s32.totalorder %v842, %v872
  %vm949 = vcmp.gt.s32.totalorder %v842, %v875
  %vm950 = vcmp.gt.s32.totalorder %v842, %v878
  %vm951 = vcmp.gt.s32.totalorder %v842, %v881
  %vm952 = vcmp.gt.s32.totalorder %v842, %v884
  %vm953 = vcmp.gt.s32.totalorder %v842, %v887
  %vm954 = vcmp.gt.s32.totalorder %v842, %v890
  %vm955 = vcmp.gt.s32.totalorder %v842, %v893
  %vm956 = vcmp.gt.s32.totalorder %v842, %v896
  %vm957 = vcmp.gt.s32.totalorder %v842, %v899
  %vm958 = vcmp.gt.s32.totalorder %v842, %v902
  %vm959 = vcmp.gt.s32.totalorder %v842, %v905
  %vm960 = vcmp.gt.s32.totalorder %v842, %v908
  %vm961 = vcmp.gt.s32.totalorder %v842, %v911
  %vm962 = vcmp.gt.s32.totalorder %v842, %v914
  %vm963 = vcmp.gt.s32.totalorder %v842, %v917
  %vm964 = vcmp.gt.s32.totalorder %v842, %v920
  %vm965 = vcmp.gt.s32.totalorder %v842, %v923
  %vm966 = vcmp.gt.s32.totalorder %v842, %v926
  %vm967 = vcmp.gt.s32.totalorder %v842, %v929
  %vm968 = vcmp.gt.s32.totalorder %v842, %v932
  %vm969 = vcmp.gt.s32.totalorder %v842, %v935
  %vm970 = vcmp.gt.s32.totalorder %v842, %v938
  %v971 = vsel %vm939, -inf, %v809
  %v972 = vsel %vm940, -inf, %v810
  %v973 = vsel %vm941, -inf, %v811
  %v974 = vsel %vm942, -inf, %v812
  %v975 = vsel %vm943, -inf, %v813
  %v976 = vsel %vm944, -inf, %v814
  %v977 = vsel %vm945, -inf, %v815
  %v978 = vsel %vm946, -inf, %v816
  %v979 = vsel %vm947, -inf, %v817
  %v980 = vsel %vm948, -inf, %v818
  %v981 = vsel %vm949, -inf, %v819
  %v982 = vsel %vm950, -inf, %v820
  %v983 = vsel %vm951, -inf, %v821
  %v984 = vsel %vm952, -inf, %v822
  %v985 = vsel %vm953, -inf, %v823
  %v986 = vsel %vm954, -inf, %v824
  %v987 = vsel %vm955, -inf, %v825
  %v988 = vsel %vm956, -inf, %v826
  %v989 = vsel %vm957, -inf, %v827
  %v990 = vsel %vm958, -inf, %v828
  %v991 = vsel %vm959, -inf, %v829
  %v992 = vsel %vm960, -inf, %v830
  %v993 = vsel %vm961, -inf, %v831
  %v994 = vsel %vm962, -inf, %v832
  %v995 = vsel %vm963, -inf, %v833
  %v996 = vsel %vm964, -inf, %v834
  %v997 = vsel %vm965, -inf, %v835
  %v998 = vsel %vm966, -inf, %v836
  %v999 = vsel %vm967, -inf, %v837
  %v1000 = vsel %vm968, -inf, %v838
  %v1001 = vsel %vm969, -inf, %v839
  %v1002 = vsel %vm970, -inf, %v840
  %vm1003 = vcmask 523264
  %v1004 = vsel %vm1003, %v971, -inf
  %1005 = vmax.xlane.f32.xlu0 %v1004
  %v1006 = vpop.xlane.xlu0 %1005
  %v1007 = vsel %vm1003, %v972, -inf
  %1008 = vmax.xlane.f32.xlu0 %v1007
  %v1009 = vpop.xlane.xlu0 %1008
  %v1010 = vsel %vm1003, %v973, -inf
  %1011 = vmax.xlane.f32.xlu0 %v1010
  %v1012 = vpop.xlane.xlu0 %1011
  %vm1013 = vcmask 516096
  %v1014 = vsel %vm1013, %v974, -inf
  %1015 = vmax.xlane.f32.xlu0 %v1014
  %v1016 = vpop.xlane.xlu0 %1015
  %v1017 = vsel %vm1003, %v975, -inf
  %1018 = vmax.xlane.f32.xlu0 %v1017
  %v1019 = vpop.xlane.xlu0 %1018
  %v1020 = vsel %vm1003, %v976, -inf
  %1021 = vmax.xlane.f32.xlu0 %v1020
  %v1022 = vpop.xlane.xlu0 %1021
  %v1023 = vsel %vm1003, %v977, -inf
  %1024 = vmax.xlane.f32.xlu0 %v1023
  %v1025 = vpop.xlane.xlu0 %1024
  %v1026 = vsel %vm1013, %v978, -inf
  %1027 = vmax.xlane.f32.xlu0 %v1026
  %v1028 = vpop.xlane.xlu0 %1027
  %v1029 = vsel %vm1003, %v979, -inf
  %1030 = vmax.xlane.f32.xlu0 %v1029
  %v1031 = vpop.xlane.xlu0 %1030
  %v1032 = vsel %vm1003, %v980, -inf
  %1033 = vmax.xlane.f32.xlu0 %v1032
  %v1034 = vpop.xlane.xlu0 %1033
  %v1035 = vsel %vm1003, %v981, -inf
  %1036 = vmax.xlane.f32.xlu0 %v1035
  %v1037 = vpop.xlane.xlu0 %1036
  %v1038 = vsel %vm1013, %v982, -inf
  %1039 = vmax.xlane.f32.xlu0 %v1038
  %v1040 = vpop.xlane.xlu0 %1039
  %v1041 = vsel %vm1003, %v983, -inf
  %1042 = vmax.xlane.f32.xlu0 %v1041
  %v1043 = vpop.xlane.xlu0 %1042
  %v1044 = vsel %vm1003, %v984, -inf
  %1045 = vmax.xlane.f32.xlu0 %v1044
  %v1046 = vpop.xlane.xlu0 %1045
  %v1047 = vsel %vm1003, %v985, -inf
  %1048 = vmax.xlane.f32.xlu0 %v1047
  %v1049 = vpop.xlane.xlu0 %1048
  %v1050 = vsel %vm1013, %v986, -inf
  %1051 = vmax.xlane.f32.xlu0 %v1050
  %v1052 = vpop.xlane.xlu0 %1051
  %v1053 = vsel %vm1003, %v987, -inf
  %1054 = vmax.xlane.f32.xlu0 %v1053
  %v1055 = vpop.xlane.xlu0 %1054
  %v1056 = vsel %vm1003, %v988, -inf
  %1057 = vmax.xlane.f32.xlu0 %v1056
  %v1058 = vpop.xlane.xlu0 %1057
  %v1059 = vsel %vm1003, %v989, -inf
  %1060 = vmax.xlane.f32.xlu0 %v1059
  %v1061 = vpop.xlane.xlu0 %1060
  %v1062 = vsel %vm1013, %v990, -inf
  %1063 = vmax.xlane.f32.xlu0 %v1062
  %v1064 = vpop.xlane.xlu0 %1063
  %v1065 = vsel %vm1003, %v991, -inf
  %1066 = vmax.xlane.f32.xlu0 %v1065
  %v1067 = vpop.xlane.xlu0 %1066
  %v1068 = vsel %vm1003, %v992, -inf
  %1069 = vmax.xlane.f32.xlu0 %v1068
  %v1070 = vpop.xlane.xlu0 %1069
  %v1071 = vsel %vm1003, %v993, -inf
  %1072 = vmax.xlane.f32.xlu0 %v1071
  %v1073 = vpop.xlane.xlu0 %1072
  %v1074 = vsel %vm1013, %v994, -inf
  %1075 = vmax.xlane.f32.xlu0 %v1074
  %v1076 = vpop.xlane.xlu0 %1075
  %v1077 = vsel %vm1003, %v995, -inf
  %1078 = vmax.xlane.f32.xlu0 %v1077
  %v1079 = vpop.xlane.xlu0 %1078
  %v1080 = vsel %vm1003, %v996, -inf
  %1081 = vmax.xlane.f32.xlu0 %v1080
  %v1082 = vpop.xlane.xlu0 %1081
  %v1083 = vsel %vm1003, %v997, -inf
  %1084 = vmax.xlane.f32.xlu0 %v1083
  %v1085 = vpop.xlane.xlu0 %1084
  %v1086 = vsel %vm1013, %v998, -inf
  %1087 = vmax.xlane.f32.xlu0 %v1086
  %v1088 = vpop.xlane.xlu0 %1087
  %v1089 = vsel %vm1003, %v999, -inf
  %1090 = vmax.xlane.f32.xlu0 %v1089
  %v1091 = vpop.xlane.xlu0 %1090
  %v1092 = vsel %vm1003, %v1000, -inf
  %1093 = vmax.xlane.f32.xlu0 %v1092
  %v1094 = vpop.xlane.xlu0 %1093
  %v1095 = vsel %vm1003, %v1001, -inf
  %1096 = vmax.xlane.f32.xlu0 %v1095
  %v1097 = vpop.xlane.xlu0 %1096
  %v1098 = vsel %vm1013, %v1002, -inf
  %1099 = vmax.xlane.f32.xlu0 %v1098
  %v1100 = vpop.xlane.xlu0 %1099
  %v1101 = vsub.f32 %v971, %v1006
  %v1102 = vsub.f32 %v972, %v1009
  %v1103 = vsub.f32 %v973, %v1012
  %v1104 = vsub.f32 %v974, %v1016
  %v1105 = vsub.f32 %v975, %v1019
  %v1106 = vsub.f32 %v976, %v1022
  %v1107 = vsub.f32 %v977, %v1025
  %v1108 = vsub.f32 %v978, %v1028
  %v1109 = vsub.f32 %v979, %v1031
  %v1110 = vsub.f32 %v980, %v1034
  %v1111 = vsub.f32 %v981, %v1037
  %v1112 = vsub.f32 %v982, %v1040
  %v1113 = vsub.f32 %v983, %v1043
  %v1114 = vsub.f32 %v984, %v1046
  %v1115 = vsub.f32 %v985, %v1049
  %v1116 = vsub.f32 %v986, %v1052
  %v1117 = vsub.f32 %v987, %v1055
  %v1118 = vsub.f32 %v988, %v1058
  %v1119 = vsub.f32 %v989, %v1061
  %v1120 = vsub.f32 %v990, %v1064
  %v1121 = vsub.f32 %v991, %v1067
  %v1122 = vsub.f32 %v992, %v1070
  %v1123 = vsub.f32 %v993, %v1073
  %v1124 = vsub.f32 %v994, %v1076
  %v1125 = vsub.f32 %v995, %v1079
  %v1126 = vsub.f32 %v996, %v1082
  %v1127 = vsub.f32 %v997, %v1085
  %v1128 = vsub.f32 %v998, %v1088
  %v1129 = vsub.f32 %v999, %v1091
  %v1130 = vsub.f32 %v1000, %v1094
  %v1131 = vsub.f32 %v1001, %v1097
  %v1132 = vsub.f32 %v1002, %v1100
  %v1133 = vmul.f32 %v1101, 1.442695
  %v1134 = vpow.pop %v1133
  %v1135 = vmul.f32 %v1102, 1.442695
  %v1136 = vpow.pop %v1135
  %v1137 = vmul.f32 %v1103, 1.442695
  %v1138 = vpow.pop %v1137
  %v1139 = vmul.f32 %v1104, 1.442695
  %v1140 = vpow.pop %v1139
  %v1141 = vmul.f32 %v1105, 1.442695
  %v1142 = vpow.pop %v1141
  %v1143 = vmul.f32 %v1106, 1.442695
  %v1144 = vpow.pop %v1143
  %v1145 = vmul.f32 %v1107, 1.442695
  %v1146 = vpow.pop %v1145
  %v1147 = vmul.f32 %v1108, 1.442695
  %v1148 = vpow.pop %v1147
  %v1149 = vmul.f32 %v1109, 1.442695
  %v1150 = vpow.pop %v1149
  %v1151 = vmul.f32 %v1110, 1.442695
  %v1152 = vpow.pop %v1151
  %v1153 = vmul.f32 %v1111, 1.442695
  %v1154 = vpow.pop %v1153
  %v1155 = vmul.f32 %v1112, 1.442695
  %v1156 = vpow.pop %v1155
  %v1157 = vmul.f32 %v1113, 1.442695
  %v1158 = vpow.pop %v1157
  %v1159 = vmul.f32 %v1114, 1.442695
  %v1160 = vpow.pop %v1159
  %v1161 = vmul.f32 %v1115, 1.442695
  %v1162 = vpow.pop %v1161
  %v1163 = vmul.f32 %v1116, 1.442695
  %v1164 = vpow.pop %v1163
  %v1165 = vmul.f32 %v1117, 1.442695
  %v1166 = vpow.pop %v1165
  %v1167 = vmul.f32 %v1118, 1.442695
  %v1168 = vpow.pop %v1167
  %v1169 = vmul.f32 %v1119, 1.442695
  %v1170 = vpow.pop %v1169
  %v1171 = vmul.f32 %v1120, 1.442695
  %v1172 = vpow.pop %v1171
  %v1173 = vmul.f32 %v1121, 1.442695
  %v1174 = vpow.pop %v1173
  %v1175 = vmul.f32 %v1122, 1.442695
  %v1176 = vpow.pop %v1175
  %v1177 = vmul.f32 %v1123, 1.442695
  %v1178 = vpow.pop %v1177
  %v1179 = vmul.f32 %v1124, 1.442695
  %v1180 = vpow.pop %v1179
  %v1181 = vmul.f32 %v1125, 1.442695
  %v1182 = vpow.pop %v1181
  %v1183 = vmul.f32 %v1126, 1.442695
  %v1184 = vpow.pop %v1183
  %v1185 = vmul.f32 %v1127, 1.442695
  %v1186 = vpow.pop %v1185
  %v1187 = vmul.f32 %v1128, 1.442695
  %v1188 = vpow.pop %v1187
  %v1189 = vmul.f32 %v1129, 1.442695
  %v1190 = vpow.pop %v1189
  %v1191 = vmul.f32 %v1130, 1.442695
  %v1192 = vpow.pop %v1191
  %v1193 = vmul.f32 %v1131, 1.442695
  %v1194 = vpow.pop %v1193
  %v1195 = vmul.f32 %v1132, 1.442695
  %v1196 = vpow.pop %v1195
  %v1197 = vsel %vm1003, %v1134, 0.0
  %1198 = vadd.xlane.f32.xlu0 %v1197
  %v1199 = vpop.xlane.xlu0 %1198
  %v1200 = vsel %vm1003, %v1136, 0.0
  %1201 = vadd.xlane.f32.xlu0 %v1200
  %v1202 = vpop.xlane.xlu0 %1201
  %v1203 = vsel %vm1003, %v1138, 0.0
  %1204 = vadd.xlane.f32.xlu0 %v1203
  %v1205 = vpop.xlane.xlu0 %1204
  %v1206 = vsel %vm1013, %v1140, 0.0
  %1207 = vadd.xlane.f32.xlu0 %v1206
  %v1208 = vpop.xlane.xlu0 %1207
  %v1209 = vsel %vm1003, %v1142, 0.0
  %1210 = vadd.xlane.f32.xlu0 %v1209
  %v1211 = vpop.xlane.xlu0 %1210
  %v1212 = vsel %vm1003, %v1144, 0.0
  %1213 = vadd.xlane.f32.xlu0 %v1212
  %v1214 = vpop.xlane.xlu0 %1213
  %v1215 = vsel %vm1003, %v1146, 0.0
  %1216 = vadd.xlane.f32.xlu0 %v1215
  %v1217 = vpop.xlane.xlu0 %1216
  %v1218 = vsel %vm1013, %v1148, 0.0
  %1219 = vadd.xlane.f32.xlu0 %v1218
  %v1220 = vpop.xlane.xlu0 %1219
  %v1221 = vsel %vm1003, %v1150, 0.0
  %1222 = vadd.xlane.f32.xlu0 %v1221
  %v1223 = vpop.xlane.xlu0 %1222
  %v1224 = vsel %vm1003, %v1152, 0.0
  %1225 = vadd.xlane.f32.xlu0 %v1224
  %v1226 = vpop.xlane.xlu0 %1225
  %v1227 = vsel %vm1003, %v1154, 0.0
  %1228 = vadd.xlane.f32.xlu0 %v1227
  %v1229 = vpop.xlane.xlu0 %1228
  %v1230 = vsel %vm1013, %v1156, 0.0
  %1231 = vadd.xlane.f32.xlu0 %v1230
  %v1232 = vpop.xlane.xlu0 %1231
  %v1233 = vsel %vm1003, %v1158, 0.0
  %1234 = vadd.xlane.f32.xlu0 %v1233
  %v1235 = vpop.xlane.xlu0 %1234
  %v1236 = vsel %vm1003, %v1160, 0.0
  %1237 = vadd.xlane.f32.xlu0 %v1236
  %v1238 = vpop.xlane.xlu0 %1237
  %v1239 = vsel %vm1003, %v1162, 0.0
  %1240 = vadd.xlane.f32.xlu0 %v1239
  %v1241 = vpop.xlane.xlu0 %1240
  %v1242 = vsel %vm1013, %v1164, 0.0
  %1243 = vadd.xlane.f32.xlu0 %v1242
  %v1244 = vpop.xlane.xlu0 %1243
  %v1245 = vsel %vm1003, %v1166, 0.0
  %1246 = vadd.xlane.f32.xlu0 %v1245
  %v1247 = vpop.xlane.xlu0 %1246
  %v1248 = vsel %vm1003, %v1168, 0.0
  %1249 = vadd.xlane.f32.xlu0 %v1248
  %v1250 = vpop.xlane.xlu0 %1249
  %v1251 = vsel %vm1003, %v1170, 0.0
  %1252 = vadd.xlane.f32.xlu0 %v1251
  %v1253 = vpop.xlane.xlu0 %1252
  %v1254 = vsel %vm1013, %v1172, 0.0
  %1255 = vadd.xlane.f32.xlu0 %v1254
  %v1256 = vpop.xlane.xlu0 %1255
  %v1257 = vsel %vm1003, %v1174, 0.0
  %1258 = vadd.xlane.f32.xlu0 %v1257
  %v1259 = vpop.xlane.xlu0 %1258
  %v1260 = vsel %vm1003, %v1176, 0.0
  %1261 = vadd.xlane.f32.xlu0 %v1260
  %v1262 = vpop.xlane.xlu0 %1261
  %v1263 = vsel %vm1003, %v1178, 0.0
  %1264 = vadd.xlane.f32.xlu0 %v1263
  %v1265 = vpop.xlane.xlu0 %1264
  %v1266 = vsel %vm1013, %v1180, 0.0
  %1267 = vadd.xlane.f32.xlu0 %v1266
  %v1268 = vpop.xlane.xlu0 %1267
  %v1269 = vsel %vm1003, %v1182, 0.0
  %1270 = vadd.xlane.f32.xlu0 %v1269
  %v1271 = vpop.xlane.xlu0 %1270
  %v1272 = vsel %vm1003, %v1184, 0.0
  %1273 = vadd.xlane.f32.xlu0 %v1272
  %v1274 = vpop.xlane.xlu0 %1273
  %v1275 = vsel %vm1003, %v1186, 0.0
  %1276 = vadd.xlane.f32.xlu0 %v1275
  %v1277 = vpop.xlane.xlu0 %1276
  %v1278 = vsel %vm1013, %v1188, 0.0
  %1279 = vadd.xlane.f32.xlu0 %v1278
  %v1280 = vpop.xlane.xlu0 %1279
  %v1281 = vsel %vm1003, %v1190, 0.0
  %1282 = vadd.xlane.f32.xlu0 %v1281
  %v1283 = vpop.xlane.xlu0 %1282
  %v1284 = vsel %vm1003, %v1192, 0.0
  %1285 = vadd.xlane.f32.xlu0 %v1284
  %v1286 = vpop.xlane.xlu0 %1285
  %v1287 = vsel %vm1003, %v1194, 0.0
  %1288 = vadd.xlane.f32.xlu0 %v1287
  %v1289 = vpop.xlane.xlu0 %1288
  %v1290 = vsel %vm1013, %v1196, 0.0
  %1291 = vadd.xlane.f32.xlu0 %v1290
  %v1292 = vpop.xlane.xlu0 %1291
  %v1293 = vrcp.pop %v1199
  %v1294 = vrcp.pop %v1202
  %v1295 = vrcp.pop %v1205
  %v1296 = vrcp.pop %v1208
  %v1297 = vrcp.pop %v1211
  %v1298 = vrcp.pop %v1214
  %v1299 = vrcp.pop %v1217
  %v1300 = vrcp.pop %v1220
  %v1301 = vrcp.pop %v1223
  %v1302 = vrcp.pop %v1226
  %v1303 = vrcp.pop %v1229
  %v1304 = vrcp.pop %v1232
  %v1305 = vrcp.pop %v1235
  %v1306 = vrcp.pop %v1238
  %v1307 = vrcp.pop %v1241
  %v1308 = vrcp.pop %v1244
  %v1309 = vrcp.pop %v1247
  %v1310 = vrcp.pop %v1250
  %v1311 = vrcp.pop %v1253
  %v1312 = vrcp.pop %v1256
  %v1313 = vrcp.pop %v1259
  %v1314 = vrcp.pop %v1262
  %v1315 = vrcp.pop %v1265
  %v1316 = vrcp.pop %v1268
  %v1317 = vrcp.pop %v1271
  %v1318 = vrcp.pop %v1274
  %v1319 = vrcp.pop %v1277
  %v1320 = vrcp.pop %v1280
  %v1321 = vrcp.pop %v1283
  %v1322 = vrcp.pop %v1286
  %v1323 = vrcp.pop %v1289
  %v1324 = vrcp.pop %v1292
  %v1325 = vmul.f32 %v1134, %v1293
  %v1326 = vmul.f32 %v1136, %v1294
  %v1327 = vmul.f32 %v1138, %v1295
  %v1328 = vmul.f32 %v1140, %v1296
  %v1329 = vmul.f32 %v1142, %v1297
  %v1330 = vmul.f32 %v1144, %v1298
  %v1331 = vmul.f32 %v1146, %v1299
  %v1332 = vmul.f32 %v1148, %v1300
  %v1333 = vmul.f32 %v1150, %v1301
  %v1334 = vmul.f32 %v1152, %v1302
  %v1335 = vmul.f32 %v1154, %v1303
  %v1336 = vmul.f32 %v1156, %v1304
  %v1337 = vmul.f32 %v1158, %v1305
  %v1338 = vmul.f32 %v1160, %v1306
  %v1339 = vmul.f32 %v1162, %v1307
  %v1340 = vmul.f32 %v1164, %v1308
  %v1341 = vmul.f32 %v1166, %v1309
  %v1342 = vmul.f32 %v1168, %v1310
  %v1343 = vmul.f32 %v1170, %v1311
  %v1344 = vmul.f32 %v1172, %v1312
  %v1345 = vmul.f32 %v1174, %v1313
  %v1346 = vmul.f32 %v1176, %v1314
  %v1347 = vmul.f32 %v1178, %v1315
  %v1348 = vmul.f32 %v1180, %v1316
  %v1349 = vmul.f32 %v1182, %v1317
  %v1350 = vmul.f32 %v1184, %v1318
  %v1351 = vmul.f32 %v1186, %v1319
  %v1352 = vmul.f32 %v1188, %v1320
  %v1353 = vmul.f32 %v1190, %v1321
  %v1354 = vmul.f32 %v1192, %v1322
  %v1355 = vmul.f32 %v1194, %v1323
  %v1356 = vmul.f32 %v1196, %v1324
  %v1357 = vpack.c.bf16 %v1326, %v1325
  %v1358 = vpack.c.bf16 %v1328, %v1327
  %v1359 = vpack.c.bf16 %v1330, %v1329
  %v1360 = vpack.c.bf16 %v1332, %v1331
  %v1361 = vpack.c.bf16 %v1334, %v1333
  %v1362 = vpack.c.bf16 %v1336, %v1335
  %v1363 = vpack.c.bf16 %v1338, %v1337
  %v1364 = vpack.c.bf16 %v1340, %v1339
  %v1365 = vpack.c.bf16 %v1342, %v1341
  %v1366 = vpack.c.bf16 %v1344, %v1343
  %v1367 = vpack.c.bf16 %v1346, %v1345
  %v1368 = vpack.c.bf16 %v1348, %v1347
  %v1369 = vpack.c.bf16 %v1350, %v1349
  %v1370 = vpack.c.bf16 %v1352, %v1351
  %v1371 = vpack.c.bf16 %v1354, %v1353
  %v1372 = vpack.c.bf16 %v1356, %v1355
  %v1381 = vunpack.c.l.b16 %v88
  %v1382 = vunpack.c.l.b16 %v89
  %v1383 = vunpack.c.l.b16 %v90
  %v1384 = vunpack.c.l.b16 %v91
  %v1385 = vunpack.c.l.b16 %v92
  %v1386 = vunpack.c.l.b16 %v93
  %v1387 = vunpack.c.l.b16 %v94
  %v1388 = vunpack.c.l.b16 %v95
  %v1389 = vpack.c.b16 %v1382, %v1381
  %v1390 = vpack.c.b16 %v1384, %v1383
  %v1391 = vpack.c.b16 %v1386, %v1385
  %v1392 = vpack.c.b16 %v1388, %v1387
  %v1398 = vsel %vm1003, %v1357, 0
  %v1401 = vsel %vm1003, %v1358, 0
  %1403 = vmatprep.subr.bf16.mxu0 0
  %1404 = vmatpush1.bf16.msra.mxu0 0
  %1405 = vmatprep.subr.bf16.mxu0 0
  %1406 = vmatpush1.bf16.msra.mxu0 0
  %1407 = vmatprep.subr.bf16.mxu0 0
  %1408 = vmatpush1.bf16.msra.mxu0 0
  %1409 = vmatprep.subr.bf16.mxu0 0
  %1410 = vmatpush1.bf16.msra.mxu0 0
  %1411 = vmatprep.subr.bf16.mxu0 0
  %1412 = vmatpush1.bf16.msra.mxu0 %v1392
  %1413 = vmatprep.subr.bf16.mxu0 0
  %1414 = vmatpush1.bf16.msra.mxu0 %v1391
  %1415 = vmatprep.subr.bf16.mxu0 0
  %1416 = vmatpush1.bf16.msra.mxu0 %v1390
  %1417 = vmatprep.subr.bf16.mxu0 0
  %1418 = vmatpush1.bf16.msra.mxu0 %v1389
  %1419 = vmatprep.subr.bf16.mxu0 0
  %1420 = vmatpush2.bf16.msra.mxu0 0
  %1421 = vmatprep.subr.bf16.mxu0 0
  %1422 = vmatpush2.bf16.msra.mxu0 0
  %1423 = vmatprep.subr.bf16.mxu0 0
  %1424 = vmatpush2.bf16.msra.mxu0 0
  %1425 = vmatprep.subr.bf16.mxu0 0
  %1426 = vmatpush2.bf16.msra.mxu0 0
  %1427 = vmatprep.subr.bf16.mxu0 0
  %1428 = vmatpush2.bf16.msra.mxu0 0
  %1429 = vmatprep.subr.bf16.mxu0 0
  %1430 = vmatpush2.bf16.msra.mxu0 0
  %1431 = vmatprep.subr.bf16.mxu0 0
  %1432 = vmatpush2.bf16.msra.mxu0 0
  %1433 = vmatprep.subr.bf16.mxu0 0
  %1434 = vmatpush2.bf16.msra.mxu0 0
  %1435 = vmatprep.mubr.bf16.mxu0 0
  %1436 = vmatmul.mubr.bf16.gmra.mxu0 %v1398
  %v1437 = vpop.f32.mrf.mxu0
  %v1438 = vadd.f32 0.0, %v1437
  %v1439 = vpop.f32.mrf.mxu0
  %v1440 = vpop.f32.mrf.mxu0
  %v1441 = vadd.f32 0.0, %v1440
  %v1442 = vpop.f32.mrf.mxu0
  %1443 = vmatprep.mubr.bf16.mxu0 0
  %1444 = vmatmul.mubr.bf16.gmra.mxu0 %v1401
  %v1445 = vpop.f32.mrf.mxu0
  %v1446 = vadd.f32 0.0, %v1445
  %v1447 = vpop.f32.mrf.mxu0
  %v1448 = vpop.f32.mrf.mxu0
  %v1449 = vadd.f32 0.0, %v1448
  %v1450 = vpop.f32.mrf.mxu0
  %1451 = vdwg.mxu0
  %v1460 = vunpack.c.l.b16 %v96
  %v1461 = vunpack.c.l.b16 %v97
  %v1462 = vunpack.c.l.b16 %v98
  %v1463 = vunpack.c.l.b16 %v99
  %v1464 = vunpack.c.l.b16 %v100
  %v1465 = vunpack.c.l.b16 %v101
  %v1466 = vunpack.c.l.b16 %v102
  %v1467 = vunpack.c.l.b16 %v103
  %v1468 = vpack.c.b16 %v1461, %v1460
  %v1469 = vpack.c.b16 %v1463, %v1462
  %v1470 = vpack.c.b16 %v1465, %v1464
  %v1471 = vpack.c.b16 %v1467, %v1466
  %v1477 = vsel %vm1003, %v1359, 0
  %v1480 = vsel %vm1003, %v1360, 0
  %1482 = vmatprep.subr.bf16.mxu0 0
  %1483 = vmatpush1.bf16.msra.mxu0 0
  %1484 = vmatprep.subr.bf16.mxu0 0
  %1485 = vmatpush1.bf16.msra.mxu0 0
  %1486 = vmatprep.subr.bf16.mxu0 0
  %1487 = vmatpush1.bf16.msra.mxu0 0
  %1488 = vmatprep.subr.bf16.mxu0 0
  %1489 = vmatpush1.bf16.msra.mxu0 0
  %1490 = vmatprep.subr.bf16.mxu0 0
  %1491 = vmatpush1.bf16.msra.mxu0 %v1471
  %1492 = vmatprep.subr.bf16.mxu0 0
  %1493 = vmatpush1.bf16.msra.mxu0 %v1470
  %1494 = vmatprep.subr.bf16.mxu0 0
  %1495 = vmatpush1.bf16.msra.mxu0 %v1469
  %1496 = vmatprep.subr.bf16.mxu0 0
  %1497 = vmatpush1.bf16.msra.mxu0 %v1468
  %1498 = vmatprep.subr.bf16.mxu0 0
  %1499 = vmatpush2.bf16.msra.mxu0 0
  %1500 = vmatprep.subr.bf16.mxu0 0
  %1501 = vmatpush2.bf16.msra.mxu0 0
  %1502 = vmatprep.subr.bf16.mxu0 0
  %1503 = vmatpush2.bf16.msra.mxu0 0
  %1504 = vmatprep.subr.bf16.mxu0 0
  %1505 = vmatpush2.bf16.msra.mxu0 0
  %1506 = vmatprep.subr.bf16.mxu0 0
  %1507 = vmatpush2.bf16.msra.mxu0 0
  %1508 = vmatprep.subr.bf16.mxu0 0
  %1509 = vmatpush2.bf16.msra.mxu0 0
  %1510 = vmatprep.subr.bf16.mxu0 0
  %1511 = vmatpush2.bf16.msra.mxu0 0
  %1512 = vmatprep.subr.bf16.mxu0 0
  %1513 = vmatpush2.bf16.msra.mxu0 0
  %1514 = vmatprep.mubr.bf16.mxu0 0
  %1515 = vmatmul.mubr.bf16.gmra.mxu0 %v1477
  %v1516 = vpop.f32.mrf.mxu0
  %v1517 = vadd.f32 0.0, %v1516
  %v1518 = vpop.f32.mrf.mxu0
  %v1519 = vpop.f32.mrf.mxu0
  %v1520 = vadd.f32 0.0, %v1519
  %v1521 = vpop.f32.mrf.mxu0
  %1522 = vmatprep.mubr.bf16.mxu0 0
  %1523 = vmatmul.mubr.bf16.gmra.mxu0 %v1480
  %v1524 = vpop.f32.mrf.mxu0
  %v1525 = vadd.f32 0.0, %v1524
  %v1526 = vpop.f32.mrf.mxu0
  %v1527 = vpop.f32.mrf.mxu0
  %v1528 = vadd.f32 0.0, %v1527
  %v1529 = vpop.f32.mrf.mxu0
  %1530 = vdwg.mxu0
  %v1539 = vunpack.c.l.b16 %v104
  %v1540 = vunpack.c.l.b16 %v105
  %v1541 = vunpack.c.l.b16 %v106
  %v1542 = vunpack.c.l.b16 %v107
  %v1543 = vunpack.c.l.b16 %v108
  %v1544 = vunpack.c.l.b16 %v109
  %v1545 = vunpack.c.l.b16 %v110
  %v1546 = vunpack.c.l.b16 %v111
  %v1547 = vpack.c.b16 %v1540, %v1539
  %v1548 = vpack.c.b16 %v1542, %v1541
  %v1549 = vpack.c.b16 %v1544, %v1543
  %v1550 = vpack.c.b16 %v1546, %v1545
  %v1556 = vsel %vm1003, %v1361, 0
  %v1559 = vsel %vm1003, %v1362, 0
  %1561 = vmatprep.subr.bf16.mxu0 0
  %1562 = vmatpush1.bf16.msra.mxu0 0
  %1563 = vmatprep.subr.bf16.mxu0 0
  %1564 = vmatpush1.bf16.msra.mxu0 0
  %1565 = vmatprep.subr.bf16.mxu0 0
  %1566 = vmatpush1.bf16.msra.mxu0 0
  %1567 = vmatprep.subr.bf16.mxu0 0
  %1568 = vmatpush1.bf16.msra.mxu0 0
  %1569 = vmatprep.subr.bf16.mxu0 0
  %1570 = vmatpush1.bf16.msra.mxu0 %v1550
  %1571 = vmatprep.subr.bf16.mxu0 0
  %1572 = vmatpush1.bf16.msra.mxu0 %v1549
  %1573 = vmatprep.subr.bf16.mxu0 0
  %1574 = vmatpush1.bf16.msra.mxu0 %v1548
  %1575 = vmatprep.subr.bf16.mxu0 0
  %1576 = vmatpush1.bf16.msra.mxu0 %v1547
  %1577 = vmatprep.subr.bf16.mxu0 0
  %1578 = vmatpush2.bf16.msra.mxu0 0
  %1579 = vmatprep.subr.bf16.mxu0 0
  %1580 = vmatpush2.bf16.msra.mxu0 0
  %1581 = vmatprep.subr.bf16.mxu0 0
  %1582 = vmatpush2.bf16.msra.mxu0 0
  %1583 = vmatprep.subr.bf16.mxu0 0
  %1584 = vmatpush2.bf16.msra.mxu0 0
  %1585 = vmatprep.subr.bf16.mxu0 0
  %1586 = vmatpush2.bf16.msra.mxu0 0
  %1587 = vmatprep.subr.bf16.mxu0 0
  %1588 = vmatpush2.bf16.msra.mxu0 0
  %1589 = vmatprep.subr.bf16.mxu0 0
  %1590 = vmatpush2.bf16.msra.mxu0 0
  %1591 = vmatprep.subr.bf16.mxu0 0
  %1592 = vmatpush2.bf16.msra.mxu0 0
  %1593 = vmatprep.mubr.bf16.mxu0 0
  %1594 = vmatmul.mubr.bf16.gmra.mxu0 %v1556
  %v1595 = vpop.f32.mrf.mxu0
  %v1596 = vadd.f32 0.0, %v1595
  %v1597 = vpop.f32.mrf.mxu0
  %v1598 = vpop.f32.mrf.mxu0
  %v1599 = vadd.f32 0.0, %v1598
  %v1600 = vpop.f32.mrf.mxu0
  %1601 = vmatprep.mubr.bf16.mxu0 0
  %1602 = vmatmul.mubr.bf16.gmra.mxu0 %v1559
  %v1603 = vpop.f32.mrf.mxu0
  %v1604 = vadd.f32 0.0, %v1603
  %v1605 = vpop.f32.mrf.mxu0
  %v1606 = vpop.f32.mrf.mxu0
  %v1607 = vadd.f32 0.0, %v1606
  %v1608 = vpop.f32.mrf.mxu0
  %1609 = vdwg.mxu0
  %v1618 = vunpack.c.l.b16 %v112
  %v1619 = vunpack.c.l.b16 %v113
  %v1620 = vunpack.c.l.b16 %v114
  %v1621 = vunpack.c.l.b16 %v115
  %v1622 = vunpack.c.l.b16 %v116
  %v1623 = vunpack.c.l.b16 %v117
  %v1624 = vunpack.c.l.b16 %v118
  %v1625 = vunpack.c.l.b16 %v119
  %v1626 = vpack.c.b16 %v1619, %v1618
  %v1627 = vpack.c.b16 %v1621, %v1620
  %v1628 = vpack.c.b16 %v1623, %v1622
  %v1629 = vpack.c.b16 %v1625, %v1624
  %v1635 = vsel %vm1003, %v1363, 0
  %v1638 = vsel %vm1003, %v1364, 0
  %1640 = vmatprep.subr.bf16.mxu0 0
  %1641 = vmatpush1.bf16.msra.mxu0 0
  %1642 = vmatprep.subr.bf16.mxu0 0
  %1643 = vmatpush1.bf16.msra.mxu0 0
  %1644 = vmatprep.subr.bf16.mxu0 0
  %1645 = vmatpush1.bf16.msra.mxu0 0
  %1646 = vmatprep.subr.bf16.mxu0 0
  %1647 = vmatpush1.bf16.msra.mxu0 0
  %1648 = vmatprep.subr.bf16.mxu0 0
  %1649 = vmatpush1.bf16.msra.mxu0 %v1629
  %1650 = vmatprep.subr.bf16.mxu0 0
  %1651 = vmatpush1.bf16.msra.mxu0 %v1628
  %1652 = vmatprep.subr.bf16.mxu0 0
  %1653 = vmatpush1.bf16.msra.mxu0 %v1627
  %1654 = vmatprep.subr.bf16.mxu0 0
  %1655 = vmatpush1.bf16.msra.mxu0 %v1626
  %1656 = vmatprep.subr.bf16.mxu0 0
  %1657 = vmatpush2.bf16.msra.mxu0 0
  %1658 = vmatprep.subr.bf16.mxu0 0
  %1659 = vmatpush2.bf16.msra.mxu0 0
  %1660 = vmatprep.subr.bf16.mxu0 0
  %1661 = vmatpush2.bf16.msra.mxu0 0
  %1662 = vmatprep.subr.bf16.mxu0 0
  %1663 = vmatpush2.bf16.msra.mxu0 0
  %1664 = vmatprep.subr.bf16.mxu0 0
  %1665 = vmatpush2.bf16.msra.mxu0 0
  %1666 = vmatprep.subr.bf16.mxu0 0
  %1667 = vmatpush2.bf16.msra.mxu0 0
  %1668 = vmatprep.subr.bf16.mxu0 0
  %1669 = vmatpush2.bf16.msra.mxu0 0
  %1670 = vmatprep.subr.bf16.mxu0 0
  %1671 = vmatpush2.bf16.msra.mxu0 0
  %1672 = vmatprep.mubr.bf16.mxu0 0
  %1673 = vmatmul.mubr.bf16.gmra.mxu0 %v1635
  %v1674 = vpop.f32.mrf.mxu0
  %v1675 = vadd.f32 0.0, %v1674
  %v1676 = vpop.f32.mrf.mxu0
  %v1677 = vpop.f32.mrf.mxu0
  %v1678 = vadd.f32 0.0, %v1677
  %v1679 = vpop.f32.mrf.mxu0
  %1680 = vmatprep.mubr.bf16.mxu0 0
  %1681 = vmatmul.mubr.bf16.gmra.mxu0 %v1638
  %v1682 = vpop.f32.mrf.mxu0
  %v1683 = vadd.f32 0.0, %v1682
  %v1684 = vpop.f32.mrf.mxu0
  %v1685 = vpop.f32.mrf.mxu0
  %v1686 = vadd.f32 0.0, %v1685
  %v1687 = vpop.f32.mrf.mxu0
  %1688 = vdwg.mxu0
  %v1697 = vunpack.c.l.b16 %v120
  %v1698 = vunpack.c.l.b16 %v121
  %v1699 = vunpack.c.l.b16 %v122
  %v1700 = vunpack.c.l.b16 %v123
  %v1701 = vunpack.c.l.b16 %v124
  %v1702 = vunpack.c.l.b16 %v125
  %v1703 = vunpack.c.l.b16 %v126
  %v1704 = vunpack.c.l.b16 %v127
  %v1705 = vpack.c.b16 %v1698, %v1697
  %v1706 = vpack.c.b16 %v1700, %v1699
  %v1707 = vpack.c.b16 %v1702, %v1701
  %v1708 = vpack.c.b16 %v1704, %v1703
  %v1714 = vsel %vm1003, %v1365, 0
  %v1717 = vsel %vm1003, %v1366, 0
  %1719 = vmatprep.subr.bf16.mxu0 0
  %1720 = vmatpush1.bf16.msra.mxu0 0
  %1721 = vmatprep.subr.bf16.mxu0 0
  %1722 = vmatpush1.bf16.msra.mxu0 0
  %1723 = vmatprep.subr.bf16.mxu0 0
  %1724 = vmatpush1.bf16.msra.mxu0 0
  %1725 = vmatprep.subr.bf16.mxu0 0
  %1726 = vmatpush1.bf16.msra.mxu0 0
  %1727 = vmatprep.subr.bf16.mxu0 0
  %1728 = vmatpush1.bf16.msra.mxu0 %v1708
  %1729 = vmatprep.subr.bf16.mxu0 0
  %1730 = vmatpush1.bf16.msra.mxu0 %v1707
  %1731 = vmatprep.subr.bf16.mxu0 0
  %1732 = vmatpush1.bf16.msra.mxu0 %v1706
  %1733 = vmatprep.subr.bf16.mxu0 0
  %1734 = vmatpush1.bf16.msra.mxu0 %v1705
  %1735 = vmatprep.subr.bf16.mxu0 0
  %1736 = vmatpush2.bf16.msra.mxu0 0
  %1737 = vmatprep.subr.bf16.mxu0 0
  %1738 = vmatpush2.bf16.msra.mxu0 0
  %1739 = vmatprep.subr.bf16.mxu0 0
  %1740 = vmatpush2.bf16.msra.mxu0 0
  %1741 = vmatprep.subr.bf16.mxu0 0
  %1742 = vmatpush2.bf16.msra.mxu0 0
  %1743 = vmatprep.subr.bf16.mxu0 0
  %1744 = vmatpush2.bf16.msra.mxu0 0
  %1745 = vmatprep.subr.bf16.mxu0 0
  %1746 = vmatpush2.bf16.msra.mxu0 0
  %1747 = vmatprep.subr.bf16.mxu0 0
  %1748 = vmatpush2.bf16.msra.mxu0 0
  %1749 = vmatprep.subr.bf16.mxu0 0
  %1750 = vmatpush2.bf16.msra.mxu0 0
  %1751 = vmatprep.mubr.bf16.mxu0 0
  %1752 = vmatmul.mubr.bf16.gmra.mxu0 %v1714
  %v1753 = vpop.f32.mrf.mxu0
  %v1754 = vadd.f32 0.0, %v1753
  %v1755 = vpop.f32.mrf.mxu0
  %v1756 = vpop.f32.mrf.mxu0
  %v1757 = vadd.f32 0.0, %v1756
  %v1758 = vpop.f32.mrf.mxu0
  %1759 = vmatprep.mubr.bf16.mxu0 0
  %1760 = vmatmul.mubr.bf16.gmra.mxu0 %v1717
  %v1761 = vpop.f32.mrf.mxu0
  %v1762 = vadd.f32 0.0, %v1761
  %v1763 = vpop.f32.mrf.mxu0
  %v1764 = vpop.f32.mrf.mxu0
  %v1765 = vadd.f32 0.0, %v1764
  %v1766 = vpop.f32.mrf.mxu0
  %1767 = vdwg.mxu0
  %v1776 = vunpack.c.l.b16 %v128
  %v1777 = vunpack.c.l.b16 %v129
  %v1778 = vunpack.c.l.b16 %v130
  %v1779 = vunpack.c.l.b16 %v131
  %v1780 = vunpack.c.l.b16 %v132
  %v1781 = vunpack.c.l.b16 %v133
  %v1782 = vunpack.c.l.b16 %v134
  %v1783 = vunpack.c.l.b16 %v135
  %v1784 = vpack.c.b16 %v1777, %v1776
  %v1785 = vpack.c.b16 %v1779, %v1778
  %v1786 = vpack.c.b16 %v1781, %v1780
  %v1787 = vpack.c.b16 %v1783, %v1782
  %v1793 = vsel %vm1003, %v1367, 0
  %v1796 = vsel %vm1003, %v1368, 0
  %1798 = vmatprep.subr.bf16.mxu0 0
  %1799 = vmatpush1.bf16.msra.mxu0 0
  %1800 = vmatprep.subr.bf16.mxu0 0
  %1801 = vmatpush1.bf16.msra.mxu0 0
  %1802 = vmatprep.subr.bf16.mxu0 0
  %1803 = vmatpush1.bf16.msra.mxu0 0
  %1804 = vmatprep.subr.bf16.mxu0 0
  %1805 = vmatpush1.bf16.msra.mxu0 0
  %1806 = vmatprep.subr.bf16.mxu0 0
  %1807 = vmatpush1.bf16.msra.mxu0 %v1787
  %1808 = vmatprep.subr.bf16.mxu0 0
  %1809 = vmatpush1.bf16.msra.mxu0 %v1786
  %1810 = vmatprep.subr.bf16.mxu0 0
  %1811 = vmatpush1.bf16.msra.mxu0 %v1785
  %1812 = vmatprep.subr.bf16.mxu0 0
  %1813 = vmatpush1.bf16.msra.mxu0 %v1784
  %1814 = vmatprep.subr.bf16.mxu0 0
  %1815 = vmatpush2.bf16.msra.mxu0 0
  %1816 = vmatprep.subr.bf16.mxu0 0
  %1817 = vmatpush2.bf16.msra.mxu0 0
  %1818 = vmatprep.subr.bf16.mxu0 0
  %1819 = vmatpush2.bf16.msra.mxu0 0
  %1820 = vmatprep.subr.bf16.mxu0 0
  %1821 = vmatpush2.bf16.msra.mxu0 0
  %1822 = vmatprep.subr.bf16.mxu0 0
  %1823 = vmatpush2.bf16.msra.mxu0 0
  %1824 = vmatprep.subr.bf16.mxu0 0
  %1825 = vmatpush2.bf16.msra.mxu0 0
  %1826 = vmatprep.subr.bf16.mxu0 0
  %1827 = vmatpush2.bf16.msra.mxu0 0
  %1828 = vmatprep.subr.bf16.mxu0 0
  %1829 = vmatpush2.bf16.msra.mxu0 0
  %1830 = vmatprep.mubr.bf16.mxu0 0
  %1831 = vmatmul.mubr.bf16.gmra.mxu0 %v1793
  %v1832 = vpop.f32.mrf.mxu0
  %v1833 = vadd.f32 0.0, %v1832
  %v1834 = vpop.f32.mrf.mxu0
  %v1835 = vpop.f32.mrf.mxu0
  %v1836 = vadd.f32 0.0, %v1835
  %v1837 = vpop.f32.mrf.mxu0
  %1838 = vmatprep.mubr.bf16.mxu0 0
  %1839 = vmatmul.mubr.bf16.gmra.mxu0 %v1796
  %v1840 = vpop.f32.mrf.mxu0
  %v1841 = vadd.f32 0.0, %v1840
  %v1842 = vpop.f32.mrf.mxu0
  %v1843 = vpop.f32.mrf.mxu0
  %v1844 = vadd.f32 0.0, %v1843
  %v1845 = vpop.f32.mrf.mxu0
  %1846 = vdwg.mxu0
  %v1855 = vunpack.c.l.b16 %v136
  %v1856 = vunpack.c.l.b16 %v137
  %v1857 = vunpack.c.l.b16 %v138
  %v1858 = vunpack.c.l.b16 %v139
  %v1859 = vunpack.c.l.b16 %v140
  %v1860 = vunpack.c.l.b16 %v141
  %v1861 = vunpack.c.l.b16 %v142
  %v1862 = vunpack.c.l.b16 %v143
  %v1863 = vpack.c.b16 %v1856, %v1855
  %v1864 = vpack.c.b16 %v1858, %v1857
  %v1865 = vpack.c.b16 %v1860, %v1859
  %v1866 = vpack.c.b16 %v1862, %v1861
  %v1872 = vsel %vm1003, %v1369, 0
  %v1875 = vsel %vm1003, %v1370, 0
  %1877 = vmatprep.subr.bf16.mxu0 0
  %1878 = vmatpush1.bf16.msra.mxu0 0
  %1879 = vmatprep.subr.bf16.mxu0 0
  %1880 = vmatpush1.bf16.msra.mxu0 0
  %1881 = vmatprep.subr.bf16.mxu0 0
  %1882 = vmatpush1.bf16.msra.mxu0 0
  %1883 = vmatprep.subr.bf16.mxu0 0
  %1884 = vmatpush1.bf16.msra.mxu0 0
  %1885 = vmatprep.subr.bf16.mxu0 0
  %1886 = vmatpush1.bf16.msra.mxu0 %v1866
  %1887 = vmatprep.subr.bf16.mxu0 0
  %1888 = vmatpush1.bf16.msra.mxu0 %v1865
  %1889 = vmatprep.subr.bf16.mxu0 0
  %1890 = vmatpush1.bf16.msra.mxu0 %v1864
  %1891 = vmatprep.subr.bf16.mxu0 0
  %1892 = vmatpush1.bf16.msra.mxu0 %v1863
  %1893 = vmatprep.subr.bf16.mxu0 0
  %1894 = vmatpush2.bf16.msra.mxu0 0
  %1895 = vmatprep.subr.bf16.mxu0 0
  %1896 = vmatpush2.bf16.msra.mxu0 0
  %1897 = vmatprep.subr.bf16.mxu0 0
  %1898 = vmatpush2.bf16.msra.mxu0 0
  %1899 = vmatprep.subr.bf16.mxu0 0
  %1900 = vmatpush2.bf16.msra.mxu0 0
  %1901 = vmatprep.subr.bf16.mxu0 0
  %1902 = vmatpush2.bf16.msra.mxu0 0
  %1903 = vmatprep.subr.bf16.mxu0 0
  %1904 = vmatpush2.bf16.msra.mxu0 0
  %1905 = vmatprep.subr.bf16.mxu0 0
  %1906 = vmatpush2.bf16.msra.mxu0 0
  %1907 = vmatprep.subr.bf16.mxu0 0
  %1908 = vmatpush2.bf16.msra.mxu0 0
  %1909 = vmatprep.mubr.bf16.mxu0 0
  %1910 = vmatmul.mubr.bf16.gmra.mxu0 %v1872
  %v1911 = vpop.f32.mrf.mxu0
  %v1912 = vadd.f32 0.0, %v1911
  %v1913 = vpop.f32.mrf.mxu0
  %v1914 = vpop.f32.mrf.mxu0
  %v1915 = vadd.f32 0.0, %v1914
  %v1916 = vpop.f32.mrf.mxu0
  %1917 = vmatprep.mubr.bf16.mxu0 0
  %1918 = vmatmul.mubr.bf16.gmra.mxu0 %v1875
  %v1919 = vpop.f32.mrf.mxu0
  %v1920 = vadd.f32 0.0, %v1919
  %v1921 = vpop.f32.mrf.mxu0
  %v1922 = vpop.f32.mrf.mxu0
  %v1923 = vadd.f32 0.0, %v1922
  %v1924 = vpop.f32.mrf.mxu0
  %1925 = vdwg.mxu0
  %v1934 = vunpack.c.l.b16 %v144
  %v1935 = vunpack.c.l.b16 %v145
  %v1936 = vunpack.c.l.b16 %v146
  %v1937 = vunpack.c.l.b16 %v147
  %v1938 = vunpack.c.l.b16 %v148
  %v1939 = vunpack.c.l.b16 %v149
  %v1940 = vunpack.c.l.b16 %v150
  %v1941 = vunpack.c.l.b16 %v151
  %v1942 = vpack.c.b16 %v1935, %v1934
  %v1943 = vpack.c.b16 %v1937, %v1936
  %v1944 = vpack.c.b16 %v1939, %v1938
  %v1945 = vpack.c.b16 %v1941, %v1940
  %v1951 = vsel %vm1003, %v1371, 0
  %v1954 = vsel %vm1003, %v1372, 0
  %1956 = vmatprep.subr.bf16.mxu0 0
  %1957 = vmatpush1.bf16.msra.mxu0 0
  %1958 = vmatprep.subr.bf16.mxu0 0
  %1959 = vmatpush1.bf16.msra.mxu0 0
  %1960 = vmatprep.subr.bf16.mxu0 0
  %1961 = vmatpush1.bf16.msra.mxu0 0
  %1962 = vmatprep.subr.bf16.mxu0 0
  %1963 = vmatpush1.bf16.msra.mxu0 0
  %1964 = vmatprep.subr.bf16.mxu0 0
  %1965 = vmatpush1.bf16.msra.mxu0 %v1945
  %1966 = vmatprep.subr.bf16.mxu0 0
  %1967 = vmatpush1.bf16.msra.mxu0 %v1944
  %1968 = vmatprep.subr.bf16.mxu0 0
  %1969 = vmatpush1.bf16.msra.mxu0 %v1943
  %1970 = vmatprep.subr.bf16.mxu0 0
  %1971 = vmatpush1.bf16.msra.mxu0 %v1942
  %1972 = vmatprep.subr.bf16.mxu0 0
  %1973 = vmatpush2.bf16.msra.mxu0 0
  %1974 = vmatprep.subr.bf16.mxu0 0
  %1975 = vmatpush2.bf16.msra.mxu0 0
  %1976 = vmatprep.subr.bf16.mxu0 0
  %1977 = vmatpush2.bf16.msra.mxu0 0
  %1978 = vmatprep.subr.bf16.mxu0 0
  %1979 = vmatpush2.bf16.msra.mxu0 0
  %1980 = vmatprep.subr.bf16.mxu0 0
  %1981 = vmatpush2.bf16.msra.mxu0 0
  %1982 = vmatprep.subr.bf16.mxu0 0
  %1983 = vmatpush2.bf16.msra.mxu0 0
  %1984 = vmatprep.subr.bf16.mxu0 0
  %1985 = vmatpush2.bf16.msra.mxu0 0
  %1986 = vmatprep.subr.bf16.mxu0 0
  %1987 = vmatpush2.bf16.msra.mxu0 0
  %1988 = vmatprep.mubr.bf16.mxu0 0
  %1989 = vmatmul.mubr.bf16.gmra.mxu0 %v1951
  %v1990 = vpop.f32.mrf.mxu0
  %v1991 = vadd.f32 0.0, %v1990
  %v1992 = vpop.f32.mrf.mxu0
  %v1993 = vpop.f32.mrf.mxu0
  %v1994 = vadd.f32 0.0, %v1993
  %v1995 = vpop.f32.mrf.mxu0
  %1996 = vmatprep.mubr.bf16.mxu0 0
  %1997 = vmatmul.mubr.bf16.gmra.mxu0 %v1954
  %v1998 = vpop.f32.mrf.mxu0
  %v1999 = vadd.f32 0.0, %v1998
  %v2000 = vpop.f32.mrf.mxu0
  %v2001 = vpop.f32.mrf.mxu0
  %v2002 = vadd.f32 0.0, %v2001
  %v2003 = vpop.f32.mrf.mxu0
  %2004 = vdwg.mxu0
  %v2005 = vlaneseq
  %v2006 = vshrl.u32 %v2005, 7
  %v2007 = vadd.s32 %v2006, 8
  %v2008 = vadd.s32 %v2006, 16
  %v2009 = vadd.s32 %v2006, 24
  %v2010 = vadd.s32 %v2006, 32
  %v2011 = vadd.s32 %v2006, 40
  %v2012 = vadd.s32 %v2006, 48
  %v2013 = vadd.s32 %v2006, 56
  %v2014 = vlaneseq
  %v2015 = vshrl.u32 %v2014, 7
  %v2016 = vsub.s32 0, %v2015
  %v2017 = vrot.slane %v184, %v2016
  %v2018 = vlaneseq
  %v2019 = vshrl.u32 %v2018, 7
  %v2020 = vsub.s32 0, %v2019
  %v2021 = vrot.slane %v185, %v2020
  %v2022 = vlaneseq
  %v2023 = vshrl.u32 %v2022, 7
  %v2024 = vsub.s32 0, %v2023
  %v2025 = vrot.slane %v186, %v2024
  %v2026 = vlaneseq
  %v2027 = vshrl.u32 %v2026, 7
  %v2028 = vsub.s32 0, %v2027
  %v2029 = vrot.slane %v187, %v2028
  %v2030 = vlaneseq
  %v2031 = vshrl.u32 %v2030, 7
  %v2032 = vsub.s32 0, %v2031
  %v2033 = vrot.slane %v188, %v2032
  %v2034 = vlaneseq
  %v2035 = vshrl.u32 %v2034, 7
  %v2036 = vsub.s32 0, %v2035
  %v2037 = vrot.slane %v189, %v2036
  %v2038 = vlaneseq
  %v2039 = vshrl.u32 %v2038, 7
  %v2040 = vsub.s32 0, %v2039
  %v2041 = vrot.slane %v190, %v2040
  %v2042 = vlaneseq
  %v2043 = vshrl.u32 %v2042, 7
  %v2044 = vsub.s32 0, %v2043
  %v2045 = vrot.slane %v191, %v2044
  %vm2046 = vcmp.eq.s32.totalorder %v2006, %v2017
  %vm2047 = vcmp.eq.s32.totalorder %v2007, %v2017
  %vm2048 = vcmp.eq.s32.totalorder %v2008, %v2017
  %vm2049 = vcmp.eq.s32.totalorder %v2009, %v2017
  %vm2050 = vcmp.eq.s32.totalorder %v2010, %v2017
  %vm2051 = vcmp.eq.s32.totalorder %v2011, %v2017
  %vm2052 = vcmp.eq.s32.totalorder %v2012, %v2017
  %vm2053 = vcmp.eq.s32.totalorder %v2013, %v2017
  %vm2054 = vcmp.eq.s32.totalorder %v2006, %v2021
  %vm2055 = vcmp.eq.s32.totalorder %v2007, %v2021
  %vm2056 = vcmp.eq.s32.totalorder %v2008, %v2021
  %vm2057 = vcmp.eq.s32.totalorder %v2009, %v2021
  %vm2058 = vcmp.eq.s32.totalorder %v2010, %v2021
  %vm2059 = vcmp.eq.s32.totalorder %v2011, %v2021
  %vm2060 = vcmp.eq.s32.totalorder %v2012, %v2021
  %vm2061 = vcmp.eq.s32.totalorder %v2013, %v2021
  %vm2062 = vcmp.eq.s32.totalorder %v2006, %v2025
  %vm2063 = vcmp.eq.s32.totalorder %v2007, %v2025
  %vm2064 = vcmp.eq.s32.totalorder %v2008, %v2025
  %vm2065 = vcmp.eq.s32.totalorder %v2009, %v2025
  %vm2066 = vcmp.eq.s32.totalorder %v2010, %v2025
  %vm2067 = vcmp.eq.s32.totalorder %v2011, %v2025
  %vm2068 = vcmp.eq.s32.totalorder %v2012, %v2025
  %vm2069 = vcmp.eq.s32.totalorder %v2013, %v2025
  %vm2070 = vcmp.eq.s32.totalorder %v2006, %v2029
  %vm2071 = vcmp.eq.s32.totalorder %v2007, %v2029
  %vm2072 = vcmp.eq.s32.totalorder %v2008, %v2029
  %vm2073 = vcmp.eq.s32.totalorder %v2009, %v2029
  %vm2074 = vcmp.eq.s32.totalorder %v2010, %v2029
  %vm2075 = vcmp.eq.s32.totalorder %v2011, %v2029
  %vm2076 = vcmp.eq.s32.totalorder %v2012, %v2029
  %vm2077 = vcmp.eq.s32.totalorder %v2013, %v2029
  %vm2078 = vcmp.eq.s32.totalorder %v2006, %v2033
  %vm2079 = vcmp.eq.s32.totalorder %v2007, %v2033
  %vm2080 = vcmp.eq.s32.totalorder %v2008, %v2033
  %vm2081 = vcmp.eq.s32.totalorder %v2009, %v2033
  %vm2082 = vcmp.eq.s32.totalorder %v2010, %v2033
  %vm2083 = vcmp.eq.s32.totalorder %v2011, %v2033
  %vm2084 = vcmp.eq.s32.totalorder %v2012, %v2033
  %vm2085 = vcmp.eq.s32.totalorder %v2013, %v2033
  %vm2086 = vcmp.eq.s32.totalorder %v2006, %v2037
  %vm2087 = vcmp.eq.s32.totalorder %v2007, %v2037
  %vm2088 = vcmp.eq.s32.totalorder %v2008, %v2037
  %vm2089 = vcmp.eq.s32.totalorder %v2009, %v2037
  %vm2090 = vcmp.eq.s32.totalorder %v2010, %v2037
  %vm2091 = vcmp.eq.s32.totalorder %v2011, %v2037
  %vm2092 = vcmp.eq.s32.totalorder %v2012, %v2037
  %vm2093 = vcmp.eq.s32.totalorder %v2013, %v2037
  %vm2094 = vcmp.eq.s32.totalorder %v2006, %v2041
  %vm2095 = vcmp.eq.s32.totalorder %v2007, %v2041
  %vm2096 = vcmp.eq.s32.totalorder %v2008, %v2041
  %vm2097 = vcmp.eq.s32.totalorder %v2009, %v2041
  %vm2098 = vcmp.eq.s32.totalorder %v2010, %v2041
  %vm2099 = vcmp.eq.s32.totalorder %v2011, %v2041
  %vm2100 = vcmp.eq.s32.totalorder %v2012, %v2041
  %vm2101 = vcmp.eq.s32.totalorder %v2013, %v2041
  %vm2102 = vcmp.eq.s32.totalorder %v2006, %v2045
  %vm2103 = vcmp.eq.s32.totalorder %v2007, %v2045
  %vm2104 = vcmp.eq.s32.totalorder %v2008, %v2045
  %vm2105 = vcmp.eq.s32.totalorder %v2009, %v2045
  %vm2106 = vcmp.eq.s32.totalorder %v2010, %v2045
  %vm2107 = vcmp.eq.s32.totalorder %v2011, %v2045
  %vm2108 = vcmp.eq.s32.totalorder %v2012, %v2045
  %vm2109 = vcmp.eq.s32.totalorder %v2013, %v2045
  %v2110 = vsel %vm2046, 1, 0
  %v2111 = vsel %vm2047, 1, 0
  %v2112 = vsel %vm2048, 1, 0
  %v2113 = vsel %vm2049, 1, 0
  %v2114 = vsel %vm2050, 1, 0
  %v2115 = vsel %vm2051, 1, 0
  %v2116 = vsel %vm2052, 1, 0
  %v2117 = vsel %vm2053, 1, 0
  %v2118 = vsel %vm2054, 1, 0
  %v2119 = vsel %vm2055, 1, 0
  %v2120 = vsel %vm2056, 1, 0
  %v2121 = vsel %vm2057, 1, 0
  %v2122 = vsel %vm2058, 1, 0
  %v2123 = vsel %vm2059, 1, 0
  %v2124 = vsel %vm2060, 1, 0
  %v2125 = vsel %vm2061, 1, 0
  %v2126 = vsel %vm2062, 1, 0
  %v2127 = vsel %vm2063, 1, 0
  %v2128 = vsel %vm2064, 1, 0
  %v2129 = vsel %vm2065, 1, 0
  %v2130 = vsel %vm2066, 1, 0
  %v2131 = vsel %vm2067, 1, 0
  %v2132 = vsel %vm2068, 1, 0
  %v2133 = vsel %vm2069, 1, 0
  %v2134 = vsel %vm2070, 1, 0
  %v2135 = vsel %vm2071, 1, 0
  %v2136 = vsel %vm2072, 1, 0
  %v2137 = vsel %vm2073, 1, 0
  %v2138 = vsel %vm2074, 1, 0
  %v2139 = vsel %vm2075, 1, 0
  %v2140 = vsel %vm2076, 1, 0
  %v2141 = vsel %vm2077, 1, 0
  %v2142 = vsel %vm2078, 1, 0
  %v2143 = vsel %vm2079, 1, 0
  %v2144 = vsel %vm2080, 1, 0
  %v2145 = vsel %vm2081, 1, 0
  %v2146 = vsel %vm2082, 1, 0
  %v2147 = vsel %vm2083, 1, 0
  %v2148 = vsel %vm2084, 1, 0
  %v2149 = vsel %vm2085, 1, 0
  %v2150 = vsel %vm2086, 1, 0
  %v2151 = vsel %vm2087, 1, 0
  %v2152 = vsel %vm2088, 1, 0
  %v2153 = vsel %vm2089, 1, 0
  %v2154 = vsel %vm2090, 1, 0
  %v2155 = vsel %vm2091, 1, 0
  %v2156 = vsel %vm2092, 1, 0
  %v2157 = vsel %vm2093, 1, 0
  %v2158 = vsel %vm2094, 1, 0
  %v2159 = vsel %vm2095, 1, 0
  %v2160 = vsel %vm2096, 1, 0
  %v2161 = vsel %vm2097, 1, 0
  %v2162 = vsel %vm2098, 1, 0
  %v2163 = vsel %vm2099, 1, 0
  %v2164 = vsel %vm2100, 1, 0
  %v2165 = vsel %vm2101, 1, 0
  %v2166 = vsel %vm2102, 1, 0
  %v2167 = vsel %vm2103, 1, 0
  %v2168 = vsel %vm2104, 1, 0
  %v2169 = vsel %vm2105, 1, 0
  %v2170 = vsel %vm2106, 1, 0
  %v2171 = vsel %vm2107, 1, 0
  %v2172 = vsel %vm2108, 1, 0
  %v2173 = vsel %vm2109, 1, 0
  %v2174 = vcvt.s32.f32 %v2110
  %v2175 = vcvt.s32.f32 %v2111
  %v2176 = vcvt.s32.f32 %v2112
  %v2177 = vcvt.s32.f32 %v2113
  %v2178 = vcvt.s32.f32 %v2114
  %v2179 = vcvt.s32.f32 %v2115
  %v2180 = vcvt.s32.f32 %v2116
  %v2181 = vcvt.s32.f32 %v2117
  %v2182 = vcvt.s32.f32 %v2118
  %v2183 = vcvt.s32.f32 %v2119
  %v2184 = vcvt.s32.f32 %v2120
  %v2185 = vcvt.s32.f32 %v2121
  %v2186 = vcvt.s32.f32 %v2122
  %v2187 = vcvt.s32.f32 %v2123
  %v2188 = vcvt.s32.f32 %v2124
  %v2189 = vcvt.s32.f32 %v2125
  %v2190 = vcvt.s32.f32 %v2126
  %v2191 = vcvt.s32.f32 %v2127
  %v2192 = vcvt.s32.f32 %v2128
  %v2193 = vcvt.s32.f32 %v2129
  %v2194 = vcvt.s32.f32 %v2130
  %v2195 = vcvt.s32.f32 %v2131
  %v2196 = vcvt.s32.f32 %v2132
  %v2197 = vcvt.s32.f32 %v2133
  %v2198 = vcvt.s32.f32 %v2134
  %v2199 = vcvt.s32.f32 %v2135
  %v2200 = vcvt.s32.f32 %v2136
  %v2201 = vcvt.s32.f32 %v2137
  %v2202 = vcvt.s32.f32 %v2138
  %v2203 = vcvt.s32.f32 %v2139
  %v2204 = vcvt.s32.f32 %v2140
  %v2205 = vcvt.s32.f32 %v2141
  %v2206 = vcvt.s32.f32 %v2142
  %v2207 = vcvt.s32.f32 %v2143
  %v2208 = vcvt.s32.f32 %v2144
  %v2209 = vcvt.s32.f32 %v2145
  %v2210 = vcvt.s32.f32 %v2146
  %v2211 = vcvt.s32.f32 %v2147
  %v2212 = vcvt.s32.f32 %v2148
  %v2213 = vcvt.s32.f32 %v2149
  %v2214 = vcvt.s32.f32 %v2150
  %v2215 = vcvt.s32.f32 %v2151
  %v2216 = vcvt.s32.f32 %v2152
  %v2217 = vcvt.s32.f32 %v2153
  %v2218 = vcvt.s32.f32 %v2154
  %v2219 = vcvt.s32.f32 %v2155
  %v2220 = vcvt.s32.f32 %v2156
  %v2221 = vcvt.s32.f32 %v2157
  %v2222 = vcvt.s32.f32 %v2158
  %v2223 = vcvt.s32.f32 %v2159
  %v2224 = vcvt.s32.f32 %v2160
  %v2225 = vcvt.s32.f32 %v2161
  %v2226 = vcvt.s32.f32 %v2162
  %v2227 = vcvt.s32.f32 %v2163
  %v2228 = vcvt.s32.f32 %v2164
  %v2229 = vcvt.s32.f32 %v2165
  %v2230 = vcvt.s32.f32 %v2166
  %v2231 = vcvt.s32.f32 %v2167
  %v2232 = vcvt.s32.f32 %v2168
  %v2233 = vcvt.s32.f32 %v2169
  %v2234 = vcvt.s32.f32 %v2170
  %v2235 = vcvt.s32.f32 %v2171
  %v2236 = vcvt.s32.f32 %v2172
  %v2237 = vcvt.s32.f32 %v2173
  %vm2238 = vcmask 203776
  %v2239 = vsel %vm2238, %v2174, 0.0
  %2240 = vadd.xlane.f32.xlu0 %v2239
  %v2241 = vpop.xlane.xlu0 %2240
  %v2242 = vsel %vm2238, %v2175, 0.0
  %2243 = vadd.xlane.f32.xlu0 %v2242
  %v2244 = vpop.xlane.xlu0 %2243
  %v2245 = vsel %vm2238, %v2176, 0.0
  %2246 = vadd.xlane.f32.xlu0 %v2245
  %v2247 = vpop.xlane.xlu0 %2246
  %v2248 = vsel %vm2238, %v2177, 0.0
  %2249 = vadd.xlane.f32.xlu0 %v2248
  %v2250 = vpop.xlane.xlu0 %2249
  %v2251 = vsel %vm2238, %v2178, 0.0
  %2252 = vadd.xlane.f32.xlu0 %v2251
  %v2253 = vpop.xlane.xlu0 %2252
  %v2254 = vsel %vm2238, %v2179, 0.0
  %2255 = vadd.xlane.f32.xlu0 %v2254
  %v2256 = vpop.xlane.xlu0 %2255
  %v2257 = vsel %vm2238, %v2180, 0.0
  %2258 = vadd.xlane.f32.xlu0 %v2257
  %v2259 = vpop.xlane.xlu0 %2258
  %v2260 = vsel %vm2238, %v2181, 0.0
  %2261 = vadd.xlane.f32.xlu0 %v2260
  %v2262 = vpop.xlane.xlu0 %2261
  %v2263 = vsel %vm2238, %v2182, 0.0
  %2264 = vadd.xlane.f32.xlu0 %v2263
  %v2265 = vpop.xlane.xlu0 %2264
  %v2266 = vsel %vm2238, %v2183, 0.0
  %2267 = vadd.xlane.f32.xlu0 %v2266
  %v2268 = vpop.xlane.xlu0 %2267
  %v2269 = vsel %vm2238, %v2184, 0.0
  %2270 = vadd.xlane.f32.xlu0 %v2269
  %v2271 = vpop.xlane.xlu0 %2270
  %v2272 = vsel %vm2238, %v2185, 0.0
  %2273 = vadd.xlane.f32.xlu0 %v2272
  %v2274 = vpop.xlane.xlu0 %2273
  %v2275 = vsel %vm2238, %v2186, 0.0
  %2276 = vadd.xlane.f32.xlu0 %v2275
  %v2277 = vpop.xlane.xlu0 %2276
  %v2278 = vsel %vm2238, %v2187, 0.0
  %2279 = vadd.xlane.f32.xlu0 %v2278
  %v2280 = vpop.xlane.xlu0 %2279
  %v2281 = vsel %vm2238, %v2188, 0.0
  %2282 = vadd.xlane.f32.xlu0 %v2281
  %v2283 = vpop.xlane.xlu0 %2282
  %v2284 = vsel %vm2238, %v2189, 0.0
  %2285 = vadd.xlane.f32.xlu0 %v2284
  %v2286 = vpop.xlane.xlu0 %2285
  %v2287 = vsel %vm2238, %v2190, 0.0
  %2288 = vadd.xlane.f32.xlu0 %v2287
  %v2289 = vpop.xlane.xlu0 %2288
  %v2290 = vsel %vm2238, %v2191, 0.0
  %2291 = vadd.xlane.f32.xlu0 %v2290
  %v2292 = vpop.xlane.xlu0 %2291
  %v2293 = vsel %vm2238, %v2192, 0.0
  %2294 = vadd.xlane.f32.xlu0 %v2293
  %v2295 = vpop.xlane.xlu0 %2294
  %v2296 = vsel %vm2238, %v2193, 0.0
  %2297 = vadd.xlane.f32.xlu0 %v2296
  %v2298 = vpop.xlane.xlu0 %2297
  %v2299 = vsel %vm2238, %v2194, 0.0
  %2300 = vadd.xlane.f32.xlu0 %v2299
  %v2301 = vpop.xlane.xlu0 %2300
  %v2302 = vsel %vm2238, %v2195, 0.0
  %2303 = vadd.xlane.f32.xlu0 %v2302
  %v2304 = vpop.xlane.xlu0 %2303
  %v2305 = vsel %vm2238, %v2196, 0.0
  %2306 = vadd.xlane.f32.xlu0 %v2305
  %v2307 = vpop.xlane.xlu0 %2306
  %v2308 = vsel %vm2238, %v2197, 0.0
  %2309 = vadd.xlane.f32.xlu0 %v2308
  %v2310 = vpop.xlane.xlu0 %2309
  %v2311 = vsel %vm2238, %v2198, 0.0
  %2312 = vadd.xlane.f32.xlu0 %v2311
  %v2313 = vpop.xlane.xlu0 %2312
  %v2314 = vsel %vm2238, %v2199, 0.0
  %2315 = vadd.xlane.f32.xlu0 %v2314
  %v2316 = vpop.xlane.xlu0 %2315
  %v2317 = vsel %vm2238, %v2200, 0.0
  %2318 = vadd.xlane.f32.xlu0 %v2317
  %v2319 = vpop.xlane.xlu0 %2318
  %v2320 = vsel %vm2238, %v2201, 0.0
  %2321 = vadd.xlane.f32.xlu0 %v2320
  %v2322 = vpop.xlane.xlu0 %2321
  %v2323 = vsel %vm2238, %v2202, 0.0
  %2324 = vadd.xlane.f32.xlu0 %v2323
  %v2325 = vpop.xlane.xlu0 %2324
  %v2326 = vsel %vm2238, %v2203, 0.0
  %2327 = vadd.xlane.f32.xlu0 %v2326
  %v2328 = vpop.xlane.xlu0 %2327
  %v2329 = vsel %vm2238, %v2204, 0.0
  %2330 = vadd.xlane.f32.xlu0 %v2329
  %v2331 = vpop.xlane.xlu0 %2330
  %v2332 = vsel %vm2238, %v2205, 0.0
  %2333 = vadd.xlane.f32.xlu0 %v2332
  %v2334 = vpop.xlane.xlu0 %2333
  %v2335 = vsel %vm2238, %v2206, 0.0
  %2336 = vadd.xlane.f32.xlu0 %v2335
  %v2337 = vpop.xlane.xlu0 %2336
  %v2338 = vsel %vm2238, %v2207, 0.0
  %2339 = vadd.xlane.f32.xlu0 %v2338
  %v2340 = vpop.xlane.xlu0 %2339
  %v2341 = vsel %vm2238, %v2208, 0.0
  %2342 = vadd.xlane.f32.xlu0 %v2341
  %v2343 = vpop.xlane.xlu0 %2342
  %v2344 = vsel %vm2238, %v2209, 0.0
  %2345 = vadd.xlane.f32.xlu0 %v2344
  %v2346 = vpop.xlane.xlu0 %2345
  %v2347 = vsel %vm2238, %v2210, 0.0
  %2348 = vadd.xlane.f32.xlu0 %v2347
  %v2349 = vpop.xlane.xlu0 %2348
  %v2350 = vsel %vm2238, %v2211, 0.0
  %2351 = vadd.xlane.f32.xlu0 %v2350
  %v2352 = vpop.xlane.xlu0 %2351
  %v2353 = vsel %vm2238, %v2212, 0.0
  %2354 = vadd.xlane.f32.xlu0 %v2353
  %v2355 = vpop.xlane.xlu0 %2354
  %v2356 = vsel %vm2238, %v2213, 0.0
  %2357 = vadd.xlane.f32.xlu0 %v2356
  %v2358 = vpop.xlane.xlu0 %2357
  %v2359 = vsel %vm2238, %v2214, 0.0
  %2360 = vadd.xlane.f32.xlu0 %v2359
  %v2361 = vpop.xlane.xlu0 %2360
  %v2362 = vsel %vm2238, %v2215, 0.0
  %2363 = vadd.xlane.f32.xlu0 %v2362
  %v2364 = vpop.xlane.xlu0 %2363
  %v2365 = vsel %vm2238, %v2216, 0.0
  %2366 = vadd.xlane.f32.xlu0 %v2365
  %v2367 = vpop.xlane.xlu0 %2366
  %v2368 = vsel %vm2238, %v2217, 0.0
  %2369 = vadd.xlane.f32.xlu0 %v2368
  %v2370 = vpop.xlane.xlu0 %2369
  %v2371 = vsel %vm2238, %v2218, 0.0
  %2372 = vadd.xlane.f32.xlu0 %v2371
  %v2373 = vpop.xlane.xlu0 %2372
  %v2374 = vsel %vm2238, %v2219, 0.0
  %2375 = vadd.xlane.f32.xlu0 %v2374
  %v2376 = vpop.xlane.xlu0 %2375
  %v2377 = vsel %vm2238, %v2220, 0.0
  %2378 = vadd.xlane.f32.xlu0 %v2377
  %v2379 = vpop.xlane.xlu0 %2378
  %v2380 = vsel %vm2238, %v2221, 0.0
  %2381 = vadd.xlane.f32.xlu0 %v2380
  %v2382 = vpop.xlane.xlu0 %2381
  %v2383 = vsel %vm2238, %v2222, 0.0
  %2384 = vadd.xlane.f32.xlu0 %v2383
  %v2385 = vpop.xlane.xlu0 %2384
  %v2386 = vsel %vm2238, %v2223, 0.0
  %2387 = vadd.xlane.f32.xlu0 %v2386
  %v2388 = vpop.xlane.xlu0 %2387
  %v2389 = vsel %vm2238, %v2224, 0.0
  %2390 = vadd.xlane.f32.xlu0 %v2389
  %v2391 = vpop.xlane.xlu0 %2390
  %v2392 = vsel %vm2238, %v2225, 0.0
  %2393 = vadd.xlane.f32.xlu0 %v2392
  %v2394 = vpop.xlane.xlu0 %2393
  %v2395 = vsel %vm2238, %v2226, 0.0
  %2396 = vadd.xlane.f32.xlu0 %v2395
  %v2397 = vpop.xlane.xlu0 %2396
  %v2398 = vsel %vm2238, %v2227, 0.0
  %2399 = vadd.xlane.f32.xlu0 %v2398
  %v2400 = vpop.xlane.xlu0 %2399
  %v2401 = vsel %vm2238, %v2228, 0.0
  %2402 = vadd.xlane.f32.xlu0 %v2401
  %v2403 = vpop.xlane.xlu0 %2402
  %v2404 = vsel %vm2238, %v2229, 0.0
  %2405 = vadd.xlane.f32.xlu0 %v2404
  %v2406 = vpop.xlane.xlu0 %2405
  %v2407 = vsel %vm2238, %v2230, 0.0
  %2408 = vadd.xlane.f32.xlu0 %v2407
  %v2409 = vpop.xlane.xlu0 %2408
  %v2410 = vsel %vm2238, %v2231, 0.0
  %2411 = vadd.xlane.f32.xlu0 %v2410
  %v2412 = vpop.xlane.xlu0 %2411
  %v2413 = vsel %vm2238, %v2232, 0.0
  %2414 = vadd.xlane.f32.xlu0 %v2413
  %v2415 = vpop.xlane.xlu0 %2414
  %v2416 = vsel %vm2238, %v2233, 0.0
  %2417 = vadd.xlane.f32.xlu0 %v2416
  %v2418 = vpop.xlane.xlu0 %2417
  %v2419 = vsel %vm2238, %v2234, 0.0
  %2420 = vadd.xlane.f32.xlu0 %v2419
  %v2421 = vpop.xlane.xlu0 %2420
  %v2422 = vsel %vm2238, %v2235, 0.0
  %2423 = vadd.xlane.f32.xlu0 %v2422
  %v2424 = vpop.xlane.xlu0 %2423
  %v2425 = vsel %vm2238, %v2236, 0.0
  %2426 = vadd.xlane.f32.xlu0 %v2425
  %v2427 = vpop.xlane.xlu0 %2426
  %v2428 = vsel %vm2238, %v2237, 0.0
  %2429 = vadd.xlane.f32.xlu0 %v2428
  %v2430 = vpop.xlane.xlu0 %2429
  %v2431 = vpack.c.bf16 %v2175, %v2174
  %v2432 = vpack.c.bf16 %v2177, %v2176
  %v2433 = vpack.c.bf16 %v2179, %v2178
  %v2434 = vpack.c.bf16 %v2181, %v2180
  %v2435 = vpack.c.bf16 %v2183, %v2182
  %v2436 = vpack.c.bf16 %v2185, %v2184
  %v2437 = vpack.c.bf16 %v2187, %v2186
  %v2438 = vpack.c.bf16 %v2189, %v2188
  %v2439 = vpack.c.bf16 %v2191, %v2190
  %v2440 = vpack.c.bf16 %v2193, %v2192
  %v2441 = vpack.c.bf16 %v2195, %v2194
  %v2442 = vpack.c.bf16 %v2197, %v2196
  %v2443 = vpack.c.bf16 %v2199, %v2198
  %v2444 = vpack.c.bf16 %v2201, %v2200
  %v2445 = vpack.c.bf16 %v2203, %v2202
  %v2446 = vpack.c.bf16 %v2205, %v2204
  %v2447 = vpack.c.bf16 %v2207, %v2206
  %v2448 = vpack.c.bf16 %v2209, %v2208
  %v2449 = vpack.c.bf16 %v2211, %v2210
  %v2450 = vpack.c.bf16 %v2213, %v2212
  %v2451 = vpack.c.bf16 %v2215, %v2214
  %v2452 = vpack.c.bf16 %v2217, %v2216
  %v2453 = vpack.c.bf16 %v2219, %v2218
  %v2454 = vpack.c.bf16 %v2221, %v2220
  %v2455 = vpack.c.bf16 %v2223, %v2222
  %v2456 = vpack.c.bf16 %v2225, %v2224
  %v2457 = vpack.c.bf16 %v2227, %v2226
  %v2458 = vpack.c.bf16 %v2229, %v2228
  %v2459 = vpack.c.bf16 %v2231, %v2230
  %v2460 = vpack.c.bf16 %v2233, %v2232
  %v2461 = vpack.c.bf16 %v2235, %v2234
  %v2462 = vpack.c.bf16 %v2237, %v2236
  %v2463 = vpack.c.bf16 %v1441, %v1438
  %v2464 = vpack.c.bf16 %v1449, %v1446
  %v2465 = vpack.c.bf16 %v1520, %v1517
  %v2466 = vpack.c.bf16 %v1528, %v1525
  %v2467 = vpack.c.bf16 %v1599, %v1596
  %v2468 = vpack.c.bf16 %v1607, %v1604
  %v2469 = vpack.c.bf16 %v1678, %v1675
  %v2470 = vpack.c.bf16 %v1686, %v1683
  %v2471 = vpack.c.bf16 %v1757, %v1754
  %v2472 = vpack.c.bf16 %v1765, %v1762
  %v2473 = vpack.c.bf16 %v1836, %v1833
  %v2474 = vpack.c.bf16 %v1844, %v1841
  %v2475 = vpack.c.bf16 %v1915, %v1912
  %v2476 = vpack.c.bf16 %v1923, %v1920
  %v2477 = vpack.c.bf16 %v1994, %v1991
  %v2478 = vpack.c.bf16 %v2002, %v1999
  %v2480 = vsel %vm2238, %v2431, 0
  %v2483 = vsel %vm2238, %v2432, 0
  %v2486 = vsel %vm2238, %v2433, 0
  %v2489 = vsel %vm2238, %v2434, 0
  %vm2491 = vcmask 1043456
  %vm2492 = vcmask 1044480
  %v2493 = vsel %vm2491, 4294967295, 65535
  %v2494 = vsel %vm2492, %v2493, 0
  %v2496 = vand.u32 %v2464, %v2494
  %2498 = vmatprep.subr.bf16.mxu0 0
  %2499 = vmatpush1.bf16.msra.mxu0 0
  %2500 = vmatprep.subr.bf16.mxu0 0
  %2501 = vmatpush1.bf16.msra.mxu0 0
  %2502 = vmatprep.subr.bf16.mxu0 0
  %2503 = vmatpush1.bf16.msra.mxu0 0
  %2504 = vmatprep.subr.bf16.mxu0 0
  %2505 = vmatpush1.bf16.msra.mxu0 0
  %2506 = vmatprep.subr.bf16.mxu0 0
  %2507 = vmatpush1.bf16.msra.mxu0 0
  %2508 = vmatprep.subr.bf16.mxu0 0
  %2509 = vmatpush1.bf16.msra.mxu0 0
  %2510 = vmatprep.subr.bf16.mxu0 0
  %2511 = vmatpush1.bf16.msra.mxu0 %v2496
  %2512 = vmatprep.subr.bf16.mxu0 0
  %2513 = vmatpush1.bf16.msra.mxu0 %v2463
  %2514 = vmatprep.subr.bf16.mxu0 0
  %2515 = vmatpush2.bf16.msra.mxu0 0
  %2516 = vmatprep.subr.bf16.mxu0 0
  %2517 = vmatpush2.bf16.msra.mxu0 0
  %2518 = vmatprep.subr.bf16.mxu0 0
  %2519 = vmatpush2.bf16.msra.mxu0 0
  %2520 = vmatprep.subr.bf16.mxu0 0
  %2521 = vmatpush2.bf16.msra.mxu0 0
  %2522 = vmatprep.subr.bf16.mxu0 0
  %2523 = vmatpush2.bf16.msra.mxu0 0
  %2524 = vmatprep.subr.bf16.mxu0 0
  %2525 = vmatpush2.bf16.msra.mxu0 0
  %2526 = vmatprep.subr.bf16.mxu0 0
  %2527 = vmatpush2.bf16.msra.mxu0 0
  %2528 = vmatprep.subr.bf16.mxu0 0
  %2529 = vmatpush2.bf16.msra.mxu0 0
  %2530 = vmatprep.mubr.bf16.mxu0 0
  %2531 = vmatmul.mubr.bf16.gmra.mxu0 %v2480
  %v2532 = vpop.f32.mrf.mxu0
  %v2533 = vadd.f32 0.0, %v2532
  %v2534 = vpop.f32.mrf.mxu0
  %v2535 = vpop.f32.mrf.mxu0
  %v2536 = vadd.f32 0.0, %v2535
  %v2537 = vpop.f32.mrf.mxu0
  %2538 = vmatprep.mubr.bf16.mxu0 0
  %2539 = vmatmul.mubr.bf16.gmra.mxu0 %v2483
  %v2540 = vpop.f32.mrf.mxu0
  %v2541 = vadd.f32 0.0, %v2540
  %v2542 = vpop.f32.mrf.mxu0
  %v2543 = vpop.f32.mrf.mxu0
  %v2544 = vadd.f32 0.0, %v2543
  %v2545 = vpop.f32.mrf.mxu0
  %2546 = vmatprep.mubr.bf16.mxu0 0
  %2547 = vmatmul.mubr.bf16.gmra.mxu0 %v2486
  %v2548 = vpop.f32.mrf.mxu0
  %v2549 = vadd.f32 0.0, %v2548
  %v2550 = vpop.f32.mrf.mxu0
  %v2551 = vpop.f32.mrf.mxu0
  %v2552 = vadd.f32 0.0, %v2551
  %v2553 = vpop.f32.mrf.mxu0
  %2554 = vmatprep.mubr.bf16.mxu0 0
  %2555 = vmatmul.mubr.bf16.gmra.mxu0 %v2489
  %v2556 = vpop.f32.mrf.mxu0
  %v2557 = vadd.f32 0.0, %v2556
  %v2558 = vpop.f32.mrf.mxu0
  %v2559 = vpop.f32.mrf.mxu0
  %v2560 = vadd.f32 0.0, %v2559
  %v2561 = vpop.f32.mrf.mxu0
  %2562 = vdwg.mxu0
  %v2564 = vsel %vm2238, %v2435, 0
  %v2567 = vsel %vm2238, %v2436, 0
  %v2570 = vsel %vm2238, %v2437, 0
  %v2573 = vsel %vm2238, %v2438, 0
  %v2576 = vand.u32 %v2466, %v2494
  %2578 = vmatprep.subr.bf16.mxu0 0
  %2579 = vmatpush1.bf16.msra.mxu0 0
  %2580 = vmatprep.subr.bf16.mxu0 0
  %2581 = vmatpush1.bf16.msra.mxu0 0
  %2582 = vmatprep.subr.bf16.mxu0 0
  %2583 = vmatpush1.bf16.msra.mxu0 0
  %2584 = vmatprep.subr.bf16.mxu0 0
  %2585 = vmatpush1.bf16.msra.mxu0 0
  %2586 = vmatprep.subr.bf16.mxu0 0
  %2587 = vmatpush1.bf16.msra.mxu0 0
  %2588 = vmatprep.subr.bf16.mxu0 0
  %2589 = vmatpush1.bf16.msra.mxu0 0
  %2590 = vmatprep.subr.bf16.mxu0 0
  %2591 = vmatpush1.bf16.msra.mxu0 %v2576
  %2592 = vmatprep.subr.bf16.mxu0 0
  %2593 = vmatpush1.bf16.msra.mxu0 %v2465
  %2594 = vmatprep.subr.bf16.mxu0 0
  %2595 = vmatpush2.bf16.msra.mxu0 0
  %2596 = vmatprep.subr.bf16.mxu0 0
  %2597 = vmatpush2.bf16.msra.mxu0 0
  %2598 = vmatprep.subr.bf16.mxu0 0
  %2599 = vmatpush2.bf16.msra.mxu0 0
  %2600 = vmatprep.subr.bf16.mxu0 0
  %2601 = vmatpush2.bf16.msra.mxu0 0
  %2602 = vmatprep.subr.bf16.mxu0 0
  %2603 = vmatpush2.bf16.msra.mxu0 0
  %2604 = vmatprep.subr.bf16.mxu0 0
  %2605 = vmatpush2.bf16.msra.mxu0 0
  %2606 = vmatprep.subr.bf16.mxu0 0
  %2607 = vmatpush2.bf16.msra.mxu0 0
  %2608 = vmatprep.subr.bf16.mxu0 0
  %2609 = vmatpush2.bf16.msra.mxu0 0
  %2610 = vmatprep.mubr.bf16.mxu0 0
  %2611 = vmatmul.mubr.bf16.gmra.mxu0 %v2564
  %v2612 = vpop.f32.mrf.mxu0
  %v2613 = vadd.f32 0.0, %v2612
  %v2614 = vpop.f32.mrf.mxu0
  %v2615 = vpop.f32.mrf.mxu0
  %v2616 = vadd.f32 0.0, %v2615
  %v2617 = vpop.f32.mrf.mxu0
  %2618 = vmatprep.mubr.bf16.mxu0 0
  %2619 = vmatmul.mubr.bf16.gmra.mxu0 %v2567
  %v2620 = vpop.f32.mrf.mxu0
  %v2621 = vadd.f32 0.0, %v2620
  %v2622 = vpop.f32.mrf.mxu0
  %v2623 = vpop.f32.mrf.mxu0
  %v2624 = vadd.f32 0.0, %v2623
  %v2625 = vpop.f32.mrf.mxu0
  %2626 = vmatprep.mubr.bf16.mxu0 0
  %2627 = vmatmul.mubr.bf16.gmra.mxu0 %v2570
  %v2628 = vpop.f32.mrf.mxu0
  %v2629 = vadd.f32 0.0, %v2628
  %v2630 = vpop.f32.mrf.mxu0
  %v2631 = vpop.f32.mrf.mxu0
  %v2632 = vadd.f32 0.0, %v2631
  %v2633 = vpop.f32.mrf.mxu0
  %2634 = vmatprep.mubr.bf16.mxu0 0
  %2635 = vmatmul.mubr.bf16.gmra.mxu0 %v2573
  %v2636 = vpop.f32.mrf.mxu0
  %v2637 = vadd.f32 0.0, %v2636
  %v2638 = vpop.f32.mrf.mxu0
  %v2639 = vpop.f32.mrf.mxu0
  %v2640 = vadd.f32 0.0, %v2639
  %v2641 = vpop.f32.mrf.mxu0
  %2642 = vdwg.mxu0
  %v2644 = vsel %vm2238, %v2439, 0
  %v2647 = vsel %vm2238, %v2440, 0
  %v2650 = vsel %vm2238, %v2441, 0
  %v2653 = vsel %vm2238, %v2442, 0
  %v2656 = vand.u32 %v2468, %v2494
  %2658 = vmatprep.subr.bf16.mxu0 0
  %2659 = vmatpush1.bf16.msra.mxu0 0
  %2660 = vmatprep.subr.bf16.mxu0 0
  %2661 = vmatpush1.bf16.msra.mxu0 0
  %2662 = vmatprep.subr.bf16.mxu0 0
  %2663 = vmatpush1.bf16.msra.mxu0 0
  %2664 = vmatprep.subr.bf16.mxu0 0
  %2665 = vmatpush1.bf16.msra.mxu0 0
  %2666 = vmatprep.subr.bf16.mxu0 0
  %2667 = vmatpush1.bf16.msra.mxu0 0
  %2668 = vmatprep.subr.bf16.mxu0 0
  %2669 = vmatpush1.bf16.msra.mxu0 0
  %2670 = vmatprep.subr.bf16.mxu0 0
  %2671 = vmatpush1.bf16.msra.mxu0 %v2656
  %2672 = vmatprep.subr.bf16.mxu0 0
  %2673 = vmatpush1.bf16.msra.mxu0 %v2467
  %2674 = vmatprep.subr.bf16.mxu0 0
  %2675 = vmatpush2.bf16.msra.mxu0 0
  %2676 = vmatprep.subr.bf16.mxu0 0
  %2677 = vmatpush2.bf16.msra.mxu0 0
  %2678 = vmatprep.subr.bf16.mxu0 0
  %2679 = vmatpush2.bf16.msra.mxu0 0
  %2680 = vmatprep.subr.bf16.mxu0 0
  %2681 = vmatpush2.bf16.msra.mxu0 0
  %2682 = vmatprep.subr.bf16.mxu0 0
  %2683 = vmatpush2.bf16.msra.mxu0 0
  %2684 = vmatprep.subr.bf16.mxu0 0
  %2685 = vmatpush2.bf16.msra.mxu0 0
  %2686 = vmatprep.subr.bf16.mxu0 0
  %2687 = vmatpush2.bf16.msra.mxu0 0
  %2688 = vmatprep.subr.bf16.mxu0 0
  %2689 = vmatpush2.bf16.msra.mxu0 0
  %2690 = vmatprep.mubr.bf16.mxu0 0
  %2691 = vmatmul.mubr.bf16.gmra.mxu0 %v2644
  %v2692 = vpop.f32.mrf.mxu0
  %v2693 = vadd.f32 0.0, %v2692
  %v2694 = vpop.f32.mrf.mxu0
  %v2695 = vpop.f32.mrf.mxu0
  %v2696 = vadd.f32 0.0, %v2695
  %v2697 = vpop.f32.mrf.mxu0
  %2698 = vmatprep.mubr.bf16.mxu0 0
  %2699 = vmatmul.mubr.bf16.gmra.mxu0 %v2647
  %v2700 = vpop.f32.mrf.mxu0
  %v2701 = vadd.f32 0.0, %v2700
  %v2702 = vpop.f32.mrf.mxu0
  %v2703 = vpop.f32.mrf.mxu0
  %v2704 = vadd.f32 0.0, %v2703
  %v2705 = vpop.f32.mrf.mxu0
  %2706 = vmatprep.mubr.bf16.mxu0 0
  %2707 = vmatmul.mubr.bf16.gmra.mxu0 %v2650
  %v2708 = vpop.f32.mrf.mxu0
  %v2709 = vadd.f32 0.0, %v2708
  %v2710 = vpop.f32.mrf.mxu0
  %v2711 = vpop.f32.mrf.mxu0
  %v2712 = vadd.f32 0.0, %v2711
  %v2713 = vpop.f32.mrf.mxu0
  %2714 = vmatprep.mubr.bf16.mxu0 0
  %2715 = vmatmul.mubr.bf16.gmra.mxu0 %v2653
  %v2716 = vpop.f32.mrf.mxu0
  %v2717 = vadd.f32 0.0, %v2716
  %v2718 = vpop.f32.mrf.mxu0
  %v2719 = vpop.f32.mrf.mxu0
  %v2720 = vadd.f32 0.0, %v2719
  %v2721 = vpop.f32.mrf.mxu0
  %2722 = vdwg.mxu0
  %v2724 = vsel %vm2238, %v2443, 0
  %v2727 = vsel %vm2238, %v2444, 0
  %v2730 = vsel %vm2238, %v2445, 0
  %v2733 = vsel %vm2238, %v2446, 0
  %v2736 = vand.u32 %v2470, %v2494
  %2738 = vmatprep.subr.bf16.mxu0 0
  %2739 = vmatpush1.bf16.msra.mxu0 0
  %2740 = vmatprep.subr.bf16.mxu0 0
  %2741 = vmatpush1.bf16.msra.mxu0 0
  %2742 = vmatprep.subr.bf16.mxu0 0
  %2743 = vmatpush1.bf16.msra.mxu0 0
  %2744 = vmatprep.subr.bf16.mxu0 0
  %2745 = vmatpush1.bf16.msra.mxu0 0
  %2746 = vmatprep.subr.bf16.mxu0 0
  %2747 = vmatpush1.bf16.msra.mxu0 0
  %2748 = vmatprep.subr.bf16.mxu0 0
  %2749 = vmatpush1.bf16.msra.mxu0 0
  %2750 = vmatprep.subr.bf16.mxu0 0
  %2751 = vmatpush1.bf16.msra.mxu0 %v2736
  %2752 = vmatprep.subr.bf16.mxu0 0
  %2753 = vmatpush1.bf16.msra.mxu0 %v2469
  %2754 = vmatprep.subr.bf16.mxu0 0
  %2755 = vmatpush2.bf16.msra.mxu0 0
  %2756 = vmatprep.subr.bf16.mxu0 0
  %2757 = vmatpush2.bf16.msra.mxu0 0
  %2758 = vmatprep.subr.bf16.mxu0 0
  %2759 = vmatpush2.bf16.msra.mxu0 0
  %2760 = vmatprep.subr.bf16.mxu0 0
  %2761 = vmatpush2.bf16.msra.mxu0 0
  %2762 = vmatprep.subr.bf16.mxu0 0
  %2763 = vmatpush2.bf16.msra.mxu0 0
  %2764 = vmatprep.subr.bf16.mxu0 0
  %2765 = vmatpush2.bf16.msra.mxu0 0
  %2766 = vmatprep.subr.bf16.mxu0 0
  %2767 = vmatpush2.bf16.msra.mxu0 0
  %2768 = vmatprep.subr.bf16.mxu0 0
  %2769 = vmatpush2.bf16.msra.mxu0 0
  %2770 = vmatprep.mubr.bf16.mxu0 0
  %2771 = vmatmul.mubr.bf16.gmra.mxu0 %v2724
  %v2772 = vpop.f32.mrf.mxu0
  %v2773 = vadd.f32 0.0, %v2772
  %v2774 = vpop.f32.mrf.mxu0
  %v2775 = vpop.f32.mrf.mxu0
  %v2776 = vadd.f32 0.0, %v2775
  %v2777 = vpop.f32.mrf.mxu0
  %2778 = vmatprep.mubr.bf16.mxu0 0
  %2779 = vmatmul.mubr.bf16.gmra.mxu0 %v2727
  %v2780 = vpop.f32.mrf.mxu0
  %v2781 = vadd.f32 0.0, %v2780
  %v2782 = vpop.f32.mrf.mxu0
  %v2783 = vpop.f32.mrf.mxu0
  %v2784 = vadd.f32 0.0, %v2783
  %v2785 = vpop.f32.mrf.mxu0
  %2786 = vmatprep.mubr.bf16.mxu0 0
  %2787 = vmatmul.mubr.bf16.gmra.mxu0 %v2730
  %v2788 = vpop.f32.mrf.mxu0
  %v2789 = vadd.f32 0.0, %v2788
  %v2790 = vpop.f32.mrf.mxu0
  %v2791 = vpop.f32.mrf.mxu0
  %v2792 = vadd.f32 0.0, %v2791
  %v2793 = vpop.f32.mrf.mxu0
  %2794 = vmatprep.mubr.bf16.mxu0 0
  %2795 = vmatmul.mubr.bf16.gmra.mxu0 %v2733
  %v2796 = vpop.f32.mrf.mxu0
  %v2797 = vadd.f32 0.0, %v2796
  %v2798 = vpop.f32.mrf.mxu0
  %v2799 = vpop.f32.mrf.mxu0
  %v2800 = vadd.f32 0.0, %v2799
  %v2801 = vpop.f32.mrf.mxu0
  %2802 = vdwg.mxu0
  %v2804 = vsel %vm2238, %v2447, 0
  %v2807 = vsel %vm2238, %v2448, 0
  %v2810 = vsel %vm2238, %v2449, 0
  %v2813 = vsel %vm2238, %v2450, 0
  %v2816 = vand.u32 %v2472, %v2494
  %2818 = vmatprep.subr.bf16.mxu0 0
  %2819 = vmatpush1.bf16.msra.mxu0 0
  %2820 = vmatprep.subr.bf16.mxu0 0
  %2821 = vmatpush1.bf16.msra.mxu0 0
  %2822 = vmatprep.subr.bf16.mxu0 0
  %2823 = vmatpush1.bf16.msra.mxu0 0
  %2824 = vmatprep.subr.bf16.mxu0 0
  %2825 = vmatpush1.bf16.msra.mxu0 0
  %2826 = vmatprep.subr.bf16.mxu0 0
  %2827 = vmatpush1.bf16.msra.mxu0 0
  %2828 = vmatprep.subr.bf16.mxu0 0
  %2829 = vmatpush1.bf16.msra.mxu0 0
  %2830 = vmatprep.subr.bf16.mxu0 0
  %2831 = vmatpush1.bf16.msra.mxu0 %v2816
  %2832 = vmatprep.subr.bf16.mxu0 0
  %2833 = vmatpush1.bf16.msra.mxu0 %v2471
  %2834 = vmatprep.subr.bf16.mxu0 0
  %2835 = vmatpush2.bf16.msra.mxu0 0
  %2836 = vmatprep.subr.bf16.mxu0 0
  %2837 = vmatpush2.bf16.msra.mxu0 0
  %2838 = vmatprep.subr.bf16.mxu0 0
  %2839 = vmatpush2.bf16.msra.mxu0 0
  %2840 = vmatprep.subr.bf16.mxu0 0
  %2841 = vmatpush2.bf16.msra.mxu0 0
  %2842 = vmatprep.subr.bf16.mxu0 0
  %2843 = vmatpush2.bf16.msra.mxu0 0
  %2844 = vmatprep.subr.bf16.mxu0 0
  %2845 = vmatpush2.bf16.msra.mxu0 0
  %2846 = vmatprep.subr.bf16.mxu0 0
  %2847 = vmatpush2.bf16.msra.mxu0 0
  %2848 = vmatprep.subr.bf16.mxu0 0
  %2849 = vmatpush2.bf16.msra.mxu0 0
  %2850 = vmatprep.mubr.bf16.mxu0 0
  %2851 = vmatmul.mubr.bf16.gmra.mxu0 %v2804
  %v2852 = vpop.f32.mrf.mxu0
  %v2853 = vadd.f32 0.0, %v2852
  %v2854 = vpop.f32.mrf.mxu0
  %v2855 = vpop.f32.mrf.mxu0
  %v2856 = vadd.f32 0.0, %v2855
  %v2857 = vpop.f32.mrf.mxu0
  %2858 = vmatprep.mubr.bf16.mxu0 0
  %2859 = vmatmul.mubr.bf16.gmra.mxu0 %v2807
  %v2860 = vpop.f32.mrf.mxu0
  %v2861 = vadd.f32 0.0, %v2860
  %v2862 = vpop.f32.mrf.mxu0
  %v2863 = vpop.f32.mrf.mxu0
  %v2864 = vadd.f32 0.0, %v2863
  %v2865 = vpop.f32.mrf.mxu0
  %2866 = vmatprep.mubr.bf16.mxu0 0
  %2867 = vmatmul.mubr.bf16.gmra.mxu0 %v2810
  %v2868 = vpop.f32.mrf.mxu0
  %v2869 = vadd.f32 0.0, %v2868
  %v2870 = vpop.f32.mrf.mxu0
  %v2871 = vpop.f32.mrf.mxu0
  %v2872 = vadd.f32 0.0, %v2871
  %v2873 = vpop.f32.mrf.mxu0
  %2874 = vmatprep.mubr.bf16.mxu0 0
  %2875 = vmatmul.mubr.bf16.gmra.mxu0 %v2813
  %v2876 = vpop.f32.mrf.mxu0
  %v2877 = vadd.f32 0.0, %v2876
  %v2878 = vpop.f32.mrf.mxu0
  %v2879 = vpop.f32.mrf.mxu0
  %v2880 = vadd.f32 0.0, %v2879
  %v2881 = vpop.f32.mrf.mxu0
  %2882 = vdwg.mxu0
  %v2884 = vsel %vm2238, %v2451, 0
  %v2887 = vsel %vm2238, %v2452, 0
  %v2890 = vsel %vm2238, %v2453, 0
  %v2893 = vsel %vm2238, %v2454, 0
  %v2896 = vand.u32 %v2474, %v2494
  %2898 = vmatprep.subr.bf16.mxu0 0
  %2899 = vmatpush1.bf16.msra.mxu0 0
  %2900 = vmatprep.subr.bf16.mxu0 0
  %2901 = vmatpush1.bf16.msra.mxu0 0
  %2902 = vmatprep.subr.bf16.mxu0 0
  %2903 = vmatpush1.bf16.msra.mxu0 0
  %2904 = vmatprep.subr.bf16.mxu0 0
  %2905 = vmatpush1.bf16.msra.mxu0 0
  %2906 = vmatprep.subr.bf16.mxu0 0
  %2907 = vmatpush1.bf16.msra.mxu0 0
  %2908 = vmatprep.subr.bf16.mxu0 0
  %2909 = vmatpush1.bf16.msra.mxu0 0
  %2910 = vmatprep.subr.bf16.mxu0 0
  %2911 = vmatpush1.bf16.msra.mxu0 %v2896
  %2912 = vmatprep.subr.bf16.mxu0 0
  %2913 = vmatpush1.bf16.msra.mxu0 %v2473
  %2914 = vmatprep.subr.bf16.mxu0 0
  %2915 = vmatpush2.bf16.msra.mxu0 0
  %2916 = vmatprep.subr.bf16.mxu0 0
  %2917 = vmatpush2.bf16.msra.mxu0 0
  %2918 = vmatprep.subr.bf16.mxu0 0
  %2919 = vmatpush2.bf16.msra.mxu0 0
  %2920 = vmatprep.subr.bf16.mxu0 0
  %2921 = vmatpush2.bf16.msra.mxu0 0
  %2922 = vmatprep.subr.bf16.mxu0 0
  %2923 = vmatpush2.bf16.msra.mxu0 0
  %2924 = vmatprep.subr.bf16.mxu0 0
  %2925 = vmatpush2.bf16.msra.mxu0 0
  %2926 = vmatprep.subr.bf16.mxu0 0
  %2927 = vmatpush2.bf16.msra.mxu0 0
  %2928 = vmatprep.subr.bf16.mxu0 0
  %2929 = vmatpush2.bf16.msra.mxu0 0
  %2930 = vmatprep.mubr.bf16.mxu0 0
  %2931 = vmatmul.mubr.bf16.gmra.mxu0 %v2884
  %v2932 = vpop.f32.mrf.mxu0
  %v2933 = vadd.f32 0.0, %v2932
  %v2934 = vpop.f32.mrf.mxu0
  %v2935 = vpop.f32.mrf.mxu0
  %v2936 = vadd.f32 0.0, %v2935
  %v2937 = vpop.f32.mrf.mxu0
  %2938 = vmatprep.mubr.bf16.mxu0 0
  %2939 = vmatmul.mubr.bf16.gmra.mxu0 %v2887
  %v2940 = vpop.f32.mrf.mxu0
  %v2941 = vadd.f32 0.0, %v2940
  %v2942 = vpop.f32.mrf.mxu0
  %v2943 = vpop.f32.mrf.mxu0
  %v2944 = vadd.f32 0.0, %v2943
  %v2945 = vpop.f32.mrf.mxu0
  %2946 = vmatprep.mubr.bf16.mxu0 0
  %2947 = vmatmul.mubr.bf16.gmra.mxu0 %v2890
  %v2948 = vpop.f32.mrf.mxu0
  %v2949 = vadd.f32 0.0, %v2948
  %v2950 = vpop.f32.mrf.mxu0
  %v2951 = vpop.f32.mrf.mxu0
  %v2952 = vadd.f32 0.0, %v2951
  %v2953 = vpop.f32.mrf.mxu0
  %2954 = vmatprep.mubr.bf16.mxu0 0
  %2955 = vmatmul.mubr.bf16.gmra.mxu0 %v2893
  %v2956 = vpop.f32.mrf.mxu0
  %v2957 = vadd.f32 0.0, %v2956
  %v2958 = vpop.f32.mrf.mxu0
  %v2959 = vpop.f32.mrf.mxu0
  %v2960 = vadd.f32 0.0, %v2959
  %v2961 = vpop.f32.mrf.mxu0
  %2962 = vdwg.mxu0
  %v2964 = vsel %vm2238, %v2455, 0
  %v2967 = vsel %vm2238, %v2456, 0
  %v2970 = vsel %vm2238, %v2457, 0
  %v2973 = vsel %vm2238, %v2458, 0
  %v2976 = vand.u32 %v2476, %v2494
  %2978 = vmatprep.subr.bf16.mxu0 0
  %2979 = vmatpush1.bf16.msra.mxu0 0
  %2980 = vmatprep.subr.bf16.mxu0 0
  %2981 = vmatpush1.bf16.msra.mxu0 0
  %2982 = vmatprep.subr.bf16.mxu0 0
  %2983 = vmatpush1.bf16.msra.mxu0 0
  %2984 = vmatprep.subr.bf16.mxu0 0
  %2985 = vmatpush1.bf16.msra.mxu0 0
  %2986 = vmatprep.subr.bf16.mxu0 0
  %2987 = vmatpush1.bf16.msra.mxu0 0
  %2988 = vmatprep.subr.bf16.mxu0 0
  %2989 = vmatpush1.bf16.msra.mxu0 0
  %2990 = vmatprep.subr.bf16.mxu0 0
  %2991 = vmatpush1.bf16.msra.mxu0 %v2976
  %2992 = vmatprep.subr.bf16.mxu0 0
  %2993 = vmatpush1.bf16.msra.mxu0 %v2475
  %2994 = vmatprep.subr.bf16.mxu0 0
  %2995 = vmatpush2.bf16.msra.mxu0 0
  %2996 = vmatprep.subr.bf16.mxu0 0
  %2997 = vmatpush2.bf16.msra.mxu0 0
  %2998 = vmatprep.subr.bf16.mxu0 0
  %2999 = vmatpush2.bf16.msra.mxu0 0
  %3000 = vmatprep.subr.bf16.mxu0 0
  %3001 = vmatpush2.bf16.msra.mxu0 0
  %3002 = vmatprep.subr.bf16.mxu0 0
  %3003 = vmatpush2.bf16.msra.mxu0 0
  %3004 = vmatprep.subr.bf16.mxu0 0
  %3005 = vmatpush2.bf16.msra.mxu0 0
  %3006 = vmatprep.subr.bf16.mxu0 0
  %3007 = vmatpush2.bf16.msra.mxu0 0
  %3008 = vmatprep.subr.bf16.mxu0 0
  %3009 = vmatpush2.bf16.msra.mxu0 0
  %3010 = vmatprep.mubr.bf16.mxu0 0
  %3011 = vmatmul.mubr.bf16.gmra.mxu0 %v2964
  %v3012 = vpop.f32.mrf.mxu0
  %v3013 = vadd.f32 0.0, %v3012
  %v3014 = vpop.f32.mrf.mxu0
  %v3015 = vpop.f32.mrf.mxu0
  %v3016 = vadd.f32 0.0, %v3015
  %v3017 = vpop.f32.mrf.mxu0
  %3018 = vmatprep.mubr.bf16.mxu0 0
  %3019 = vmatmul.mubr.bf16.gmra.mxu0 %v2967
  %v3020 = vpop.f32.mrf.mxu0
  %v3021 = vadd.f32 0.0, %v3020
  %v3022 = vpop.f32.mrf.mxu0
  %v3023 = vpop.f32.mrf.mxu0
  %v3024 = vadd.f32 0.0, %v3023
  %v3025 = vpop.f32.mrf.mxu0
  %3026 = vmatprep.mubr.bf16.mxu0 0
  %3027 = vmatmul.mubr.bf16.gmra.mxu0 %v2970
  %v3028 = vpop.f32.mrf.mxu0
  %v3029 = vadd.f32 0.0, %v3028
  %v3030 = vpop.f32.mrf.mxu0
  %v3031 = vpop.f32.mrf.mxu0
  %v3032 = vadd.f32 0.0, %v3031
  %v3033 = vpop.f32.mrf.mxu0
  %3034 = vmatprep.mubr.bf16.mxu0 0
  %3035 = vmatmul.mubr.bf16.gmra.mxu0 %v2973
  %v3036 = vpop.f32.mrf.mxu0
  %v3037 = vadd.f32 0.0, %v3036
  %v3038 = vpop.f32.mrf.mxu0
  %v3039 = vpop.f32.mrf.mxu0
  %v3040 = vadd.f32 0.0, %v3039
  %v3041 = vpop.f32.mrf.mxu0
  %3042 = vdwg.mxu0
  %v3044 = vsel %vm2238, %v2459, 0
  %v3047 = vsel %vm2238, %v2460, 0
  %v3050 = vsel %vm2238, %v2461, 0
  %v3053 = vsel %vm2238, %v2462, 0
  %v3056 = vand.u32 %v2478, %v2494
  %3058 = vmatprep.subr.bf16.mxu0 0
  %3059 = vmatpush1.bf16.msra.mxu0 0
  %3060 = vmatprep.subr.bf16.mxu0 0
  %3061 = vmatpush1.bf16.msra.mxu0 0
  %3062 = vmatprep.subr.bf16.mxu0 0
  %3063 = vmatpush1.bf16.msra.mxu0 0
  %3064 = vmatprep.subr.bf16.mxu0 0
  %3065 = vmatpush1.bf16.msra.mxu0 0
  %3066 = vmatprep.subr.bf16.mxu0 0
  %3067 = vmatpush1.bf16.msra.mxu0 0
  %3068 = vmatprep.subr.bf16.mxu0 0
  %3069 = vmatpush1.bf16.msra.mxu0 0
  %3070 = vmatprep.subr.bf16.mxu0 0
  %3071 = vmatpush1.bf16.msra.mxu0 %v3056
  %3072 = vmatprep.subr.bf16.mxu0 0
  %3073 = vmatpush1.bf16.msra.mxu0 %v2477
  %3074 = vmatprep.subr.bf16.mxu0 0
  %3075 = vmatpush2.bf16.msra.mxu0 0
  %3076 = vmatprep.subr.bf16.mxu0 0
  %3077 = vmatpush2.bf16.msra.mxu0 0
  %3078 = vmatprep.subr.bf16.mxu0 0
  %3079 = vmatpush2.bf16.msra.mxu0 0
  %3080 = vmatprep.subr.bf16.mxu0 0
  %3081 = vmatpush2.bf16.msra.mxu0 0
  %3082 = vmatprep.subr.bf16.mxu0 0
  %3083 = vmatpush2.bf16.msra.mxu0 0
  %3084 = vmatprep.subr.bf16.mxu0 0
  %3085 = vmatpush2.bf16.msra.mxu0 0
  %3086 = vmatprep.subr.bf16.mxu0 0
  %3087 = vmatpush2.bf16.msra.mxu0 0
  %3088 = vmatprep.subr.bf16.mxu0 0
  %3089 = vmatpush2.bf16.msra.mxu0 0
  %3090 = vmatprep.mubr.bf16.mxu0 0
  %3091 = vmatmul.mubr.bf16.gmra.mxu0 %v3044
  %v3092 = vpop.f32.mrf.mxu0
  %v3093 = vadd.f32 0.0, %v3092
  %v3094 = vpop.f32.mrf.mxu0
  %v3095 = vpop.f32.mrf.mxu0
  %v3096 = vadd.f32 0.0, %v3095
  %v3097 = vpop.f32.mrf.mxu0
  %3098 = vmatprep.mubr.bf16.mxu0 0
  %3099 = vmatmul.mubr.bf16.gmra.mxu0 %v3047
  %v3100 = vpop.f32.mrf.mxu0
  %v3101 = vadd.f32 0.0, %v3100
  %v3102 = vpop.f32.mrf.mxu0
  %v3103 = vpop.f32.mrf.mxu0
  %v3104 = vadd.f32 0.0, %v3103
  %v3105 = vpop.f32.mrf.mxu0
  %3106 = vmatprep.mubr.bf16.mxu0 0
  %3107 = vmatmul.mubr.bf16.gmra.mxu0 %v3050
  %v3108 = vpop.f32.mrf.mxu0
  %v3109 = vadd.f32 0.0, %v3108
  %v3110 = vpop.f32.mrf.mxu0
  %v3111 = vpop.f32.mrf.mxu0
  %v3112 = vadd.f32 0.0, %v3111
  %v3113 = vpop.f32.mrf.mxu0
  %3114 = vmatprep.mubr.bf16.mxu0 0
  %3115 = vmatmul.mubr.bf16.gmra.mxu0 %v3053
  %v3116 = vpop.f32.mrf.mxu0
  %v3117 = vadd.f32 0.0, %v3116
  %v3118 = vpop.f32.mrf.mxu0
  %v3119 = vpop.f32.mrf.mxu0
  %v3120 = vadd.f32 0.0, %v3119
  %v3121 = vpop.f32.mrf.mxu0
  %3122 = vdwg.mxu0
  %v3123 = vld [vmem:[%s5] sm:$0xf]
  %v3124 = vld [vmem:[%s5 + $0x4] sm:$0xf]
  %v3125 = vld [vmem:[%s5 + $0x8] sm:$0xf]
  %v3126 = vld [vmem:[%s5 + $0xc] sm:$0xf]
  %v3127 = vld [vmem:[%s5 + $0x10] sm:$0xf]
  %v3128 = vld [vmem:[%s5 + $0x14] sm:$0xf]
  %v3129 = vld [vmem:[%s5 + $0x18] sm:$0xf]
  %v3130 = vld [vmem:[%s5 + $0x1c] sm:$0xf]
  %v3131 = vld [vmem:[%s5 + $0x20] sm:$0xf]
  %v3132 = vld [vmem:[%s5 + $0x24] sm:$0xf]
  %v3133 = vld [vmem:[%s5 + $0x28] sm:$0xf]
  %v3134 = vld [vmem:[%s5 + $0x2c] sm:$0xf]
  %v3135 = vld [vmem:[%s5 + $0x30] sm:$0xf]
  %v3136 = vld [vmem:[%s5 + $0x34] sm:$0xf]
  %v3137 = vld [vmem:[%s5 + $0x38] sm:$0xf]
  %v3138 = vld [vmem:[%s5 + $0x3c] sm:$0xf]
  %v3139 = vld [vmem:[%s5 + $0x40] sm:$0xf]
  %v3140 = vld [vmem:[%s5 + $0x44] sm:$0xf]
  %v3141 = vld [vmem:[%s5 + $0x48] sm:$0xf]
  %v3142 = vld [vmem:[%s5 + $0x4c] sm:$0xf]
  %v3143 = vld [vmem:[%s5 + $0x50] sm:$0xf]
  %v3144 = vld [vmem:[%s5 + $0x54] sm:$0xf]
  %v3145 = vld [vmem:[%s5 + $0x58] sm:$0xf]
  %v3146 = vld [vmem:[%s5 + $0x5c] sm:$0xf]
  %v3147 = vld [vmem:[%s5 + $0x60] sm:$0xf]
  %v3148 = vld [vmem:[%s5 + $0x64] sm:$0xf]
  %v3149 = vld [vmem:[%s5 + $0x68] sm:$0xf]
  %v3150 = vld [vmem:[%s5 + $0x6c] sm:$0xf]
  %v3151 = vld [vmem:[%s5 + $0x70] sm:$0xf]
  %v3152 = vld [vmem:[%s5 + $0x74] sm:$0xf]
  %v3153 = vld [vmem:[%s5 + $0x78] sm:$0xf]
  %v3154 = vld [vmem:[%s5 + $0x7c] sm:$0xf]
  %v3155 = vld [vmem:[%s5 + $0x80] sm:$0xf]
  %v3156 = vld [vmem:[%s5 + $0x84] sm:$0xf]
  %v3157 = vld [vmem:[%s5 + $0x88] sm:$0xf]
  %v3158 = vld [vmem:[%s5 + $0x8c] sm:$0xf]
  %v3159 = vld [vmem:[%s5 + $0x90] sm:$0xf]
  %v3160 = vld [vmem:[%s5 + $0x94] sm:$0xf]
  %v3161 = vld [vmem:[%s5 + $0x98] sm:$0xf]
  %v3162 = vld [vmem:[%s5 + $0x9c] sm:$0xf]
  %v3163 = vld [vmem:[%s5 + $0xa0] sm:$0xf]
  %v3164 = vld [vmem:[%s5 + $0xa4] sm:$0xf]
  %v3165 = vld [vmem:[%s5 + $0xa8] sm:$0xf]
  %v3166 = vld [vmem:[%s5 + $0xac] sm:$0xf]
  %v3167 = vld [vmem:[%s5 + $0xb0] sm:$0xf]
  %v3168 = vld [vmem:[%s5 + $0xb4] sm:$0xf]
  %v3169 = vld [vmem:[%s5 + $0xb8] sm:$0xf]
  %v3170 = vld [vmem:[%s5 + $0xbc] sm:$0xf]
  %v3171 = vld [vmem:[%s5 + $0xc0] sm:$0xf]
  %v3172 = vld [vmem:[%s5 + $0xc4] sm:$0xf]
  %v3173 = vld [vmem:[%s5 + $0xc8] sm:$0xf]
  %v3174 = vld [vmem:[%s5 + $0xcc] sm:$0xf]
  %v3175 = vld [vmem:[%s5 + $0xd0] sm:$0xf]
  %v3176 = vld [vmem:[%s5 + $0xd4] sm:$0xf]
  %v3177 = vld [vmem:[%s5 + $0xd8] sm:$0xf]
  %v3178 = vld [vmem:[%s5 + $0xdc] sm:$0xf]
  %v3179 = vld [vmem:[%s5 + $0xe0] sm:$0xf]
  %v3180 = vld [vmem:[%s5 + $0xe4] sm:$0xf]
  %v3181 = vld [vmem:[%s5 + $0xe8] sm:$0xf]
  %v3182 = vld [vmem:[%s5 + $0xec] sm:$0xf]
  %v3183 = vld [vmem:[%s5 + $0xf0] sm:$0xf]
  %v3184 = vld [vmem:[%s5 + $0xf4] sm:$0xf]
  %v3185 = vld [vmem:[%s5 + $0xf8] sm:$0xf]
  %v3186 = vld [vmem:[%s5 + $0xfc] sm:$0xf]
  %v3187 = vunpack.c.l.bf16 %v3123
  %v3188 = vunpack.c.l.bf16 %v3124
  %v3189 = vunpack.c.l.bf16 %v3125
  %v3190 = vunpack.c.l.bf16 %v3126
  %v3191 = vunpack.c.l.bf16 %v3127
  %v3192 = vunpack.c.l.bf16 %v3128
  %v3193 = vunpack.c.l.bf16 %v3129
  %v3194 = vunpack.c.l.bf16 %v3130
  %v3195 = vunpack.c.l.bf16 %v3131
  %v3196 = vunpack.c.l.bf16 %v3132
  %v3197 = vunpack.c.l.bf16 %v3133
  %v3198 = vunpack.c.l.bf16 %v3134
  %v3199 = vunpack.c.l.bf16 %v3135
  %v3200 = vunpack.c.l.bf16 %v3136
  %v3201 = vunpack.c.l.bf16 %v3137
  %v3202 = vunpack.c.l.bf16 %v3138
  %v3203 = vunpack.c.l.bf16 %v3139
  %v3204 = vunpack.c.l.bf16 %v3140
  %v3205 = vunpack.c.l.bf16 %v3141
  %v3206 = vunpack.c.l.bf16 %v3142
  %v3207 = vunpack.c.l.bf16 %v3143
  %v3208 = vunpack.c.l.bf16 %v3144
  %v3209 = vunpack.c.l.bf16 %v3145
  %v3210 = vunpack.c.l.bf16 %v3146
  %v3211 = vunpack.c.l.bf16 %v3147
  %v3212 = vunpack.c.l.bf16 %v3148
  %v3213 = vunpack.c.l.bf16 %v3149
  %v3214 = vunpack.c.l.bf16 %v3150
  %v3215 = vunpack.c.l.bf16 %v3151
  %v3216 = vunpack.c.l.bf16 %v3152
  %v3217 = vunpack.c.l.bf16 %v3153
  %v3218 = vunpack.c.l.bf16 %v3154
  %v3219 = vunpack.c.l.bf16 %v3155
  %v3220 = vunpack.c.l.bf16 %v3156
  %v3221 = vunpack.c.l.bf16 %v3157
  %v3222 = vunpack.c.l.bf16 %v3158
  %v3223 = vunpack.c.l.bf16 %v3159
  %v3224 = vunpack.c.l.bf16 %v3160
  %v3225 = vunpack.c.l.bf16 %v3161
  %v3226 = vunpack.c.l.bf16 %v3162
  %v3227 = vunpack.c.l.bf16 %v3163
  %v3228 = vunpack.c.l.bf16 %v3164
  %v3229 = vunpack.c.l.bf16 %v3165
  %v3230 = vunpack.c.l.bf16 %v3166
  %v3231 = vunpack.c.l.bf16 %v3167
  %v3232 = vunpack.c.l.bf16 %v3168
  %v3233 = vunpack.c.l.bf16 %v3169
  %v3234 = vunpack.c.l.bf16 %v3170
  %v3235 = vunpack.c.l.bf16 %v3171
  %v3236 = vunpack.c.l.bf16 %v3172
  %v3237 = vunpack.c.l.bf16 %v3173
  %v3238 = vunpack.c.l.bf16 %v3174
  %v3239 = vunpack.c.l.bf16 %v3175
  %v3240 = vunpack.c.l.bf16 %v3176
  %v3241 = vunpack.c.l.bf16 %v3177
  %v3242 = vunpack.c.l.bf16 %v3178
  %v3243 = vunpack.c.l.bf16 %v3179
  %v3244 = vunpack.c.l.bf16 %v3180
  %v3245 = vunpack.c.l.bf16 %v3181
  %v3246 = vunpack.c.l.bf16 %v3182
  %v3247 = vunpack.c.l.bf16 %v3183
  %v3248 = vunpack.c.l.bf16 %v3184
  %v3249 = vunpack.c.l.bf16 %v3185
  %v3250 = vunpack.c.l.bf16 %v3186
  %v3251 = vsub.f32 1.0, %v2241
  %v3252 = vsub.f32 1.0, %v2244
  %v3253 = vsub.f32 1.0, %v2247
  %v3254 = vsub.f32 1.0, %v2250
  %v3255 = vsub.f32 1.0, %v2253
  %v3256 = vsub.f32 1.0, %v2256
  %v3257 = vsub.f32 1.0, %v2259
  %v3258 = vsub.f32 1.0, %v2262
  %v3259 = vsub.f32 1.0, %v2265
  %v3260 = vsub.f32 1.0, %v2268
  %v3261 = vsub.f32 1.0, %v2271
  %v3262 = vsub.f32 1.0, %v2274
  %v3263 = vsub.f32 1.0, %v2277
  %v3264 = vsub.f32 1.0, %v2280
  %v3265 = vsub.f32 1.0, %v2283
  %v3266 = vsub.f32 1.0, %v2286
  %v3267 = vsub.f32 1.0, %v2289
  %v3268 = vsub.f32 1.0, %v2292
  %v3269 = vsub.f32 1.0, %v2295
  %v3270 = vsub.f32 1.0, %v2298
  %v3271 = vsub.f32 1.0, %v2301
  %v3272 = vsub.f32 1.0, %v2304
  %v3273 = vsub.f32 1.0, %v2307
  %v3274 = vsub.f32 1.0, %v2310
  %v3275 = vsub.f32 1.0, %v2313
  %v3276 = vsub.f32 1.0, %v2316
  %v3277 = vsub.f32 1.0, %v2319
  %v3278 = vsub.f32 1.0, %v2322
  %v3279 = vsub.f32 1.0, %v2325
  %v3280 = vsub.f32 1.0, %v2328
  %v3281 = vsub.f32 1.0, %v2331
  %v3282 = vsub.f32 1.0, %v2334
  %v3283 = vsub.f32 1.0, %v2337
  %v3284 = vsub.f32 1.0, %v2340
  %v3285 = vsub.f32 1.0, %v2343
  %v3286 = vsub.f32 1.0, %v2346
  %v3287 = vsub.f32 1.0, %v2349
  %v3288 = vsub.f32 1.0, %v2352
  %v3289 = vsub.f32 1.0, %v2355
  %v3290 = vsub.f32 1.0, %v2358
  %v3291 = vsub.f32 1.0, %v2361
  %v3292 = vsub.f32 1.0, %v2364
  %v3293 = vsub.f32 1.0, %v2367
  %v3294 = vsub.f32 1.0, %v2370
  %v3295 = vsub.f32 1.0, %v2373
  %v3296 = vsub.f32 1.0, %v2376
  %v3297 = vsub.f32 1.0, %v2379
  %v3298 = vsub.f32 1.0, %v2382
  %v3299 = vsub.f32 1.0, %v2385
  %v3300 = vsub.f32 1.0, %v2388
  %v3301 = vsub.f32 1.0, %v2391
  %v3302 = vsub.f32 1.0, %v2394
  %v3303 = vsub.f32 1.0, %v2397
  %v3304 = vsub.f32 1.0, %v2400
  %v3305 = vsub.f32 1.0, %v2403
  %v3306 = vsub.f32 1.0, %v2406
  %v3307 = vsub.f32 1.0, %v2409
  %v3308 = vsub.f32 1.0, %v2412
  %v3309 = vsub.f32 1.0, %v2415
  %v3310 = vsub.f32 1.0, %v2418
  %v3311 = vsub.f32 1.0, %v2421
  %v3312 = vsub.f32 1.0, %v2424
  %v3313 = vsub.f32 1.0, %v2427
  %v3314 = vsub.f32 1.0, %v2430
  %v3315 = vmul.f32 %v3187, %v3251
  %v3316 = vmul.f32 %v3188, %v3252
  %v3317 = vmul.f32 %v3189, %v3253
  %v3318 = vmul.f32 %v3190, %v3254
  %v3319 = vmul.f32 %v3191, %v3255
  %v3320 = vmul.f32 %v3192, %v3256
  %v3321 = vmul.f32 %v3193, %v3257
  %v3322 = vmul.f32 %v3194, %v3258
  %v3323 = vmul.f32 %v3195, %v3259
  %v3324 = vmul.f32 %v3196, %v3260
  %v3325 = vmul.f32 %v3197, %v3261
  %v3326 = vmul.f32 %v3198, %v3262
  %v3327 = vmul.f32 %v3199, %v3263
  %v3328 = vmul.f32 %v3200, %v3264
  %v3329 = vmul.f32 %v3201, %v3265
  %v3330 = vmul.f32 %v3202, %v3266
  %v3331 = vmul.f32 %v3203, %v3267
  %v3332 = vmul.f32 %v3204, %v3268
  %v3333 = vmul.f32 %v3205, %v3269
  %v3334 = vmul.f32 %v3206, %v3270
  %v3335 = vmul.f32 %v3207, %v3271
  %v3336 = vmul.f32 %v3208, %v3272
  %v3337 = vmul.f32 %v3209, %v3273
  %v3338 = vmul.f32 %v3210, %v3274
  %v3339 = vmul.f32 %v3211, %v3275
  %v3340 = vmul.f32 %v3212, %v3276
  %v3341 = vmul.f32 %v3213, %v3277
  %v3342 = vmul.f32 %v3214, %v3278
  %v3343 = vmul.f32 %v3215, %v3279
  %v3344 = vmul.f32 %v3216, %v3280
  %v3345 = vmul.f32 %v3217, %v3281
  %v3346 = vmul.f32 %v3218, %v3282
  %v3347 = vmul.f32 %v3219, %v3283
  %v3348 = vmul.f32 %v3220, %v3284
  %v3349 = vmul.f32 %v3221, %v3285
  %v3350 = vmul.f32 %v3222, %v3286
  %v3351 = vmul.f32 %v3223, %v3287
  %v3352 = vmul.f32 %v3224, %v3288
  %v3353 = vmul.f32 %v3225, %v3289
  %v3354 = vmul.f32 %v3226, %v3290
  %v3355 = vmul.f32 %v3227, %v3291
  %v3356 = vmul.f32 %v3228, %v3292
  %v3357 = vmul.f32 %v3229, %v3293
  %v3358 = vmul.f32 %v3230, %v3294
  %v3359 = vmul.f32 %v3231, %v3295
  %v3360 = vmul.f32 %v3232, %v3296
  %v3361 = vmul.f32 %v3233, %v3297
  %v3362 = vmul.f32 %v3234, %v3298
  %v3363 = vmul.f32 %v3235, %v3299
  %v3364 = vmul.f32 %v3236, %v3300
  %v3365 = vmul.f32 %v3237, %v3301
  %v3366 = vmul.f32 %v3238, %v3302
  %v3367 = vmul.f32 %v3239, %v3303
  %v3368 = vmul.f32 %v3240, %v3304
  %v3369 = vmul.f32 %v3241, %v3305
  %v3370 = vmul.f32 %v3242, %v3306
  %v3371 = vmul.f32 %v3243, %v3307
  %v3372 = vmul.f32 %v3244, %v3308
  %v3373 = vmul.f32 %v3245, %v3309
  %v3374 = vmul.f32 %v3246, %v3310
  %v3375 = vmul.f32 %v3247, %v3311
  %v3376 = vmul.f32 %v3248, %v3312
  %v3377 = vmul.f32 %v3249, %v3313
  %v3378 = vmul.f32 %v3250, %v3314
  %v3379 = vadd.f32 %v3315, %v2533
  %v3380 = vadd.f32 %v3316, %v2536
  %v3381 = vadd.f32 %v3317, %v2541
  %v3382 = vadd.f32 %v3318, %v2544
  %v3383 = vadd.f32 %v3319, %v2549
  %v3384 = vadd.f32 %v3320, %v2552
  %v3385 = vadd.f32 %v3321, %v2557
  %v3386 = vadd.f32 %v3322, %v2560
  %v3387 = vadd.f32 %v3323, %v2613
  %v3388 = vadd.f32 %v3324, %v2616
  %v3389 = vadd.f32 %v3325, %v2621
  %v3390 = vadd.f32 %v3326, %v2624
  %v3391 = vadd.f32 %v3327, %v2629
  %v3392 = vadd.f32 %v3328, %v2632
  %v3393 = vadd.f32 %v3329, %v2637
  %v3394 = vadd.f32 %v3330, %v2640
  %v3395 = vadd.f32 %v3331, %v2693
  %v3396 = vadd.f32 %v3332, %v2696
  %v3397 = vadd.f32 %v3333, %v2701
  %v3398 = vadd.f32 %v3334, %v2704
  %v3399 = vadd.f32 %v3335, %v2709
  %v3400 = vadd.f32 %v3336, %v2712
  %v3401 = vadd.f32 %v3337, %v2717
  %v3402 = vadd.f32 %v3338, %v2720
  %v3403 = vadd.f32 %v3339, %v2773
  %v3404 = vadd.f32 %v3340, %v2776
  %v3405 = vadd.f32 %v3341, %v2781
  %v3406 = vadd.f32 %v3342, %v2784
  %v3407 = vadd.f32 %v3343, %v2789
  %v3408 = vadd.f32 %v3344, %v2792
  %v3409 = vadd.f32 %v3345, %v2797
  %v3410 = vadd.f32 %v3346, %v2800
  %v3411 = vadd.f32 %v3347, %v2853
  %v3412 = vadd.f32 %v3348, %v2856
  %v3413 = vadd.f32 %v3349, %v2861
  %v3414 = vadd.f32 %v3350, %v2864
  %v3415 = vadd.f32 %v3351, %v2869
  %v3416 = vadd.f32 %v3352, %v2872
  %v3417 = vadd.f32 %v3353, %v2877
  %v3418 = vadd.f32 %v3354, %v2880
  %v3419 = vadd.f32 %v3355, %v2933
  %v3420 = vadd.f32 %v3356, %v2936
  %v3421 = vadd.f32 %v3357, %v2941
  %v3422 = vadd.f32 %v3358, %v2944
  %v3423 = vadd.f32 %v3359, %v2949
  %v3424 = vadd.f32 %v3360, %v2952
  %v3425 = vadd.f32 %v3361, %v2957
  %v3426 = vadd.f32 %v3362, %v2960
  %v3427 = vadd.f32 %v3363, %v3013
  %v3428 = vadd.f32 %v3364, %v3016
  %v3429 = vadd.f32 %v3365, %v3021
  %v3430 = vadd.f32 %v3366, %v3024
  %v3431 = vadd.f32 %v3367, %v3029
  %v3432 = vadd.f32 %v3368, %v3032
  %v3433 = vadd.f32 %v3369, %v3037
  %v3434 = vadd.f32 %v3370, %v3040
  %v3435 = vadd.f32 %v3371, %v3093
  %v3436 = vadd.f32 %v3372, %v3096
  %v3437 = vadd.f32 %v3373, %v3101
  %v3438 = vadd.f32 %v3374, %v3104
  %v3439 = vadd.f32 %v3375, %v3109
  %v3440 = vadd.f32 %v3376, %v3112
  %v3441 = vadd.f32 %v3377, %v3117
  %v3442 = vadd.f32 %v3378, %v3120
  %v3443 = vpack.c.bf16 %v3380, %v3379
  %v3444 = vpack.c.bf16 %v3382, %v3381
  %v3445 = vpack.c.bf16 %v3384, %v3383
  %v3446 = vpack.c.bf16 %v3386, %v3385
  %v3447 = vpack.c.bf16 %v3388, %v3387
  %v3448 = vpack.c.bf16 %v3390, %v3389
  %v3449 = vpack.c.bf16 %v3392, %v3391
  %v3450 = vpack.c.bf16 %v3394, %v3393
  %v3451 = vpack.c.bf16 %v3396, %v3395
  %v3452 = vpack.c.bf16 %v3398, %v3397
  %v3453 = vpack.c.bf16 %v3400, %v3399
  %v3454 = vpack.c.bf16 %v3402, %v3401
  %v3455 = vpack.c.bf16 %v3404, %v3403
  %v3456 = vpack.c.bf16 %v3406, %v3405
  %v3457 = vpack.c.bf16 %v3408, %v3407
  %v3458 = vpack.c.bf16 %v3410, %v3409
  %v3459 = vpack.c.bf16 %v3412, %v3411
  %v3460 = vpack.c.bf16 %v3414, %v3413
  %v3461 = vpack.c.bf16 %v3416, %v3415
  %v3462 = vpack.c.bf16 %v3418, %v3417
  %v3463 = vpack.c.bf16 %v3420, %v3419
  %v3464 = vpack.c.bf16 %v3422, %v3421
  %v3465 = vpack.c.bf16 %v3424, %v3423
  %v3466 = vpack.c.bf16 %v3426, %v3425
  %v3467 = vpack.c.bf16 %v3428, %v3427
  %v3468 = vpack.c.bf16 %v3430, %v3429
  %v3469 = vpack.c.bf16 %v3432, %v3431
  %v3470 = vpack.c.bf16 %v3434, %v3433
  %v3471 = vpack.c.bf16 %v3436, %v3435
  %v3472 = vpack.c.bf16 %v3438, %v3437
  %v3473 = vpack.c.bf16 %v3440, %v3439
  %v3474 = vpack.c.bf16 %v3442, %v3441
  %v3507 = vunpack.c.l.b16 %v3443
  %v3508 = vunpack.c.h.b16 %v3443
  %v3509 = vunpack.c.l.b16 %v3444
  %v3510 = vunpack.c.h.b16 %v3444
  %v3511 = vunpack.c.l.b16 %v3445
  %v3512 = vunpack.c.h.b16 %v3445
  %v3513 = vunpack.c.l.b16 %v3446
  %v3514 = vunpack.c.h.b16 %v3446
  %v3515 = vunpack.c.l.b16 %v3447
  %v3516 = vunpack.c.h.b16 %v3447
  %v3517 = vunpack.c.l.b16 %v3448
  %v3518 = vunpack.c.h.b16 %v3448
  %v3519 = vunpack.c.l.b16 %v3449
  %v3520 = vunpack.c.h.b16 %v3449
  %v3521 = vunpack.c.l.b16 %v3450
  %v3522 = vunpack.c.h.b16 %v3450
  %v3523 = vunpack.c.l.b16 %v3451
  %v3524 = vunpack.c.h.b16 %v3451
  %v3525 = vunpack.c.l.b16 %v3452
  %v3526 = vunpack.c.h.b16 %v3452
  %v3527 = vunpack.c.l.b16 %v3453
  %v3528 = vunpack.c.h.b16 %v3453
  %v3529 = vunpack.c.l.b16 %v3454
  %v3530 = vunpack.c.h.b16 %v3454
  %v3531 = vunpack.c.l.b16 %v3455
  %v3532 = vunpack.c.h.b16 %v3455
  %v3533 = vunpack.c.l.b16 %v3456
  %v3534 = vunpack.c.h.b16 %v3456
  %v3535 = vunpack.c.l.b16 %v3457
  %v3536 = vunpack.c.h.b16 %v3457
  %v3537 = vunpack.c.l.b16 %v3458
  %v3538 = vunpack.c.h.b16 %v3458
  %v3539 = vunpack.c.l.b16 %v3459
  %v3540 = vunpack.c.h.b16 %v3459
  %v3541 = vunpack.c.l.b16 %v3460
  %v3542 = vunpack.c.h.b16 %v3460
  %v3543 = vunpack.c.l.b16 %v3461
  %v3544 = vunpack.c.h.b16 %v3461
  %v3545 = vunpack.c.l.b16 %v3462
  %v3546 = vunpack.c.h.b16 %v3462
  %v3547 = vunpack.c.l.b16 %v3463
  %v3548 = vunpack.c.h.b16 %v3463
  %v3549 = vunpack.c.l.b16 %v3464
  %v3550 = vunpack.c.h.b16 %v3464
  %v3551 = vunpack.c.l.b16 %v3465
  %v3552 = vunpack.c.h.b16 %v3465
  %v3553 = vunpack.c.l.b16 %v3466
  %v3554 = vunpack.c.h.b16 %v3466
  %v3555 = vunpack.c.l.b16 %v3467
  %v3556 = vunpack.c.h.b16 %v3467
  %v3557 = vunpack.c.l.b16 %v3468
  %v3558 = vunpack.c.h.b16 %v3468
  %v3559 = vunpack.c.l.b16 %v3469
  %v3560 = vunpack.c.h.b16 %v3469
  %v3561 = vunpack.c.l.b16 %v3470
  %v3562 = vunpack.c.h.b16 %v3470
  %v3563 = vunpack.c.l.b16 %v3471
  %v3564 = vunpack.c.h.b16 %v3471
  %v3565 = vunpack.c.l.b16 %v3472
  %v3566 = vunpack.c.h.b16 %v3472
  %v3567 = vunpack.c.l.b16 %v3473
  %v3568 = vunpack.c.h.b16 %v3473
  %v3569 = vunpack.c.l.b16 %v3474
  %v3570 = vunpack.c.h.b16 %v3474
  %v3571 = vpack.c.b16 %v3507, %v3507
  %v3572 = vpack.c.b16 %v3508, %v3508
  %v3573 = vpack.c.b16 %v3509, %v3509
  %v3574 = vpack.c.b16 %v3510, %v3510
  %v3575 = vpack.c.b16 %v3511, %v3511
  %v3576 = vpack.c.b16 %v3512, %v3512
  %v3577 = vpack.c.b16 %v3513, %v3513
  %v3578 = vpack.c.b16 %v3514, %v3514
  %v3579 = vpack.c.b16 %v3515, %v3515
  %v3580 = vpack.c.b16 %v3516, %v3516
  %v3581 = vpack.c.b16 %v3517, %v3517
  %v3582 = vpack.c.b16 %v3518, %v3518
  %v3583 = vpack.c.b16 %v3519, %v3519
  %v3584 = vpack.c.b16 %v3520, %v3520
  %v3585 = vpack.c.b16 %v3521, %v3521
  %v3586 = vpack.c.b16 %v3522, %v3522
  %v3587 = vpack.c.b16 %v3523, %v3523
  %v3588 = vpack.c.b16 %v3524, %v3524
  %v3589 = vpack.c.b16 %v3525, %v3525
  %v3590 = vpack.c.b16 %v3526, %v3526
  %v3591 = vpack.c.b16 %v3527, %v3527
  %v3592 = vpack.c.b16 %v3528, %v3528
  %v3593 = vpack.c.b16 %v3529, %v3529
  %v3594 = vpack.c.b16 %v3530, %v3530
  %v3595 = vpack.c.b16 %v3531, %v3531
  %v3596 = vpack.c.b16 %v3532, %v3532
  %v3597 = vpack.c.b16 %v3533, %v3533
  %v3598 = vpack.c.b16 %v3534, %v3534
  %v3599 = vpack.c.b16 %v3535, %v3535
  %v3600 = vpack.c.b16 %v3536, %v3536
  %v3601 = vpack.c.b16 %v3537, %v3537
  %v3602 = vpack.c.b16 %v3538, %v3538
  %v3603 = vpack.c.b16 %v3539, %v3539
  %v3604 = vpack.c.b16 %v3540, %v3540
  %v3605 = vpack.c.b16 %v3541, %v3541
  %v3606 = vpack.c.b16 %v3542, %v3542
  %v3607 = vpack.c.b16 %v3543, %v3543
  %v3608 = vpack.c.b16 %v3544, %v3544
  %v3609 = vpack.c.b16 %v3545, %v3545
  %v3610 = vpack.c.b16 %v3546, %v3546
  %v3611 = vpack.c.b16 %v3547, %v3547
  %v3612 = vpack.c.b16 %v3548, %v3548
  %v3613 = vpack.c.b16 %v3549, %v3549
  %v3614 = vpack.c.b16 %v3550, %v3550
  %v3615 = vpack.c.b16 %v3551, %v3551
  %v3616 = vpack.c.b16 %v3552, %v3552
  %v3617 = vpack.c.b16 %v3553, %v3553
  %v3618 = vpack.c.b16 %v3554, %v3554
  %v3619 = vpack.c.b16 %v3555, %v3555
  %v3620 = vpack.c.b16 %v3556, %v3556
  %v3621 = vpack.c.b16 %v3557, %v3557
  %v3622 = vpack.c.b16 %v3558, %v3558
  %v3623 = vpack.c.b16 %v3559, %v3559
  %v3624 = vpack.c.b16 %v3560, %v3560
  %v3625 = vpack.c.b16 %v3561, %v3561
  %v3626 = vpack.c.b16 %v3562, %v3562
  %v3627 = vpack.c.b16 %v3563, %v3563
  %v3628 = vpack.c.b16 %v3564, %v3564
  %v3629 = vpack.c.b16 %v3565, %v3565
  %v3630 = vpack.c.b16 %v3566, %v3566
  %v3631 = vpack.c.b16 %v3567, %v3567
  %v3632 = vpack.c.b16 %v3568, %v3568
  %v3633 = vpack.c.b16 %v3569, %v3569
  %v3634 = vpack.c.b16 %v3570, %v3570
  %vm3699 = vcmask 257024
  %3700 = vst.msk [vmem:[%s6] sm:$0xf] %vm3699, %v3571
  %3701 = vst.msk [vmem:[%s6 + $0x4] sm:$0xf] %vm3699, %v3572
  %3702 = vst.msk [vmem:[%s6 + $0x8] sm:$0xf] %vm3699, %v3573
  %3703 = vst.msk [vmem:[%s6 + $0xc] sm:$0xf] %vm3699, %v3574
  %3704 = vst.msk [vmem:[%s6 + $0x10] sm:$0xf] %vm3699, %v3575
  %3705 = vst.msk [vmem:[%s6 + $0x14] sm:$0xf] %vm3699, %v3576
  %3706 = vst.msk [vmem:[%s6 + $0x18] sm:$0xf] %vm3699, %v3577
  %3707 = vst.msk [vmem:[%s6 + $0x1c] sm:$0xf] %vm3699, %v3578
  %3708 = vst.msk [vmem:[%s6 + $0x20] sm:$0xf] %vm3699, %v3579
  %3709 = vst.msk [vmem:[%s6 + $0x24] sm:$0xf] %vm3699, %v3580
  %3710 = vst.msk [vmem:[%s6 + $0x28] sm:$0xf] %vm3699, %v3581
  %3711 = vst.msk [vmem:[%s6 + $0x2c] sm:$0xf] %vm3699, %v3582
  %3712 = vst.msk [vmem:[%s6 + $0x30] sm:$0xf] %vm3699, %v3583
  %3713 = vst.msk [vmem:[%s6 + $0x34] sm:$0xf] %vm3699, %v3584
  %3714 = vst.msk [vmem:[%s6 + $0x38] sm:$0xf] %vm3699, %v3585
  %3715 = vst.msk [vmem:[%s6 + $0x3c] sm:$0xf] %vm3699, %v3586
  %3716 = vst.msk [vmem:[%s6 + $0x40] sm:$0xf] %vm3699, %v3587
  %3717 = vst.msk [vmem:[%s6 + $0x44] sm:$0xf] %vm3699, %v3588
  %3718 = vst.msk [vmem:[%s6 + $0x48] sm:$0xf] %vm3699, %v3589
  %3719 = vst.msk [vmem:[%s6 + $0x4c] sm:$0xf] %vm3699, %v3590
  %3720 = vst.msk [vmem:[%s6 + $0x50] sm:$0xf] %vm3699, %v3591
  %3721 = vst.msk [vmem:[%s6 + $0x54] sm:$0xf] %vm3699, %v3592
  %3722 = vst.msk [vmem:[%s6 + $0x58] sm:$0xf] %vm3699, %v3593
  %3723 = vst.msk [vmem:[%s6 + $0x5c] sm:$0xf] %vm3699, %v3594
  %3724 = vst.msk [vmem:[%s6 + $0x60] sm:$0xf] %vm3699, %v3595
  %3725 = vst.msk [vmem:[%s6 + $0x64] sm:$0xf] %vm3699, %v3596
  %3726 = vst.msk [vmem:[%s6 + $0x68] sm:$0xf] %vm3699, %v3597
  %3727 = vst.msk [vmem:[%s6 + $0x6c] sm:$0xf] %vm3699, %v3598
  %3728 = vst.msk [vmem:[%s6 + $0x70] sm:$0xf] %vm3699, %v3599
  %3729 = vst.msk [vmem:[%s6 + $0x74] sm:$0xf] %vm3699, %v3600
  %3730 = vst.msk [vmem:[%s6 + $0x78] sm:$0xf] %vm3699, %v3601
  %3731 = vst.msk [vmem:[%s6 + $0x7c] sm:$0xf] %vm3699, %v3602
  %3732 = vst.msk [vmem:[%s6 + $0x80] sm:$0xf] %vm3699, %v3603
  %3733 = vst.msk [vmem:[%s6 + $0x84] sm:$0xf] %vm3699, %v3604
  %3734 = vst.msk [vmem:[%s6 + $0x88] sm:$0xf] %vm3699, %v3605
  %3735 = vst.msk [vmem:[%s6 + $0x8c] sm:$0xf] %vm3699, %v3606
  %3736 = vst.msk [vmem:[%s6 + $0x90] sm:$0xf] %vm3699, %v3607
  %3737 = vst.msk [vmem:[%s6 + $0x94] sm:$0xf] %vm3699, %v3608
  %3738 = vst.msk [vmem:[%s6 + $0x98] sm:$0xf] %vm3699, %v3609
  %3739 = vst.msk [vmem:[%s6 + $0x9c] sm:$0xf] %vm3699, %v3610
  %3740 = vst.msk [vmem:[%s6 + $0xa0] sm:$0xf] %vm3699, %v3611
  %3741 = vst.msk [vmem:[%s6 + $0xa4] sm:$0xf] %vm3699, %v3612
  %3742 = vst.msk [vmem:[%s6 + $0xa8] sm:$0xf] %vm3699, %v3613
  %3743 = vst.msk [vmem:[%s6 + $0xac] sm:$0xf] %vm3699, %v3614
  %3744 = vst.msk [vmem:[%s6 + $0xb0] sm:$0xf] %vm3699, %v3615
  %3745 = vst.msk [vmem:[%s6 + $0xb4] sm:$0xf] %vm3699, %v3616
  %3746 = vst.msk [vmem:[%s6 + $0xb8] sm:$0xf] %vm3699, %v3617
  %3747 = vst.msk [vmem:[%s6 + $0xbc] sm:$0xf] %vm3699, %v3618
  %3748 = vst.msk [vmem:[%s6 + $0xc0] sm:$0xf] %vm3699, %v3619
  %3749 = vst.msk [vmem:[%s6 + $0xc4] sm:$0xf] %vm3699, %v3620
  %3750 = vst.msk [vmem:[%s6 + $0xc8] sm:$0xf] %vm3699, %v3621
  %3751 = vst.msk [vmem:[%s6 + $0xcc] sm:$0xf] %vm3699, %v3622
  %3752 = vst.msk [vmem:[%s6 + $0xd0] sm:$0xf] %vm3699, %v3623
  %3753 = vst.msk [vmem:[%s6 + $0xd4] sm:$0xf] %vm3699, %v3624
  %3754 = vst.msk [vmem:[%s6 + $0xd8] sm:$0xf] %vm3699, %v3625
  %3755 = vst.msk [vmem:[%s6 + $0xdc] sm:$0xf] %vm3699, %v3626
  %3756 = vst.msk [vmem:[%s6 + $0xe0] sm:$0xf] %vm3699, %v3627
  %3757 = vst.msk [vmem:[%s6 + $0xe4] sm:$0xf] %vm3699, %v3628
  %3758 = vst.msk [vmem:[%s6 + $0xe8] sm:$0xf] %vm3699, %v3629
  %3759 = vst.msk [vmem:[%s6 + $0xec] sm:$0xf] %vm3699, %v3630
  %3760 = vst.msk [vmem:[%s6 + $0xf0] sm:$0xf] %vm3699, %v3631
  %3761 = vst.msk [vmem:[%s6 + $0xf4] sm:$0xf] %vm3699, %v3632
  %3762 = vst.msk [vmem:[%s6 + $0xf8] sm:$0xf] %vm3699, %v3633
  %3763 = vst.msk [vmem:[%s6 + $0xfc] sm:$0xf] %vm3699, %v3634
  // Predicated region
  $region26: #{prob_attention.3} parent=0 // pred_check
    _
  $region27: #{prob_attention.3} parent=0 // pred_check_branch
    %3765 = sbr.rel (0) target = $region29
  $region28: #{prob_attention.3} parent=0 // pred_region
    _
  $region29: #{prob_attention.3} parent=0 // pred_fallthru
    _
  // Predicated region
  $region30: #{prob_attention.3} parent=0 // pred_check
    _
  $region31: #{prob_attention.3} parent=0 // pred_check_branch
    %3767 = sbr.rel (0) target = $region33
  $region32: #{prob_attention.3} parent=0 // pred_region
    _
  $region33: #{prob_attention.3} parent=0 // pred_fallthru
    _

</llo_original>
